<compile_context>
chip_gen: v5e
topology: v5e:2x2
jax: 0.10.0
libtpu: 0.0.40
codegen_flags: <defaults>
</compile_context>

<pallas_src>
import jax
import jax.numpy as jnp
from jax import lax
from jax.experimental import pallas as pl
from jax.experimental.pallas import tpu as pltpu


# ---------------------------------------------------------------------------
# Kernel
# ---------------------------------------------------------------------------
def _make_kernel(*, KH, KW, Ho, Wo, stride, E, P):
    def kernel(x_ref, w_ref, v_ref, s_ref, bias_ref, o_ref):
        """Fused main conv (shifted matmuls) + constant-image extra convs.

        x_ref:    [bb, Hp, Wp, Cin]   zero-padded NHWC input tile (bf16/f32)
        w_ref:    [KH*KW*Cin, Cout]   main conv weight, (kh,kw,cin)-major
        v_ref:    [bb, Cout, E]       conditioning values (f32)
        s_ref:    [E, Cout, P]        extra-conv window-sum table (f32)
        bias_ref: [Cout, 1]           main + extra biases, folded (f32)
        o_ref:    [bb, Cout, P]       lane-dense, channels-first output
        """
        bb, _, _, Cin = x_ref.shape

        # ---- main conv: KH*KW shifted, accumulating MXU matmuls (f32 acc) ----
        acc = None
        for t in range(KH * KW):
            kh, kw = divmod(t, KW)
            if stride == 1:
                slab = x_ref[:, kh:kh + Ho, kw:kw + Wo, :]
            else:
                slab = x_ref[:, pl.ds(kh, Ho, stride), pl.ds(kw, Wo, stride), :]
            slab2 = slab.reshape(bb * P, Cin)                  # [bb*P, Cin]
            w_tap = w_ref[t * Cin:(t + 1) * Cin, :]            # [Cin, Cout]
            part = jnp.dot(slab2, w_tap, preferred_element_type=jnp.float32)
            acc = part if acc is None else acc + part          # [bb*P, Cout] f32

        v = v_ref[...]         # [bb, Cout, E]
        s = s_ref[...]         # [E, Cout, P]
        bias = bias_ref[...]   # [Cout, 1]

        # ---- per batch element: transpose once to lane-dense [Cout, P] and
        #      fuse the Cout constant-image extra convs as E broadcast FMAs ----
        for bi in range(bb):
            out_b = acc[bi * P:(bi + 1) * P, :].T + bias       # [Cout, P]
            for e in range(E):
                out_b = out_b + v[bi, :, e:e + 1] * s[e]       # [Cout,1]*[Cout,P]
            o_ref[bi] = out_b.astype(o_ref.dtype)

    return kernel


# ---------------------------------------------------------------------------
# Parameters (synthetic, deterministic; mirrors PyTorch default conv init)
# ---------------------------------------------------------------------------
def init_params(key, in_channels, out_channels, kernel_size,
                forward_embedding_size=3, dtype=jnp.float32):
    KH = KW = kernel_size
    k1, k2, k3, k4 = jax.random.split(key, 4)
    bound = 1.0 / (in_channels * KH * KW) ** 0.5
    w = jax.random.uniform(k1, (out_channels, in_channels, KH, KW), dtype, -bound, bound)
    b = jax.random.uniform(k2, (out_channels,), dtype, -bound, bound)
    bound_e = 1.0 / (forward_embedding_size * KH * KW) ** 0.5
    we = jax.random.uniform(k3, (out_channels, forward_embedding_size, KH, KW),
                            dtype, -bound_e, bound_e)
    be = jax.random.uniform(k4, (out_channels,), dtype, -bound_e, bound_e)
    return {"w": w, "b": b, "we": we, "be": be}


# ---------------------------------------------------------------------------
# Wrapper
# ---------------------------------------------------------------------------
def custom_conv_with_extra_forward(x, params, extra_inputs=None, *,
                                   stride=1, padding=1, block_b=8,
                                   mxu_dtype=jnp.bfloat16):
    """x: [B, Cin, H, W]; extra_inputs: None or [B, Cout*E]. Returns NCHW."""
    w, b, we, be = params["w"], params["b"], params["we"], params["be"]
    B, Cin, H, W = x.shape
    Cout, _, KH, KW = w.shape
    E = we.shape[1]
    Ho = (H + 2 * padding - KH) // stride + 1
    Wo = (W + 2 * padding - KW) // stride + 1
    P = Ho * Wo
    Hp, Wp = H + 2 * padding, W + 2 * padding
    out_dtype = x.dtype

    if extra_inputs is None:
        # PyTorch path: zeros -> extra convs contribute only their biases.
        extra_inputs = jnp.zeros((B, Cout * E), x.dtype)

    # --- batch tiling: keep >=2 grid steps when possible (megacore on v7x,
    #     DMA/compute overlap); pad B instead of asserting divisibility. ---
    bb = max(1, min(block_b, B))
    if B >= 2:
        bb = min(bb, max(1, B // 2))
    Bp = pl.cdiv(B, bb) * bb
    if Bp != B:
        x = jnp.pad(x, ((0, Bp - B), (0, 0), (0, 0), (0, 0)))
        extra_inputs = jnp.pad(extra_inputs, ((0, Bp - B), (0, 0)))

    # --- wrapper-side layout plumbing (1x HBM traffic, no im2col) ---
    x_nhwc = jnp.transpose(x, (0, 2, 3, 1))
    xp = jnp.pad(x_nhwc, ((0, 0), (padding, padding), (padding, padding), (0, 0)))
    xp = xp.astype(mxu_dtype)

    # Main conv weight [(kh,kw,cin), Cout] (sliced per tap in-kernel).
    w2 = jnp.transpose(w, (2, 3, 1, 0)).reshape(KH * KW * Cin, Cout).astype(mxu_dtype)

    # Fold main + extra biases into one column (f32).
    bias = (b + be).reshape(Cout, 1).astype(jnp.float32)

    # Extra convs see spatially-constant inputs: conv(const) at output p is
    # sum_e v[b,co,e] * S[e,co,p] with S the masked window-sum of we.
    oh = jnp.arange(Ho); kh_i = jnp.arange(KH)
    ow = jnp.arange(Wo); kw_i = jnp.arange(KW)
    ih = oh[None, :] * stride - padding + kh_i[:, None]          # [KH, Ho]
    iw = ow[None, :] * stride - padding + kw_i[:, None]          # [KW, Wo]
    mh = ((ih >= 0) & (ih < H)).astype(jnp.float32)
    mw = ((iw >= 0) & (iw < W)).astype(jnp.float32)
    s_tab = jnp.einsum("cekl,kh,lw->echw", we.astype(jnp.float32), mh, mw)
    s_tab = s_tab.reshape(E, Cout, P)

    # Conditioning values [Bp, Cout, E] (kept f32: VPU path f32 on all gens).
    v = extra_inputs.reshape(Bp, Cout, E).astype(jnp.float32)

    grid = (Bp // bb,)
    kernel = _make_kernel(KH=KH, KW=KW, Ho=Ho, Wo=Wo, stride=stride, E=E, P=P)

    # Rough per-step VMEM footprint (double-buffered tiles + constants).
    def _pad_bytes(shape, itemsize):
        s = list(shape)
        s[-1] = -(-s[-1] // 128) * 128
        if len(s) >= 2:
            s[-2] = -(-s[-2] // 8) * 8
        n = 1
        for d in s:
            n *= d
        return n * itemsize

    it_in = jnp.dtype(mxu_dtype).itemsize
    est = (2 * _pad_bytes((bb, Hp, Wp, Cin), it_in)
           + 2 * _pad_bytes((bb, Cout, P), 4)
           + _pad_bytes((KH * KW * Cin, Cout), it_in)
           + _pad_bytes((E, Cout, P), 4)
           + 2 * _pad_bytes((bb, Cout, E), 4)
           + _pad_bytes((Cout, 1), 4))
    vmem_limit = int(min(64 * 2 ** 20, max(32 * 2 ** 20, 4 * est)))
    # NOTE: for very large Cin/H/W one would add a reduction grid axis over the
    # taps/Cin (marked "arbitrary", f32 scratch accumulator) to cap the tile;
    # unnecessary at these sizes.

    flops = 2 * Bp * P * (Cin * KH * KW) * Cout + 2 * Bp * P * Cout * E
    bytes_accessed = (Bp * Hp * Wp * Cin * it_in + KH * KW * Cin * Cout * it_in
                      + 4 * (E * Cout * P + Bp * Cout * E + Cout)
                      + 4 * Bp * Cout * P)

    out = pl.pallas_call(
        kernel,
        out_shape=jax.ShapeDtypeStruct((Bp, Cout, P), out_dtype),
        grid_spec=pltpu.PrefetchScalarGridSpec(
            num_scalar_prefetch=0,
            grid=grid,
            in_specs=[
                pl.BlockSpec((bb, Hp, Wp, Cin), lambda i: (i, 0, 0, 0)),  # x tile
                pl.BlockSpec((KH * KW * Cin, Cout), lambda i: (0, 0)),    # main W
                pl.BlockSpec((bb, Cout, E), lambda i: (i, 0, 0)),         # v
                pl.BlockSpec((E, Cout, P), lambda i: (0, 0, 0)),          # S table
                pl.BlockSpec((Cout, 1), lambda i: (0, 0)),                # bias
            ],
            out_specs=pl.BlockSpec((bb, Cout, P), lambda i: (i, 0, 0)),
        ),
        compiler_params=pltpu.CompilerParams(
            dimension_semantics=("parallel",),
            vmem_limit_bytes=vmem_limit),
        cost_estimate=pl.CostEstimate(flops=flops, transcendentals=0,
                                      bytes_accessed=bytes_accessed),
    )(xp, w2, v, s_tab, bias)

    # [Bp, Cout, P] is already channels-first: reshape -> NCHW, no transpose.
    return out.reshape(Bp, Cout, Ho, Wo)[:B]


# ---------------------------------------------------------------------------
# Pure-JAX reference (mirrors the PyTorch module literally)
# ---------------------------------------------------------------------------
def reference_forward(x, params, extra_inputs=None, *, stride=1, padding=1):
    w, b, we, be = params["w"], params["b"], params["we"], params["be"]
    B, Cin, H, W = x.shape
    Cout, E = we.shape[0], we.shape[1]
    dn = ("NCHW", "OIHW", "NCHW")
    pad = [(padding, padding), (padding, padding)]
    main = lax.conv_general_dilated(x, w, (stride, stride), pad,
                                    dimension_numbers=dn)
    main = main + b[None, :, None, None]
    if extra_inputs is None:
        extra_inputs = jnp.zeros((B, Cout * E), x.dtype)
    extras = []
    for i in range(Cout):
        ei = extra_inputs[:, i * E:(i + 1) * E].reshape(B, E, 1, 1)
        ei = jnp.broadcast_to(ei, (B, E, H, W))
        oi = lax.conv_general_dilated(ei, we[i:i + 1], (stride, stride), pad,
                                      dimension_numbers=dn)
        extras.append(oi + be[i])
    return main + jnp.concatenate(extras, axis=1)


if __name__ == "__main__":
    key = jax.random.PRNGKey(0)
    k_p, k_x, k_e = jax.random.split(key, 3)

    B, Cin, H, W = 2, 4, 16, 16
    Cout, Ksz, E = 8, 3, 3
    stride, padding = 1, 1

    params = init_params(k_p, Cin, Cout, Ksz, E)
    x = jax.random.normal(k_x, (B, Cin, H, W), jnp.float32)
    extra_inputs = jax.random.normal(k_e, (B, Cout * E), jnp.float32)

    # Reference in full f32 precision (scoped; does not affect the kernel).
    with jax.default_matmul_precision("highest"):
        ref = reference_forward(x, params, extra_inputs, stride=stride, padding=padding)
        ref0 = reference_forward(x, params, None, stride=stride, padding=padding)

    # Kernel, default bf16 MXU operands with f32 accumulation.
    out = custom_conv_with_extra_forward(x, params, extra_inputs,
                                         stride=stride, padding=padding)
    out = jax.block_until_ready(out)
    assert out.shape == (B, Cout, H, W)
    assert jnp.allclose(out, ref, atol=5e-2, rtol=5e-2), "mismatch (extra_inputs path)"

    # extra_inputs = None -> zeros: extra convs contribute only their biases.
    out0 = custom_conv_with_extra_forward(x, params, None,
                                          stride=stride, padding=padding)
    out0 = jax.block_until_ready(out0)
    assert jnp.allclose(out0, ref0, atol=5e-2, rtol=5e-2), "mismatch (None path)"

    # Tight check on the extra branch: the main conv cancels in the difference,
    # isolating the f32 S-table / conditioning math.
    assert jnp.allclose(out - out0, ref - ref0, atol=1e-3, rtol=1e-3), \
        "mismatch (extra branch)"

    print("KERNEL_OK")
</pallas_src>

<mosaic_0001>
module attributes {stable_mosaic.version = 11 : i64} {
  func.func @kernel(%arg0: i32, %arg1: memref<1x18x18x4xbf16, #tpu.memory_space<vmem>>, %arg2: memref<36x8xbf16, #tpu.memory_space<vmem>>, %arg3: memref<1x8x3xf32, #tpu.memory_space<vmem>>, %arg4: memref<3x8x256xf32, #tpu.memory_space<vmem>>, %arg5: memref<8x1xf32, #tpu.memory_space<vmem>>, %arg6: memref<1x8x256xf32, #tpu.memory_space<vmem>>) attributes {dimension_semantics = [#tpu.dimension_semantics<parallel>], iteration_bounds = array<i64: 2>, scalar_prefetch = 0 : i64, scratch_operands = 0 : i64, tpu.core_type = #tpu.core_type<tc>, window_params = [{transform_indices = @transform_0, window_bounds = array<i64: 1, 18, 18, 4>}, {pipeline_mode = #tpu.pipeline_mode<synchronous>, transform_indices = @transform_1, window_bounds = array<i64: 36, 8>}, {transform_indices = @transform_2, window_bounds = array<i64: 1, 8, 3>}, {pipeline_mode = #tpu.pipeline_mode<synchronous>, transform_indices = @transform_3, window_bounds = array<i64: 3, 8, 256>}, {pipeline_mode = #tpu.pipeline_mode<synchronous>, transform_indices = @transform_4, window_bounds = array<i64: 8, 1>}, {transform_indices = @transform_5, window_bounds = array<i64: 1, 8, 256>}]} {
    %c0 = arith.constant 0 : index
    %c0_0 = arith.constant 0 : index
    %c0_1 = arith.constant 0 : index
    %c0_2 = arith.constant 0 : index
    %0 = vector.load %arg1[%c0, %c0_0, %c0_1, %c0_2] : memref<1x18x18x4xbf16, #tpu.memory_space<vmem>>, vector<1x16x16x4xbf16>
    %1 = vector.shape_cast %0 : vector<1x16x16x4xbf16> to vector<256x4xbf16>
    %c0_3 = arith.constant 0 : index
    %c0_4 = arith.constant 0 : index
    %2 = vector.load %arg2[%c0_3, %c0_4] : memref<36x8xbf16, #tpu.memory_space<vmem>>, vector<4x8xbf16>
    %cst = arith.constant dense<0.000000e+00> : vector<256x8xf32>
    %3 = tpu.matmul %1, %2, %cst {dimension_numbers = #tpu.dot_dimension_numbers<[1], [0], [0], [1], [0, 0, 1, 1], [], []>} : vector<256x4xbf16>, vector<4x8xbf16>, vector<256x8xf32> -> vector<256x8xf32>
    %c0_5 = arith.constant 0 : index
    %c0_6 = arith.constant 0 : index
    %c1 = arith.constant 1 : index
    %c0_7 = arith.constant 0 : index
    %4 = vector.load %arg1[%c0_5, %c0_6, %c1, %c0_7] : memref<1x18x18x4xbf16, #tpu.memory_space<vmem>>, vector<1x16x16x4xbf16>
    %5 = vector.shape_cast %4 : vector<1x16x16x4xbf16> to vector<256x4xbf16>
    %c4 = arith.constant 4 : index
    %c0_8 = arith.constant 0 : index
    %6 = vector.load %arg2[%c4, %c0_8] : memref<36x8xbf16, #tpu.memory_space<vmem>>, vector<4x8xbf16>
    %cst_9 = arith.constant dense<0.000000e+00> : vector<256x8xf32>
    %7 = tpu.matmul %5, %6, %cst_9 {dimension_numbers = #tpu.dot_dimension_numbers<[1], [0], [0], [1], [0, 0, 1, 1], [], []>} : vector<256x4xbf16>, vector<4x8xbf16>, vector<256x8xf32> -> vector<256x8xf32>
    %8 = arith.addf %3, %7 : vector<256x8xf32>
    %c0_10 = arith.constant 0 : index
    %c0_11 = arith.constant 0 : index
    %c2 = arith.constant 2 : index
    %c0_12 = arith.constant 0 : index
    %9 = vector.load %arg1[%c0_10, %c0_11, %c2, %c0_12] : memref<1x18x18x4xbf16, #tpu.memory_space<vmem>>, vector<1x16x16x4xbf16>
    %10 = vector.shape_cast %9 : vector<1x16x16x4xbf16> to vector<256x4xbf16>
    %c8 = arith.constant 8 : index
    %c0_13 = arith.constant 0 : index
    %11 = vector.load %arg2[%c8, %c0_13] : memref<36x8xbf16, #tpu.memory_space<vmem>>, vector<4x8xbf16>
    %cst_14 = arith.constant dense<0.000000e+00> : vector<256x8xf32>
    %12 = tpu.matmul %10, %11, %cst_14 {dimension_numbers = #tpu.dot_dimension_numbers<[1], [0], [0], [1], [0, 0, 1, 1], [], []>} : vector<256x4xbf16>, vector<4x8xbf16>, vector<256x8xf32> -> vector<256x8xf32>
    %13 = arith.addf %8, %12 : vector<256x8xf32>
    %c0_15 = arith.constant 0 : index
    %c1_16 = arith.constant 1 : index
    %c0_17 = arith.constant 0 : index
    %c0_18 = arith.constant 0 : index
    %14 = vector.load %arg1[%c0_15, %c1_16, %c0_17, %c0_18] : memref<1x18x18x4xbf16, #tpu.memory_space<vmem>>, vector<1x16x16x4xbf16>
    %15 = vector.shape_cast %14 : vector<1x16x16x4xbf16> to vector<256x4xbf16>
    %c12 = arith.constant 12 : index
    %c0_19 = arith.constant 0 : index
    %16 = vector.load %arg2[%c12, %c0_19] : memref<36x8xbf16, #tpu.memory_space<vmem>>, vector<4x8xbf16>
    %cst_20 = arith.constant dense<0.000000e+00> : vector<256x8xf32>
    %17 = tpu.matmul %15, %16, %cst_20 {dimension_numbers = #tpu.dot_dimension_numbers<[1], [0], [0], [1], [0, 0, 1, 1], [], []>} : vector<256x4xbf16>, vector<4x8xbf16>, vector<256x8xf32> -> vector<256x8xf32>
    %18 = arith.addf %13, %17 : vector<256x8xf32>
    %c0_21 = arith.constant 0 : index
    %c1_22 = arith.constant 1 : index
    %c1_23 = arith.constant 1 : index
    %c0_24 = arith.constant 0 : index
    %19 = vector.load %arg1[%c0_21, %c1_22, %c1_23, %c0_24] : memref<1x18x18x4xbf16, #tpu.memory_space<vmem>>, vector<1x16x16x4xbf16>
    %20 = vector.shape_cast %19 : vector<1x16x16x4xbf16> to vector<256x4xbf16>
    %c16 = arith.constant 16 : index
    %c0_25 = arith.constant 0 : index
    %21 = vector.load %arg2[%c16, %c0_25] : memref<36x8xbf16, #tpu.memory_space<vmem>>, vector<4x8xbf16>
    %cst_26 = arith.constant dense<0.000000e+00> : vector<256x8xf32>
    %22 = tpu.matmul %20, %21, %cst_26 {dimension_numbers = #tpu.dot_dimension_numbers<[1], [0], [0], [1], [0, 0, 1, 1], [], []>} : vector<256x4xbf16>, vector<4x8xbf16>, vector<256x8xf32> -> vector<256x8xf32>
    %23 = arith.addf %18, %22 : vector<256x8xf32>
    %c0_27 = arith.constant 0 : index
    %c1_28 = arith.constant 1 : index
    %c2_29 = arith.constant 2 : index
    %c0_30 = arith.constant 0 : index
    %24 = vector.load %arg1[%c0_27, %c1_28, %c2_29, %c0_30] : memref<1x18x18x4xbf16, #tpu.memory_space<vmem>>, vector<1x16x16x4xbf16>
    %25 = vector.shape_cast %24 : vector<1x16x16x4xbf16> to vector<256x4xbf16>
    %c20 = arith.constant 20 : index
    %c0_31 = arith.constant 0 : index
    %26 = vector.load %arg2[%c20, %c0_31] : memref<36x8xbf16, #tpu.memory_space<vmem>>, vector<4x8xbf16>
    %cst_32 = arith.constant dense<0.000000e+00> : vector<256x8xf32>
    %27 = tpu.matmul %25, %26, %cst_32 {dimension_numbers = #tpu.dot_dimension_numbers<[1], [0], [0], [1], [0, 0, 1, 1], [], []>} : vector<256x4xbf16>, vector<4x8xbf16>, vector<256x8xf32> -> vector<256x8xf32>
    %28 = arith.addf %23, %27 : vector<256x8xf32>
    %c0_33 = arith.constant 0 : index
    %c2_34 = arith.constant 2 : index
    %c0_35 = arith.constant 0 : index
    %c0_36 = arith.constant 0 : index
    %29 = vector.load %arg1[%c0_33, %c2_34, %c0_35, %c0_36] : memref<1x18x18x4xbf16, #tpu.memory_space<vmem>>, vector<1x16x16x4xbf16>
    %30 = vector.shape_cast %29 : vector<1x16x16x4xbf16> to vector<256x4xbf16>
    %c24 = arith.constant 24 : index
    %c0_37 = arith.constant 0 : index
    %31 = vector.load %arg2[%c24, %c0_37] : memref<36x8xbf16, #tpu.memory_space<vmem>>, vector<4x8xbf16>
    %cst_38 = arith.constant dense<0.000000e+00> : vector<256x8xf32>
    %32 = tpu.matmul %30, %31, %cst_38 {dimension_numbers = #tpu.dot_dimension_numbers<[1], [0], [0], [1], [0, 0, 1, 1], [], []>} : vector<256x4xbf16>, vector<4x8xbf16>, vector<256x8xf32> -> vector<256x8xf32>
    %33 = arith.addf %28, %32 : vector<256x8xf32>
    %c0_39 = arith.constant 0 : index
    %c2_40 = arith.constant 2 : index
    %c1_41 = arith.constant 1 : index
    %c0_42 = arith.constant 0 : index
    %34 = vector.load %arg1[%c0_39, %c2_40, %c1_41, %c0_42] : memref<1x18x18x4xbf16, #tpu.memory_space<vmem>>, vector<1x16x16x4xbf16>
    %35 = vector.shape_cast %34 : vector<1x16x16x4xbf16> to vector<256x4xbf16>
    %c28 = arith.constant 28 : index
    %c0_43 = arith.constant 0 : index
    %36 = vector.load %arg2[%c28, %c0_43] : memref<36x8xbf16, #tpu.memory_space<vmem>>, vector<4x8xbf16>
    %cst_44 = arith.constant dense<0.000000e+00> : vector<256x8xf32>
    %37 = tpu.matmul %35, %36, %cst_44 {dimension_numbers = #tpu.dot_dimension_numbers<[1], [0], [0], [1], [0, 0, 1, 1], [], []>} : vector<256x4xbf16>, vector<4x8xbf16>, vector<256x8xf32> -> vector<256x8xf32>
    %38 = arith.addf %33, %37 : vector<256x8xf32>
    %c0_45 = arith.constant 0 : index
    %c2_46 = arith.constant 2 : index
    %c2_47 = arith.constant 2 : index
    %c0_48 = arith.constant 0 : index
    %39 = vector.load %arg1[%c0_45, %c2_46, %c2_47, %c0_48] : memref<1x18x18x4xbf16, #tpu.memory_space<vmem>>, vector<1x16x16x4xbf16>
    %40 = vector.shape_cast %39 : vector<1x16x16x4xbf16> to vector<256x4xbf16>
    %c32 = arith.constant 32 : index
    %c0_49 = arith.constant 0 : index
    %41 = vector.load %arg2[%c32, %c0_49] : memref<36x8xbf16, #tpu.memory_space<vmem>>, vector<4x8xbf16>
    %cst_50 = arith.constant dense<0.000000e+00> : vector<256x8xf32>
    %42 = tpu.matmul %40, %41, %cst_50 {dimension_numbers = #tpu.dot_dimension_numbers<[1], [0], [0], [1], [0, 0, 1, 1], [], []>} : vector<256x4xbf16>, vector<4x8xbf16>, vector<256x8xf32> -> vector<256x8xf32>
    %43 = arith.addf %38, %42 : vector<256x8xf32>
    %c0_51 = arith.constant 0 : index
    %c0_52 = arith.constant 0 : index
    %c0_53 = arith.constant 0 : index
    %44 = vector.load %arg3[%c0_51, %c0_52, %c0_53] : memref<1x8x3xf32, #tpu.memory_space<vmem>>, vector<1x8x3xf32>
    %c0_54 = arith.constant 0 : index
    %c0_55 = arith.constant 0 : index
    %c0_56 = arith.constant 0 : index
    %45 = vector.load %arg4[%c0_54, %c0_55, %c0_56] : memref<3x8x256xf32, #tpu.memory_space<vmem>>, vector<3x8x256xf32>
    %c0_57 = arith.constant 0 : index
    %c0_58 = arith.constant 0 : index
    %46 = vector.load %arg5[%c0_57, %c0_58] : memref<8x1xf32, #tpu.memory_space<vmem>>, vector<8x1xf32>
    %47 = tpu.transpose %43, [1, 0] : vector<256x8xf32> -> vector<8x256xf32>
    %48 = vector.broadcast %46 : vector<8x1xf32> to vector<8x256xf32>
    %49 = arith.addf %47, %48 : vector<8x256xf32>
    %50 = vector.extract_strided_slice %44 {offsets = [0, 0, 0], sizes = [1, 8, 1], strides = [1, 1, 1]} : vector<1x8x3xf32> to vector<1x8x1xf32>
    %51 = vector.shape_cast %50 : vector<1x8x1xf32> to vector<8x1xf32>
    %52 = vector.extract_strided_slice %45 {offsets = [0, 0, 0], sizes = [1, 8, 256], strides = [1, 1, 1]} : vector<3x8x256xf32> to vector<1x8x256xf32>
    %53 = vector.shape_cast %52 : vector<1x8x256xf32> to vector<8x256xf32>
    %54 = vector.broadcast %51 : vector<8x1xf32> to vector<8x256xf32>
    %55 = arith.mulf %54, %53 : vector<8x256xf32>
    %56 = arith.addf %49, %55 : vector<8x256xf32>
    %57 = vector.extract_strided_slice %44 {offsets = [0, 0, 1], sizes = [1, 8, 1], strides = [1, 1, 1]} : vector<1x8x3xf32> to vector<1x8x1xf32>
    %58 = vector.shape_cast %57 : vector<1x8x1xf32> to vector<8x1xf32>
    %59 = vector.extract_strided_slice %45 {offsets = [1, 0, 0], sizes = [1, 8, 256], strides = [1, 1, 1]} : vector<3x8x256xf32> to vector<1x8x256xf32>
    %60 = vector.shape_cast %59 : vector<1x8x256xf32> to vector<8x256xf32>
    %61 = vector.broadcast %58 : vector<8x1xf32> to vector<8x256xf32>
    %62 = arith.mulf %61, %60 : vector<8x256xf32>
    %63 = arith.addf %56, %62 : vector<8x256xf32>
    %64 = vector.extract_strided_slice %44 {offsets = [0, 0, 2], sizes = [1, 8, 1], strides = [1, 1, 1]} : vector<1x8x3xf32> to vector<1x8x1xf32>
    %65 = vector.shape_cast %64 : vector<1x8x1xf32> to vector<8x1xf32>
    %66 = vector.extract_strided_slice %45 {offsets = [2, 0, 0], sizes = [1, 8, 256], strides = [1, 1, 1]} : vector<3x8x256xf32> to vector<1x8x256xf32>
    %67 = vector.shape_cast %66 : vector<1x8x256xf32> to vector<8x256xf32>
    %68 = vector.broadcast %65 : vector<8x1xf32> to vector<8x256xf32>
    %69 = arith.mulf %68, %67 : vector<8x256xf32>
    %70 = arith.addf %63, %69 : vector<8x256xf32>
    %c0_59 = arith.constant 0 : index
    %c0_60 = arith.constant 0 : index
    %c0_61 = arith.constant 0 : index
    %71 = vector.load %arg6[%c0_59, %c0_60, %c0_61] : memref<1x8x256xf32, #tpu.memory_space<vmem>>, vector<1x8x256xf32>
    %72 = vector.shape_cast %71 : vector<1x8x256xf32> to vector<8x256xf32>
    %73 = vector.shape_cast %70 : vector<8x256xf32> to vector<1x8x256xf32>
    tpu.vector_store %arg6[%c0_59, %c0_60, %c0_61], %73 {strides = array<i32>} : memref<1x8x256xf32, #tpu.memory_space<vmem>>, vector<1x8x256xf32>,
    return
  }
  func.func @transform_0(%arg0: i32) -> (i32, i32, i32, i32) {
    %c0_i32 = arith.constant 0 : i32
    %c0_i32_0 = arith.constant 0 : i32
    %c0_i32_1 = arith.constant 0 : i32
    %c0_i32_2 = arith.constant 0 : i32
    return %arg0, %c0_i32, %c0_i32_0, %c0_i32_1 : i32, i32, i32, i32
  }
  func.func @transform_1(%arg0: i32) -> (i32, i32) {
    %c0_i32 = arith.constant 0 : i32
    %c0_i32_0 = arith.constant 0 : i32
    %c0_i32_1 = arith.constant 0 : i32
    return %c0_i32, %c0_i32_0 : i32, i32
  }
  func.func @transform_2(%arg0: i32) -> (i32, i32, i32) {
    %c0_i32 = arith.constant 0 : i32
    %c0_i32_0 = arith.constant 0 : i32
    %c0_i32_1 = arith.constant 0 : i32
    return %arg0, %c0_i32, %c0_i32_0 : i32, i32, i32
  }
  func.func @transform_3(%arg0: i32) -> (i32, i32, i32) {
    %c0_i32 = arith.constant 0 : i32
    %c0_i32_0 = arith.constant 0 : i32
    %c0_i32_1 = arith.constant 0 : i32
    %c0_i32_2 = arith.constant 0 : i32
    return %c0_i32, %c0_i32_0, %c0_i32_1 : i32, i32, i32
  }
  func.func @transform_4(%arg0: i32) -> (i32, i32) {
    %c0_i32 = arith.constant 0 : i32
    %c0_i32_0 = arith.constant 0 : i32
    %c0_i32_1 = arith.constant 0 : i32
    return %c0_i32, %c0_i32_0 : i32, i32
  }
  func.func @transform_5(%arg0: i32) -> (i32, i32, i32) {
    %c0_i32 = arith.constant 0 : i32
    %c0_i32_0 = arith.constant 0 : i32
    %c0_i32_1 = arith.constant 0 : i32
    return %arg0, %c0_i32, %c0_i32_0 : i32, i32, i32
  }
}

</mosaic_0001>

<llo_original>
// kernel: tpu_custom_call.1
$region0: #{tpu_custom_call.1}
  #allocation0 [shape = 'u32[]', space=smem, size = 0x4, offset = 0x4, fixed_abs, tag = 'smem constant byte address 0x4 - core index']
  #allocation1 [shape = 'u32[72,128]{1,0:T(1,128)}', space=vmem, size = 0x9000, scoped, tag = 'internal scratch']
  %s0 = inlined_call_operand.vmem [shape: bf16[2,18,18,4], index: 0, kind: input, shape index: {}]
  %s1 = inlined_call_operand.vmem [shape: bf16[36,8], index: 1, kind: input, shape index: {}]
  %s2 = inlined_call_operand.vmem [shape: f32[2,8,3], index: 2, kind: input, shape index: {}]
  %s3 = inlined_call_operand.vmem [shape: f32[3,8,256], index: 3, kind: input, shape index: {}]
  %s4 = inlined_call_operand.vmem [shape: f32[8,1], index: 4, kind: input, shape index: {}]
  %s5 = inlined_call_operand.hbm [shape: f32[2,8,256], index: 5, kind: output, shape index: {}]
  %s6 = sld [smem:[#allocation0]]
  $region53: #{tpu_custom_call.1} parent=0
    _
  %s8 = ssub.s32 1, %s6
  %s9 = scalar_select 0, %s8, %s6
  $region1: #{tpu_custom_call.1} parent=0
    #allocation2 [shape = 'u8[16384]{0}', space=vmem, size = 0x4000, scoped, tag = 'output window, operand 0']
    #allocation3 [shape = 's32[2]{0}', space=sflag, size = 0x8, scoped, tag = 'scoped memory for tpu_custom_call.1']
    %10 = vsyncpa [#allocation3], 0
    %s11 = scalar_lea.sflag [#allocation3], 1
    %12 = vsyncpa %s11, 0
    loop: start=0, step=1, limit=4
    $region2: #{tpu_custom_call.1} parent=1 // loop_pre_header
      _
    $region3: #{tpu_custom_call.1} parent=1 // loop_header
      %s14 = sphi 0, %s18
      %p15 = scmp.ge.s32.totalorder %s14, 4
      %s24 = sphi 0, %s26
      %s27 = sphi 0, %s24
      %s28 = sphi 0, %s27
      %s44 = sphi 0, %s28
      %s48 = sphi 0, %s48
      %s50 = sphi 0, %s48
      %s51 = sphi 0, %s50
      %s65 = sphi 0, %s51
      %s71 = sphi 0, %s73
      %s74 = sphi 0, %s71
      %s75 = sphi 0, %s74
      %s91 = sphi 0, %s75
      %s95 = sphi 0, %s95
      %s97 = sphi 0, %s95
      %s98 = sphi 0, %s97
      %s112 = sphi 0, %s98
      %s116 = sphi 0, %s116
      %s118 = sphi 0, %s116
      %s119 = sphi 0, %s118
      %s133 = sphi 0, %s119
      %s139 = sphi 0, %s141
      %s142 = sphi 0, %s139
      %s143 = sphi 0, %s142
      %s159 = sphi 0, %s143
    $region4: #{tpu_custom_call.1} parent=1 // loop_header_branch
      %17 = sbr.rel (%p15) target = $region8
    $region5: #{tpu_custom_call.1} parent=1 // loop_body
      %s19 = ssub.s32 %s14, 1
      %s20 = ssub.s32 %s14, 2
      %s21 = sadd.s32 %s14, 1
      %s22 = ssub.s32 %s14, %s21
      %p23 = scmp.eq.s32.totalorder %s22, 0
      %s25 = sadd.s32 %s24, 1
      %s26 = scalar_select %p23, %s24, %s25
      %p29 = pneg %p23
      %p30 = scmp.eq.s32.totalorder %s14, 1
      %p31 = por %p29, %p30
      %p32 = scmp.ne.s32.totalorder %s24, %s27
      %p33 = scmp.eq.s32.totalorder %s14, 0
      %p34 = por %p32, %p33
      %p35 = scmp.ne.s32.totalorder %s24, %s27
      %p36 = scmp.eq.s32.totalorder %s19, 1
      %p37 = por %p35, %p36
      %p38 = scmp.ne.s32.totalorder %s27, %s28
      %p39 = scmp.eq.s32.totalorder %s19, 0
      %p40 = por %p38, %p39
      %p41 = scmp.ne.s32.totalorder %s27, %s28
      %p42 = scmp.eq.s32.totalorder %s20, 1
      %p43 = por %p41, %p42
      %p45 = scmp.ne.s32.totalorder %s28, %s44
      %p46 = scmp.eq.s32.totalorder %s20, 0
      %p47 = por %p45, %p46
      %s49 = sadd.s32 %s48, 1
      %p52 = scmp.eq.s32.totalorder %s14, 1
      %p53 = scmp.ne.s32.totalorder %s48, %s50
      %p54 = scmp.eq.s32.totalorder %s14, 0
      %p55 = por %p53, %p54
      %p56 = scmp.ne.s32.totalorder %s48, %s50
      %p57 = scmp.eq.s32.totalorder %s19, 1
      %p58 = por %p56, %p57
      %p59 = scmp.ne.s32.totalorder %s50, %s51
      %p60 = scmp.eq.s32.totalorder %s19, 0
      %p61 = por %p59, %p60
      %p62 = scmp.ne.s32.totalorder %s50, %s51
      %p63 = scmp.eq.s32.totalorder %s20, 1
      %p64 = por %p62, %p63
      %p66 = scmp.ne.s32.totalorder %s51, %s65
      %p67 = scmp.eq.s32.totalorder %s20, 0
      %p68 = por %p66, %p67
      %s69 = ssub.s32 %s14, %s21
      %p70 = scmp.eq.s32.totalorder %s69, 0
      %s72 = sadd.s32 %s71, 1
      %s73 = scalar_select %p70, %s71, %s72
      %p76 = pneg %p70
      %p77 = scmp.eq.s32.totalorder %s14, 1
      %p78 = por %p76, %p77
      %p79 = scmp.ne.s32.totalorder %s71, %s74
      %p80 = scmp.eq.s32.totalorder %s14, 0
      %p81 = por %p79, %p80
      %p82 = scmp.ne.s32.totalorder %s71, %s74
      %p83 = scmp.eq.s32.totalorder %s19, 1
      %p84 = por %p82, %p83
      %p85 = scmp.ne.s32.totalorder %s74, %s75
      %p86 = scmp.eq.s32.totalorder %s19, 0
      %p87 = por %p85, %p86
      %p88 = scmp.ne.s32.totalorder %s74, %s75
      %p89 = scmp.eq.s32.totalorder %s20, 1
      %p90 = por %p88, %p89
      %p92 = scmp.ne.s32.totalorder %s75, %s91
      %p93 = scmp.eq.s32.totalorder %s20, 0
      %p94 = por %p92, %p93
      %s96 = sadd.s32 %s95, 1
      %p99 = scmp.eq.s32.totalorder %s14, 1
      %p100 = scmp.ne.s32.totalorder %s95, %s97
      %p101 = scmp.eq.s32.totalorder %s14, 0
      %p102 = por %p100, %p101
      %p103 = scmp.ne.s32.totalorder %s95, %s97
      %p104 = scmp.eq.s32.totalorder %s19, 1
      %p105 = por %p103, %p104
      %p106 = scmp.ne.s32.totalorder %s97, %s98
      %p107 = scmp.eq.s32.totalorder %s19, 0
      %p108 = por %p106, %p107
      %p109 = scmp.ne.s32.totalorder %s97, %s98
      %p110 = scmp.eq.s32.totalorder %s20, 1
      %p111 = por %p109, %p110
      %p113 = scmp.ne.s32.totalorder %s98, %s112
      %p114 = scmp.eq.s32.totalorder %s20, 0
      %p115 = por %p113, %p114
      %s117 = sadd.s32 %s116, 1
      %p120 = scmp.eq.s32.totalorder %s14, 1
      %p121 = scmp.ne.s32.totalorder %s116, %s118
      %p122 = scmp.eq.s32.totalorder %s14, 0
      %p123 = por %p121, %p122
      %p124 = scmp.ne.s32.totalorder %s116, %s118
      %p125 = scmp.eq.s32.totalorder %s19, 1
      %p126 = por %p124, %p125
      %p127 = scmp.ne.s32.totalorder %s118, %s119
      %p128 = scmp.eq.s32.totalorder %s19, 0
      %p129 = por %p127, %p128
      %p130 = scmp.ne.s32.totalorder %s118, %s119
      %p131 = scmp.eq.s32.totalorder %s20, 1
      %p132 = por %p130, %p131
      %p134 = scmp.ne.s32.totalorder %s119, %s133
      %p135 = scmp.eq.s32.totalorder %s20, 0
      %p136 = por %p134, %p135
      %s137 = ssub.s32 %s14, %s21
      %p138 = scmp.eq.s32.totalorder %s137, 0
      %s140 = sadd.s32 %s139, 1
      %s141 = scalar_select %p138, %s139, %s140
      %p144 = pneg %p138
      %p145 = scmp.eq.s32.totalorder %s14, 1
      %p146 = por %p144, %p145
      %p147 = scmp.ne.s32.totalorder %s139, %s142
      %p148 = scmp.eq.s32.totalorder %s14, 0
      %p149 = por %p147, %p148
      %p150 = scmp.ne.s32.totalorder %s139, %s142
      %p151 = scmp.eq.s32.totalorder %s19, 1
      %p152 = por %p150, %p151
      %p153 = scmp.ne.s32.totalorder %s142, %s143
      %p154 = scmp.eq.s32.totalorder %s19, 0
      %p155 = por %p153, %p154
      %p156 = scmp.ne.s32.totalorder %s142, %s143
      %p157 = scmp.eq.s32.totalorder %s20, 1
      %p158 = por %p156, %p157
      %p160 = scmp.ne.s32.totalorder %s143, %s159
      %p161 = scmp.eq.s32.totalorder %s20, 0
      %p162 = por %p160, %p161
      %p163 = scmp.le.s32.totalorder 1, %s14
      %p164 = scmp.lt.s32.totalorder %s14, 3
      %p165 = pnand %p163, %p164
      %p166 = pneg %p165
      // Predicated region
      $region9: #{tpu_custom_call.1} parent=5 // pred_check
        _
      $region10: #{tpu_custom_call.1} parent=5 // pred_check_branch
        %168 = sbr.rel (%p165) target = $region12
      $region11: #{tpu_custom_call.1} parent=5 // pred_region
        %s169 = ssub.s32 %s14, 1
        // Predicated region
        $region13: #{tpu_custom_call.1} parent=11 // pred_check
          %p170 = pneg %p61
        $region14: #{tpu_custom_call.1} parent=11 // pred_check_branch
          %172 = sbr.rel (%p170) target = $region16
        $region15: #{tpu_custom_call.1} parent=11 // pred_region
          _
        $region16: #{tpu_custom_call.1} parent=11 // pred_fallthru
          _
        // Predicated region
        $region17: #{tpu_custom_call.1} parent=11 // pred_check
          %p173 = pneg %p108
        $region18: #{tpu_custom_call.1} parent=11 // pred_check_branch
          %175 = sbr.rel (%p173) target = $region20
        $region19: #{tpu_custom_call.1} parent=11 // pred_region
          _
        $region20: #{tpu_custom_call.1} parent=11 // pred_fallthru
          _
        // Predicated region
        $region21: #{tpu_custom_call.1} parent=11 // pred_check
          %p176 = pneg %p129
        $region22: #{tpu_custom_call.1} parent=11 // pred_check_branch
          %178 = sbr.rel (%p176) target = $region24
        $region23: #{tpu_custom_call.1} parent=11 // pred_region
          _
        $region24: #{tpu_custom_call.1} parent=11 // pred_fallthru
          _
      $region12: #{tpu_custom_call.1} parent=5 // pred_fallthru
        _
      %p179 = scmp.lt.s32.totalorder %s14, 2
      // Predicated region
      $region25: #{tpu_custom_call.1} parent=5 // pred_check
        %p180 = pneg %p179
      $region26: #{tpu_custom_call.1} parent=5 // pred_check_branch
        %182 = sbr.rel (%p180) target = $region28
      $region27: #{tpu_custom_call.1} parent=5 // pred_region
        // Predicated region
        $region29: #{tpu_custom_call.1} parent=27 // pred_check
          %p183 = pneg %p34
        $region30: #{tpu_custom_call.1} parent=27 // pred_check_branch
          %185 = sbr.rel (%p183) target = $region32
        $region31: #{tpu_custom_call.1} parent=27 // pred_region
          %p186 = scmp.lt.s32.totalorder %s14, 1
          %s187 = scalar_select %p186, %s14, 1
          %s188 = smul.addr %s187, 54
          %s189 = smul.addr %s188, 4
          %s190 = scalar_lea.vmem %s0, %s189
        $region32: #{tpu_custom_call.1} parent=27 // pred_fallthru
          _
        // Predicated region
        $region33: #{tpu_custom_call.1} parent=27 // pred_check
          %p191 = pneg %p81
        $region34: #{tpu_custom_call.1} parent=27 // pred_check_branch
          %193 = sbr.rel (%p191) target = $region36
        $region35: #{tpu_custom_call.1} parent=27 // pred_region
          %p194 = scmp.lt.s32.totalorder %s14, 1
          %s195 = scalar_select %p194, %s14, 1
          %s196 = smul.addr %s195, 8
          %s197 = scalar_lea.vmem %s2, %s196
        $region36: #{tpu_custom_call.1} parent=27 // pred_fallthru
          _
      $region28: #{tpu_custom_call.1} parent=5 // pred_fallthru
        _
      %p198 = scmp.le.s32.totalorder 1, %s14
      %p199 = scmp.lt.s32.totalorder %s14, 3
      %p200 = pnand %p198, %p199
      %p201 = pneg %p200
      // Predicated region
      $region37: #{tpu_custom_call.1} parent=5 // pred_check
        _
      $region38: #{tpu_custom_call.1} parent=5 // pred_check_branch
        %203 = sbr.rel (%p200) target = $region40
      $region39: #{tpu_custom_call.1} parent=5 // pred_region
        %s204 = ssub.s32 %s14, 1
        %p205 = scmp.lt.s32.totalorder %s19, 1
        %s206 = scalar_select %p205, %s19, 1
        %s207 = smul.addr %s206, 54
        %s208 = smul.addr %s207, 4
        %s209 = scalar_lea.vmem %s0, %s208
        %p210 = pneg %p40
        %p211 = pneg %p37
        %p212 = pneg %p61
        %p213 = pneg %p58
        %p214 = scmp.lt.s32.totalorder %s19, 1
        %s215 = scalar_select %p214, %s19, 1
        %s216 = smul.addr %s215, 8
        %s217 = scalar_lea.vmem %s2, %s216
        %p218 = pneg %p87
        %p219 = pneg %p84
        %p220 = pneg %p108
        %p221 = pneg %p105
        %p222 = pneg %p129
        %p223 = pneg %p126
        %p224 = pneg %p155
        %p225 = pneg %p152
        %s226 = sand.u32 %s142, 1
        %s227 = scalar_lea.sflag [#allocation3], %s226
        %s228 = sand.u32 %s142, 1
        %s229 = smul.addr %s228, 16
        %s230 = scalar_lea.vmem [#allocation2], %s229
        %p231 = scmp.lt.s32.totalorder %s19, 1
        %s232 = scalar_select %p231, %s19, 1
        %s233 = smul.addr %s232, 54
        %s234 = smul.addr %s233, 4
        %s235 = scalar_lea.vmem %s0, %s234
        %p236 = scmp.lt.s32.totalorder %s19, 1
        %s237 = scalar_select %p236, %s19, 1
        %s238 = smul.addr %s237, 8
        %s239 = scalar_lea.vmem %s2, %s238
        %v241 = vld [vmem:[%s235] sm:$0xf]
        %v242 = vld [vmem:[%s235 + $0x4] sm:$0xf]
        %v243 = vld [vmem:[%s235 + $0xc] sm:$0xf]
        %v244 = vld [vmem:[%s235 + $0x10] sm:$0xf]
        %v245 = vld [vmem:[%s235 + $0x18] sm:$0xf]
        %v246 = vld [vmem:[%s235 + $0x1c] sm:$0xf]
        %v247 = vld [vmem:[%s235 + $0x24] sm:$0xf]
        %v248 = vld [vmem:[%s235 + $0x28] sm:$0xf]
        %v249 = vld [vmem:[%s235 + $0x30] sm:$0xf]
        %v250 = vld [vmem:[%s235 + $0x34] sm:$0xf]
        %v251 = vld [vmem:[%s235 + $0x3c] sm:$0xf]
        %v252 = vld [vmem:[%s235 + $0x40] sm:$0xf]
        %v253 = vld [vmem:[%s235 + $0x48] sm:$0xf]
        %v254 = vld [vmem:[%s235 + $0x4c] sm:$0xf]
        %v255 = vld [vmem:[%s235 + $0x54] sm:$0xf]
        %v256 = vld [vmem:[%s235 + $0x58] sm:$0xf]
        %v257 = vld [vmem:[%s235 + $0x60] sm:$0xf]
        %v258 = vld [vmem:[%s235 + $0x64] sm:$0xf]
        %v259 = vld [vmem:[%s235 + $0x6c] sm:$0xf]
        %v260 = vld [vmem:[%s235 + $0x70] sm:$0xf]
        %v261 = vld [vmem:[%s235 + $0x78] sm:$0xf]
        %v262 = vld [vmem:[%s235 + $0x7c] sm:$0xf]
        %v263 = vld [vmem:[%s235 + $0x84] sm:$0xf]
        %v264 = vld [vmem:[%s235 + $0x88] sm:$0xf]
        %v265 = vld [vmem:[%s235 + $0x90] sm:$0xf]
        %v266 = vld [vmem:[%s235 + $0x94] sm:$0xf]
        %v267 = vld [vmem:[%s235 + $0x9c] sm:$0xf]
        %v268 = vld [vmem:[%s235 + $0xa0] sm:$0xf]
        %v269 = vld [vmem:[%s235 + $0xa8] sm:$0xf]
        %v270 = vld [vmem:[%s235 + $0xac] sm:$0xf]
        %v271 = vld [vmem:[%s235 + $0xb4] sm:$0xf]
        %v272 = vld [vmem:[%s235 + $0xb8] sm:$0xf]
        %v273 = vld [vmem:[%s1] sm:$0x3]
        %v274 = vld [vmem:[%s235 + $0x8] sm:$0x1]
        %v275 = vld [vmem:[%s235 + $0x14] sm:$0x1]
        %v276 = vld [vmem:[%s235 + $0x20] sm:$0x1]
        %v277 = vld [vmem:[%s235 + $0x2c] sm:$0x1]
        %v278 = vld [vmem:[%s235 + $0x38] sm:$0x1]
        %v279 = vld [vmem:[%s235 + $0x44] sm:$0x1]
        %v280 = vld [vmem:[%s235 + $0x50] sm:$0x1]
        %v281 = vld [vmem:[%s235 + $0x5c] sm:$0x1]
        %v282 = vld [vmem:[%s235 + $0x68] sm:$0x1]
        %v283 = vld [vmem:[%s235 + $0x74] sm:$0x1]
        %v284 = vld [vmem:[%s235 + $0x80] sm:$0x1]
        %v285 = vld [vmem:[%s235 + $0x8c] sm:$0x1]
        %v286 = vld [vmem:[%s235 + $0x98] sm:$0x1]
        %v287 = vld [vmem:[%s235 + $0xa4] sm:$0x1]
        %v288 = vld [vmem:[%s235 + $0xb0] sm:$0x1]
        %v289 = vld [vmem:[%s235 + $0xbc] sm:$0x1]
        %vm290 = vsmask.f32 3328
        %vm291 = vsmask.f32 7440
        %vm292 = vmor %vm290, %vm291
        %v294 = vshrl.u32 %v241, 16
        %v296 = vrot.slane %v294, 4
        %v297 = vshll.u32 %v241, 16
        %v299 = vrot.slane %v297, 5
        %v300 = vor.u32 %v296, %v299
        %v301 = vrot.slane %v300, 4
        %v303 = vshll.u32 %v242, 16
        %v305 = vrot.slane %v303, 5
        %v306 = vsel %vm292, %v301, %v305
        %v307 = vshrl.u32 %v242, 16
        %v309 = vrot.slane %v307, 4
        %v310 = vor.u32 %v309, %v305
        %v311 = vrot.slane %v310, 4
        %v313 = vshll.u32 %v274, 16
        %v315 = vrot.slane %v313, 5
        %v316 = vsel %vm292, %v311, %v315
        %v318 = vshrl.u32 %v243, 16
        %v320 = vrot.slane %v318, 4
        %v321 = vshll.u32 %v243, 16
        %v323 = vrot.slane %v321, 5
        %v324 = vor.u32 %v320, %v323
        %v325 = vrot.slane %v324, 4
        %v327 = vshll.u32 %v244, 16
        %v329 = vrot.slane %v327, 5
        %v330 = vsel %vm292, %v325, %v329
        %v331 = vshrl.u32 %v244, 16
        %v333 = vrot.slane %v331, 4
        %v334 = vor.u32 %v333, %v329
        %v335 = vrot.slane %v334, 4
        %v337 = vshll.u32 %v275, 16
        %v339 = vrot.slane %v337, 5
        %v340 = vsel %vm292, %v335, %v339
        %v342 = vshrl.u32 %v245, 16
        %v344 = vrot.slane %v342, 4
        %v345 = vshll.u32 %v245, 16
        %v347 = vrot.slane %v345, 5
        %v348 = vor.u32 %v344, %v347
        %v349 = vrot.slane %v348, 4
        %v351 = vshll.u32 %v246, 16
        %v353 = vrot.slane %v351, 5
        %v354 = vsel %vm292, %v349, %v353
        %v355 = vshrl.u32 %v246, 16
        %v357 = vrot.slane %v355, 4
        %v358 = vor.u32 %v357, %v353
        %v359 = vrot.slane %v358, 4
        %v361 = vshll.u32 %v276, 16
        %v363 = vrot.slane %v361, 5
        %v364 = vsel %vm292, %v359, %v363
        %v366 = vshrl.u32 %v247, 16
        %v368 = vrot.slane %v366, 4
        %v369 = vshll.u32 %v247, 16
        %v371 = vrot.slane %v369, 5
        %v372 = vor.u32 %v368, %v371
        %v373 = vrot.slane %v372, 4
        %v375 = vshll.u32 %v248, 16
        %v377 = vrot.slane %v375, 5
        %v378 = vsel %vm292, %v373, %v377
        %v379 = vshrl.u32 %v248, 16
        %v381 = vrot.slane %v379, 4
        %v382 = vor.u32 %v381, %v377
        %v383 = vrot.slane %v382, 4
        %v385 = vshll.u32 %v277, 16
        %v387 = vrot.slane %v385, 5
        %v388 = vsel %vm292, %v383, %v387
        %v390 = vshrl.u32 %v249, 16
        %v392 = vrot.slane %v390, 4
        %v393 = vshll.u32 %v249, 16
        %v395 = vrot.slane %v393, 5
        %v396 = vor.u32 %v392, %v395
        %v397 = vrot.slane %v396, 4
        %v399 = vshll.u32 %v250, 16
        %v401 = vrot.slane %v399, 5
        %v402 = vsel %vm292, %v397, %v401
        %v403 = vshrl.u32 %v250, 16
        %v405 = vrot.slane %v403, 4
        %v406 = vor.u32 %v405, %v401
        %v407 = vrot.slane %v406, 4
        %v409 = vshll.u32 %v278, 16
        %v411 = vrot.slane %v409, 5
        %v412 = vsel %vm292, %v407, %v411
        %v414 = vshrl.u32 %v251, 16
        %v416 = vrot.slane %v414, 4
        %v417 = vshll.u32 %v251, 16
        %v419 = vrot.slane %v417, 5
        %v420 = vor.u32 %v416, %v419
        %v421 = vrot.slane %v420, 4
        %v423 = vshll.u32 %v252, 16
        %v425 = vrot.slane %v423, 5
        %v426 = vsel %vm292, %v421, %v425
        %v427 = vshrl.u32 %v252, 16
        %v429 = vrot.slane %v427, 4
        %v430 = vor.u32 %v429, %v425
        %v431 = vrot.slane %v430, 4
        %v433 = vshll.u32 %v279, 16
        %v435 = vrot.slane %v433, 5
        %v436 = vsel %vm292, %v431, %v435
        %v438 = vshrl.u32 %v253, 16
        %v440 = vrot.slane %v438, 4
        %v441 = vshll.u32 %v253, 16
        %v443 = vrot.slane %v441, 5
        %v444 = vor.u32 %v440, %v443
        %v445 = vrot.slane %v444, 4
        %v447 = vshll.u32 %v254, 16
        %v449 = vrot.slane %v447, 5
        %v450 = vsel %vm292, %v445, %v449
        %v451 = vshrl.u32 %v254, 16
        %v453 = vrot.slane %v451, 4
        %v454 = vor.u32 %v453, %v449
        %v455 = vrot.slane %v454, 4
        %v457 = vshll.u32 %v280, 16
        %v459 = vrot.slane %v457, 5
        %v460 = vsel %vm292, %v455, %v459
        %v462 = vshrl.u32 %v255, 16
        %v464 = vrot.slane %v462, 4
        %v465 = vshll.u32 %v255, 16
        %v467 = vrot.slane %v465, 5
        %v468 = vor.u32 %v464, %v467
        %v469 = vrot.slane %v468, 4
        %v471 = vshll.u32 %v256, 16
        %v473 = vrot.slane %v471, 5
        %v474 = vsel %vm292, %v469, %v473
        %v475 = vshrl.u32 %v256, 16
        %v477 = vrot.slane %v475, 4
        %v478 = vor.u32 %v477, %v473
        %v479 = vrot.slane %v478, 4
        %v481 = vshll.u32 %v281, 16
        %v483 = vrot.slane %v481, 5
        %v484 = vsel %vm292, %v479, %v483
        %v486 = vshrl.u32 %v257, 16
        %v488 = vrot.slane %v486, 4
        %v489 = vshll.u32 %v257, 16
        %v491 = vrot.slane %v489, 5
        %v492 = vor.u32 %v488, %v491
        %v493 = vrot.slane %v492, 4
        %v495 = vshll.u32 %v258, 16
        %v497 = vrot.slane %v495, 5
        %v498 = vsel %vm292, %v493, %v497
        %v499 = vshrl.u32 %v258, 16
        %v501 = vrot.slane %v499, 4
        %v502 = vor.u32 %v501, %v497
        %v503 = vrot.slane %v502, 4
        %v505 = vshll.u32 %v282, 16
        %v507 = vrot.slane %v505, 5
        %v508 = vsel %vm292, %v503, %v507
        %v510 = vshrl.u32 %v259, 16
        %v512 = vrot.slane %v510, 4
        %v513 = vshll.u32 %v259, 16
        %v515 = vrot.slane %v513, 5
        %v516 = vor.u32 %v512, %v515
        %v517 = vrot.slane %v516, 4
        %v519 = vshll.u32 %v260, 16
        %v521 = vrot.slane %v519, 5
        %v522 = vsel %vm292, %v517, %v521
        %v523 = vshrl.u32 %v260, 16
        %v525 = vrot.slane %v523, 4
        %v526 = vor.u32 %v525, %v521
        %v527 = vrot.slane %v526, 4
        %v529 = vshll.u32 %v283, 16
        %v531 = vrot.slane %v529, 5
        %v532 = vsel %vm292, %v527, %v531
        %v534 = vshrl.u32 %v261, 16
        %v536 = vrot.slane %v534, 4
        %v537 = vshll.u32 %v261, 16
        %v539 = vrot.slane %v537, 5
        %v540 = vor.u32 %v536, %v539
        %v541 = vrot.slane %v540, 4
        %v543 = vshll.u32 %v262, 16
        %v545 = vrot.slane %v543, 5
        %v546 = vsel %vm292, %v541, %v545
        %v547 = vshrl.u32 %v262, 16
        %v549 = vrot.slane %v547, 4
        %v550 = vor.u32 %v549, %v545
        %v551 = vrot.slane %v550, 4
        %v553 = vshll.u32 %v284, 16
        %v555 = vrot.slane %v553, 5
        %v556 = vsel %vm292, %v551, %v555
        %v558 = vshrl.u32 %v263, 16
        %v560 = vrot.slane %v558, 4
        %v561 = vshll.u32 %v263, 16
        %v563 = vrot.slane %v561, 5
        %v564 = vor.u32 %v560, %v563
        %v565 = vrot.slane %v564, 4
        %v567 = vshll.u32 %v264, 16
        %v569 = vrot.slane %v567, 5
        %v570 = vsel %vm292, %v565, %v569
        %v571 = vshrl.u32 %v264, 16
        %v573 = vrot.slane %v571, 4
        %v574 = vor.u32 %v573, %v569
        %v575 = vrot.slane %v574, 4
        %v577 = vshll.u32 %v285, 16
        %v579 = vrot.slane %v577, 5
        %v580 = vsel %vm292, %v575, %v579
        %v582 = vshrl.u32 %v265, 16
        %v584 = vrot.slane %v582, 4
        %v585 = vshll.u32 %v265, 16
        %v587 = vrot.slane %v585, 5
        %v588 = vor.u32 %v584, %v587
        %v589 = vrot.slane %v588, 4
        %v591 = vshll.u32 %v266, 16
        %v593 = vrot.slane %v591, 5
        %v594 = vsel %vm292, %v589, %v593
        %v595 = vshrl.u32 %v266, 16
        %v597 = vrot.slane %v595, 4
        %v598 = vor.u32 %v597, %v593
        %v599 = vrot.slane %v598, 4
        %v601 = vshll.u32 %v286, 16
        %v603 = vrot.slane %v601, 5
        %v604 = vsel %vm292, %v599, %v603
        %v606 = vshrl.u32 %v267, 16
        %v608 = vrot.slane %v606, 4
        %v609 = vshll.u32 %v267, 16
        %v611 = vrot.slane %v609, 5
        %v612 = vor.u32 %v608, %v611
        %v613 = vrot.slane %v612, 4
        %v615 = vshll.u32 %v268, 16
        %v617 = vrot.slane %v615, 5
        %v618 = vsel %vm292, %v613, %v617
        %v619 = vshrl.u32 %v268, 16
        %v621 = vrot.slane %v619, 4
        %v622 = vor.u32 %v621, %v617
        %v623 = vrot.slane %v622, 4
        %v625 = vshll.u32 %v287, 16
        %v627 = vrot.slane %v625, 5
        %v628 = vsel %vm292, %v623, %v627
        %v630 = vshrl.u32 %v269, 16
        %v632 = vrot.slane %v630, 4
        %v633 = vshll.u32 %v269, 16
        %v635 = vrot.slane %v633, 5
        %v636 = vor.u32 %v632, %v635
        %v637 = vrot.slane %v636, 4
        %v639 = vshll.u32 %v270, 16
        %v641 = vrot.slane %v639, 5
        %v642 = vsel %vm292, %v637, %v641
        %v643 = vshrl.u32 %v270, 16
        %v645 = vrot.slane %v643, 4
        %v646 = vor.u32 %v645, %v641
        %v647 = vrot.slane %v646, 4
        %v649 = vshll.u32 %v288, 16
        %v651 = vrot.slane %v649, 5
        %v652 = vsel %vm292, %v647, %v651
        %v654 = vshrl.u32 %v271, 16
        %v656 = vrot.slane %v654, 4
        %v657 = vshll.u32 %v271, 16
        %v659 = vrot.slane %v657, 5
        %v660 = vor.u32 %v656, %v659
        %v661 = vrot.slane %v660, 4
        %v663 = vshll.u32 %v272, 16
        %v665 = vrot.slane %v663, 5
        %v666 = vsel %vm292, %v661, %v665
        %v667 = vshrl.u32 %v272, 16
        %v669 = vrot.slane %v667, 4
        %v670 = vor.u32 %v669, %v665
        %v671 = vrot.slane %v670, 4
        %v673 = vshll.u32 %v289, 16
        %v675 = vrot.slane %v673, 5
        %v676 = vsel %vm292, %v671, %v675
        %v677 = vld [vmem:[%s1] sm:$0xc]
        %v678 = vunpack.c.l.b16 %v306
        %v679 = vunpack.c.l.b16 %v316
        %v680 = vunpack.c.l.b16 %v330
        %v681 = vunpack.c.l.b16 %v340
        %v682 = vunpack.c.l.b16 %v354
        %v683 = vunpack.c.l.b16 %v364
        %v684 = vunpack.c.l.b16 %v378
        %v685 = vunpack.c.l.b16 %v388
        %v686 = vunpack.c.l.b16 %v402
        %v687 = vunpack.c.l.b16 %v412
        %v688 = vunpack.c.l.b16 %v426
        %v689 = vunpack.c.l.b16 %v436
        %v690 = vunpack.c.l.b16 %v450
        %v691 = vunpack.c.l.b16 %v460
        %v692 = vunpack.c.l.b16 %v474
        %v693 = vunpack.c.l.b16 %v484
        %v694 = vunpack.c.l.b16 %v498
        %v695 = vunpack.c.l.b16 %v508
        %v696 = vunpack.c.l.b16 %v522
        %v697 = vunpack.c.l.b16 %v532
        %v698 = vunpack.c.l.b16 %v546
        %v699 = vunpack.c.l.b16 %v556
        %v700 = vunpack.c.l.b16 %v570
        %v701 = vunpack.c.l.b16 %v580
        %v702 = vunpack.c.l.b16 %v594
        %v703 = vunpack.c.l.b16 %v604
        %v704 = vunpack.c.l.b16 %v618
        %v705 = vunpack.c.l.b16 %v628
        %v706 = vunpack.c.l.b16 %v642
        %v707 = vunpack.c.l.b16 %v652
        %v708 = vunpack.c.l.b16 %v666
        %v709 = vunpack.c.l.b16 %v676
        %v710 = vpack.c.b16 %v679, %v678
        %v711 = vpack.c.b16 %v681, %v680
        %v712 = vpack.c.b16 %v683, %v682
        %v713 = vpack.c.b16 %v685, %v684
        %v714 = vpack.c.b16 %v687, %v686
        %v715 = vpack.c.b16 %v689, %v688
        %v716 = vpack.c.b16 %v691, %v690
        %v717 = vpack.c.b16 %v693, %v692
        %v718 = vpack.c.b16 %v695, %v694
        %v719 = vpack.c.b16 %v697, %v696
        %v720 = vpack.c.b16 %v699, %v698
        %v721 = vpack.c.b16 %v701, %v700
        %v722 = vpack.c.b16 %v703, %v702
        %v723 = vpack.c.b16 %v705, %v704
        %v724 = vpack.c.b16 %v707, %v706
        %v725 = vpack.c.b16 %v709, %v708
        %v727 = vunpack.c.l.b16 %v677
        %v728 = vpack.c.b16 %v727, %v727
        %v729 = vrot.slane %v728, 2
        %vm730 = vcmask 31744
        %v732 = vsel %vm730, %v710, 0
        %v735 = vsel %vm730, %v711, 0
        %v738 = vsel %vm730, %v712, 0
        %v741 = vsel %vm730, %v713, 0
        %v744 = vsel %vm730, %v714, 0
        %v747 = vsel %vm730, %v715, 0
        %v750 = vsel %vm730, %v716, 0
        %v753 = vsel %vm730, %v717, 0
        %v756 = vsel %vm730, %v718, 0
        %v759 = vsel %vm730, %v719, 0
        %v762 = vsel %vm730, %v720, 0
        %v765 = vsel %vm730, %v721, 0
        %v768 = vsel %vm730, %v722, 0
        %v771 = vsel %vm730, %v723, 0
        %v774 = vsel %vm730, %v724, 0
        %v777 = vsel %vm730, %v725, 0
        %vm779 = vcmask 1041408
        %v781 = vsel %vm779, %v729, 0
        %783 = vmatpush.bf16.msra.mxu0 0
        %784 = vmatpush.bf16.msra.mxu0 0
        %785 = vmatpush.bf16.msra.mxu0 0
        %786 = vmatpush.bf16.msra.mxu0 0
        %787 = vmatpush.bf16.msra.mxu0 0
        %788 = vmatpush.bf16.msra.mxu0 0
        %789 = vmatpush.bf16.msra.mxu0 0
        %790 = vmatpush.bf16.msra.mxu0 %v781
        %791 = vmatmul.bf16.gmra.mxu0 %v732
        %v792 = vpop.f32.mrf.mxu0
        %v793 = vadd.f32 0.0, %v792
        %v794 = vpop.f32.mrf.mxu0
        %v795 = vadd.f32 0.0, %v794
        %796 = vmatmul.bf16.gmra.mxu0 %v735
        %v797 = vpop.f32.mrf.mxu0
        %v798 = vadd.f32 0.0, %v797
        %v799 = vpop.f32.mrf.mxu0
        %v800 = vadd.f32 0.0, %v799
        %801 = vmatmul.bf16.gmra.mxu0 %v738
        %v802 = vpop.f32.mrf.mxu0
        %v803 = vadd.f32 0.0, %v802
        %v804 = vpop.f32.mrf.mxu0
        %v805 = vadd.f32 0.0, %v804
        %806 = vmatmul.bf16.gmra.mxu0 %v741
        %v807 = vpop.f32.mrf.mxu0
        %v808 = vadd.f32 0.0, %v807
        %v809 = vpop.f32.mrf.mxu0
        %v810 = vadd.f32 0.0, %v809
        %811 = vmatmul.bf16.gmra.mxu0 %v744
        %v812 = vpop.f32.mrf.mxu0
        %v813 = vadd.f32 0.0, %v812
        %v814 = vpop.f32.mrf.mxu0
        %v815 = vadd.f32 0.0, %v814
        %816 = vmatmul.bf16.gmra.mxu0 %v747
        %v817 = vpop.f32.mrf.mxu0
        %v818 = vadd.f32 0.0, %v817
        %v819 = vpop.f32.mrf.mxu0
        %v820 = vadd.f32 0.0, %v819
        %821 = vmatmul.bf16.gmra.mxu0 %v750
        %v822 = vpop.f32.mrf.mxu0
        %v823 = vadd.f32 0.0, %v822
        %v824 = vpop.f32.mrf.mxu0
        %v825 = vadd.f32 0.0, %v824
        %826 = vmatmul.bf16.gmra.mxu0 %v753
        %v827 = vpop.f32.mrf.mxu0
        %v828 = vadd.f32 0.0, %v827
        %v829 = vpop.f32.mrf.mxu0
        %v830 = vadd.f32 0.0, %v829
        %831 = vmatmul.bf16.gmra.mxu0 %v756
        %v832 = vpop.f32.mrf.mxu0
        %v833 = vadd.f32 0.0, %v832
        %v834 = vpop.f32.mrf.mxu0
        %v835 = vadd.f32 0.0, %v834
        %836 = vmatmul.bf16.gmra.mxu0 %v759
        %v837 = vpop.f32.mrf.mxu0
        %v838 = vadd.f32 0.0, %v837
        %v839 = vpop.f32.mrf.mxu0
        %v840 = vadd.f32 0.0, %v839
        %841 = vmatmul.bf16.gmra.mxu0 %v762
        %v842 = vpop.f32.mrf.mxu0
        %v843 = vadd.f32 0.0, %v842
        %v844 = vpop.f32.mrf.mxu0
        %v845 = vadd.f32 0.0, %v844
        %846 = vmatmul.bf16.gmra.mxu0 %v765
        %v847 = vpop.f32.mrf.mxu0
        %v848 = vadd.f32 0.0, %v847
        %v849 = vpop.f32.mrf.mxu0
        %v850 = vadd.f32 0.0, %v849
        %851 = vmatmul.bf16.gmra.mxu0 %v768
        %v852 = vpop.f32.mrf.mxu0
        %v853 = vadd.f32 0.0, %v852
        %v854 = vpop.f32.mrf.mxu0
        %v855 = vadd.f32 0.0, %v854
        %856 = vmatmul.bf16.gmra.mxu0 %v771
        %v857 = vpop.f32.mrf.mxu0
        %v858 = vadd.f32 0.0, %v857
        %v859 = vpop.f32.mrf.mxu0
        %v860 = vadd.f32 0.0, %v859
        %861 = vmatmul.bf16.gmra.mxu0 %v774
        %v862 = vpop.f32.mrf.mxu0
        %v863 = vadd.f32 0.0, %v862
        %v864 = vpop.f32.mrf.mxu0
        %v865 = vadd.f32 0.0, %v864
        %866 = vmatmul.bf16.gmra.mxu0 %v777
        %v867 = vpop.f32.mrf.mxu0
        %v868 = vadd.f32 0.0, %v867
        %v869 = vpop.f32.mrf.mxu0
        %v870 = vadd.f32 0.0, %v869
        %871 = vdwg.mxu0
        %v904 = vunpack.c.l.b16 %v241
        %v905 = vunpack.c.l.b16 %v242
        %v906 = vunpack.c.l.b16 %v243
        %v907 = vunpack.c.l.b16 %v244
        %v908 = vunpack.c.l.b16 %v245
        %v909 = vunpack.c.l.b16 %v246
        %v910 = vunpack.c.l.b16 %v247
        %v911 = vunpack.c.l.b16 %v248
        %v912 = vunpack.c.l.b16 %v249
        %v913 = vunpack.c.l.b16 %v250
        %v914 = vunpack.c.l.b16 %v251
        %v915 = vunpack.c.l.b16 %v252
        %v916 = vunpack.c.l.b16 %v253
        %v917 = vunpack.c.l.b16 %v254
        %v918 = vunpack.c.l.b16 %v255
        %v919 = vunpack.c.l.b16 %v256
        %v920 = vunpack.c.l.b16 %v257
        %v921 = vunpack.c.l.b16 %v258
        %v922 = vunpack.c.l.b16 %v259
        %v923 = vunpack.c.l.b16 %v260
        %v924 = vunpack.c.l.b16 %v261
        %v925 = vunpack.c.l.b16 %v262
        %v926 = vunpack.c.l.b16 %v263
        %v927 = vunpack.c.l.b16 %v264
        %v928 = vunpack.c.l.b16 %v265
        %v929 = vunpack.c.l.b16 %v266
        %v930 = vunpack.c.l.b16 %v267
        %v931 = vunpack.c.l.b16 %v268
        %v932 = vunpack.c.l.b16 %v269
        %v933 = vunpack.c.l.b16 %v270
        %v934 = vunpack.c.l.b16 %v271
        %v935 = vunpack.c.l.b16 %v272
        %v936 = vpack.c.b16 %v905, %v904
        %v937 = vpack.c.b16 %v907, %v906
        %v938 = vpack.c.b16 %v909, %v908
        %v939 = vpack.c.b16 %v911, %v910
        %v940 = vpack.c.b16 %v913, %v912
        %v941 = vpack.c.b16 %v915, %v914
        %v942 = vpack.c.b16 %v917, %v916
        %v943 = vpack.c.b16 %v919, %v918
        %v944 = vpack.c.b16 %v921, %v920
        %v945 = vpack.c.b16 %v923, %v922
        %v946 = vpack.c.b16 %v925, %v924
        %v947 = vpack.c.b16 %v927, %v926
        %v948 = vpack.c.b16 %v929, %v928
        %v949 = vpack.c.b16 %v931, %v930
        %v950 = vpack.c.b16 %v933, %v932
        %v951 = vpack.c.b16 %v935, %v934
        %v953 = vsel %vm730, %v936, 0
        %v956 = vsel %vm730, %v937, 0
        %v959 = vsel %vm730, %v938, 0
        %v962 = vsel %vm730, %v939, 0
        %v965 = vsel %vm730, %v940, 0
        %v968 = vsel %vm730, %v941, 0
        %v971 = vsel %vm730, %v942, 0
        %v974 = vsel %vm730, %v943, 0
        %v977 = vsel %vm730, %v944, 0
        %v980 = vsel %vm730, %v945, 0
        %v983 = vsel %vm730, %v946, 0
        %v986 = vsel %vm730, %v947, 0
        %v989 = vsel %vm730, %v948, 0
        %v992 = vsel %vm730, %v949, 0
        %v995 = vsel %vm730, %v950, 0
        %v998 = vsel %vm730, %v951, 0
        %v1001 = vsel %vm779, %v273, 0
        %1003 = vmatpush.bf16.msra.mxu0 0
        %1004 = vmatpush.bf16.msra.mxu0 0
        %1005 = vmatpush.bf16.msra.mxu0 0
        %1006 = vmatpush.bf16.msra.mxu0 0
        %1007 = vmatpush.bf16.msra.mxu0 0
        %1008 = vmatpush.bf16.msra.mxu0 0
        %1009 = vmatpush.bf16.msra.mxu0 0
        %1010 = vmatpush.bf16.msra.mxu0 %v1001
        %1011 = vmatmul.bf16.gmra.mxu0 %v953
        %v1012 = vpop.f32.mrf.mxu0
        %v1013 = vadd.f32 %v793, %v1012
        %v1014 = vpop.f32.mrf.mxu0
        %v1015 = vadd.f32 %v795, %v1014
        %1016 = vmatmul.bf16.gmra.mxu0 %v956
        %v1017 = vpop.f32.mrf.mxu0
        %v1018 = vadd.f32 %v798, %v1017
        %v1019 = vpop.f32.mrf.mxu0
        %v1020 = vadd.f32 %v800, %v1019
        %1021 = vmatmul.bf16.gmra.mxu0 %v959
        %v1022 = vpop.f32.mrf.mxu0
        %v1023 = vadd.f32 %v803, %v1022
        %v1024 = vpop.f32.mrf.mxu0
        %v1025 = vadd.f32 %v805, %v1024
        %1026 = vmatmul.bf16.gmra.mxu0 %v962
        %v1027 = vpop.f32.mrf.mxu0
        %v1028 = vadd.f32 %v808, %v1027
        %v1029 = vpop.f32.mrf.mxu0
        %v1030 = vadd.f32 %v810, %v1029
        %1031 = vmatmul.bf16.gmra.mxu0 %v965
        %v1032 = vpop.f32.mrf.mxu0
        %v1033 = vadd.f32 %v813, %v1032
        %v1034 = vpop.f32.mrf.mxu0
        %v1035 = vadd.f32 %v815, %v1034
        %1036 = vmatmul.bf16.gmra.mxu0 %v968
        %v1037 = vpop.f32.mrf.mxu0
        %v1038 = vadd.f32 %v818, %v1037
        %v1039 = vpop.f32.mrf.mxu0
        %v1040 = vadd.f32 %v820, %v1039
        %1041 = vmatmul.bf16.gmra.mxu0 %v971
        %v1042 = vpop.f32.mrf.mxu0
        %v1043 = vadd.f32 %v823, %v1042
        %v1044 = vpop.f32.mrf.mxu0
        %v1045 = vadd.f32 %v825, %v1044
        %1046 = vmatmul.bf16.gmra.mxu0 %v974
        %v1047 = vpop.f32.mrf.mxu0
        %v1048 = vadd.f32 %v828, %v1047
        %v1049 = vpop.f32.mrf.mxu0
        %v1050 = vadd.f32 %v830, %v1049
        %1051 = vmatmul.bf16.gmra.mxu0 %v977
        %v1052 = vpop.f32.mrf.mxu0
        %v1053 = vadd.f32 %v833, %v1052
        %v1054 = vpop.f32.mrf.mxu0
        %v1055 = vadd.f32 %v835, %v1054
        %1056 = vmatmul.bf16.gmra.mxu0 %v980
        %v1057 = vpop.f32.mrf.mxu0
        %v1058 = vadd.f32 %v838, %v1057
        %v1059 = vpop.f32.mrf.mxu0
        %v1060 = vadd.f32 %v840, %v1059
        %1061 = vmatmul.bf16.gmra.mxu0 %v983
        %v1062 = vpop.f32.mrf.mxu0
        %v1063 = vadd.f32 %v843, %v1062
        %v1064 = vpop.f32.mrf.mxu0
        %v1065 = vadd.f32 %v845, %v1064
        %1066 = vmatmul.bf16.gmra.mxu0 %v986
        %v1067 = vpop.f32.mrf.mxu0
        %v1068 = vadd.f32 %v848, %v1067
        %v1069 = vpop.f32.mrf.mxu0
        %v1070 = vadd.f32 %v850, %v1069
        %1071 = vmatmul.bf16.gmra.mxu0 %v989
        %v1072 = vpop.f32.mrf.mxu0
        %v1073 = vadd.f32 %v853, %v1072
        %v1074 = vpop.f32.mrf.mxu0
        %v1075 = vadd.f32 %v855, %v1074
        %1076 = vmatmul.bf16.gmra.mxu0 %v992
        %v1077 = vpop.f32.mrf.mxu0
        %v1078 = vadd.f32 %v858, %v1077
        %v1079 = vpop.f32.mrf.mxu0
        %v1080 = vadd.f32 %v860, %v1079
        %1081 = vmatmul.bf16.gmra.mxu0 %v995
        %v1082 = vpop.f32.mrf.mxu0
        %v1083 = vadd.f32 %v863, %v1082
        %v1084 = vpop.f32.mrf.mxu0
        %v1085 = vadd.f32 %v865, %v1084
        %1086 = vmatmul.bf16.gmra.mxu0 %v998
        %v1087 = vpop.f32.mrf.mxu0
        %v1088 = vadd.f32 %v868, %v1087
        %v1089 = vpop.f32.mrf.mxu0
        %v1090 = vadd.f32 %v870, %v1089
        %1091 = vdwg.mxu0
        %v1092 = vld [vmem:[%s235] sm:$0xe]
        %v1093 = vld [vmem:[%s235 + $0xc] sm:$0xe]
        %v1094 = vld [vmem:[%s235 + $0x18] sm:$0xe]
        %v1095 = vld [vmem:[%s235 + $0x24] sm:$0xe]
        %v1096 = vld [vmem:[%s235 + $0x30] sm:$0xe]
        %v1097 = vld [vmem:[%s235 + $0x3c] sm:$0xe]
        %v1098 = vld [vmem:[%s235 + $0x48] sm:$0xe]
        %v1099 = vld [vmem:[%s235 + $0x54] sm:$0xe]
        %v1100 = vld [vmem:[%s235 + $0x60] sm:$0xe]
        %v1101 = vld [vmem:[%s235 + $0x6c] sm:$0xe]
        %v1102 = vld [vmem:[%s235 + $0x78] sm:$0xe]
        %v1103 = vld [vmem:[%s235 + $0x84] sm:$0xe]
        %v1104 = vld [vmem:[%s235 + $0x90] sm:$0xe]
        %v1105 = vld [vmem:[%s235 + $0x9c] sm:$0xe]
        %v1106 = vld [vmem:[%s235 + $0xa8] sm:$0xe]
        %v1107 = vld [vmem:[%s235 + $0xb4] sm:$0xe]
        %vm1140 = vcmask 1042432
        %vm1141 = vcmask 1046532
        %vm1142 = vmor %vm1140, %vm1141
        %v1143 = vrot.slane %v1092, 5
        %v1144 = vrot.slane %v1143, 4
        %v1145 = vrot.slane %v242, 5
        %v1146 = vsel %vm1142, %v1144, %v1145
        %v1147 = vrot.slane %v1145, 4
        %v1148 = vrot.slane %v274, 5
        %v1149 = vsel %vm1142, %v1147, %v1148
        %v1150 = vrot.slane %v1093, 5
        %v1151 = vrot.slane %v1150, 4
        %v1152 = vrot.slane %v244, 5
        %v1153 = vsel %vm1142, %v1151, %v1152
        %v1154 = vrot.slane %v1152, 4
        %v1155 = vrot.slane %v275, 5
        %v1156 = vsel %vm1142, %v1154, %v1155
        %v1157 = vrot.slane %v1094, 5
        %v1158 = vrot.slane %v1157, 4
        %v1159 = vrot.slane %v246, 5
        %v1160 = vsel %vm1142, %v1158, %v1159
        %v1161 = vrot.slane %v1159, 4
        %v1162 = vrot.slane %v276, 5
        %v1163 = vsel %vm1142, %v1161, %v1162
        %v1164 = vrot.slane %v1095, 5
        %v1165 = vrot.slane %v1164, 4
        %v1166 = vrot.slane %v248, 5
        %v1167 = vsel %vm1142, %v1165, %v1166
        %v1168 = vrot.slane %v1166, 4
        %v1169 = vrot.slane %v277, 5
        %v1170 = vsel %vm1142, %v1168, %v1169
        %v1171 = vrot.slane %v1096, 5
        %v1172 = vrot.slane %v1171, 4
        %v1173 = vrot.slane %v250, 5
        %v1174 = vsel %vm1142, %v1172, %v1173
        %v1175 = vrot.slane %v1173, 4
        %v1176 = vrot.slane %v278, 5
        %v1177 = vsel %vm1142, %v1175, %v1176
        %v1178 = vrot.slane %v1097, 5
        %v1179 = vrot.slane %v1178, 4
        %v1180 = vrot.slane %v252, 5
        %v1181 = vsel %vm1142, %v1179, %v1180
        %v1182 = vrot.slane %v1180, 4
        %v1183 = vrot.slane %v279, 5
        %v1184 = vsel %vm1142, %v1182, %v1183
        %v1185 = vrot.slane %v1098, 5
        %v1186 = vrot.slane %v1185, 4
        %v1187 = vrot.slane %v254, 5
        %v1188 = vsel %vm1142, %v1186, %v1187
        %v1189 = vrot.slane %v1187, 4
        %v1190 = vrot.slane %v280, 5
        %v1191 = vsel %vm1142, %v1189, %v1190
        %v1192 = vrot.slane %v1099, 5
        %v1193 = vrot.slane %v1192, 4
        %v1194 = vrot.slane %v256, 5
        %v1195 = vsel %vm1142, %v1193, %v1194
        %v1196 = vrot.slane %v1194, 4
        %v1197 = vrot.slane %v281, 5
        %v1198 = vsel %vm1142, %v1196, %v1197
        %v1199 = vrot.slane %v1100, 5
        %v1200 = vrot.slane %v1199, 4
        %v1201 = vrot.slane %v258, 5
        %v1202 = vsel %vm1142, %v1200, %v1201
        %v1203 = vrot.slane %v1201, 4
        %v1204 = vrot.slane %v282, 5
        %v1205 = vsel %vm1142, %v1203, %v1204
        %v1206 = vrot.slane %v1101, 5
        %v1207 = vrot.slane %v1206, 4
        %v1208 = vrot.slane %v260, 5
        %v1209 = vsel %vm1142, %v1207, %v1208
        %v1210 = vrot.slane %v1208, 4
        %v1211 = vrot.slane %v283, 5
        %v1212 = vsel %vm1142, %v1210, %v1211
        %v1213 = vrot.slane %v1102, 5
        %v1214 = vrot.slane %v1213, 4
        %v1215 = vrot.slane %v262, 5
        %v1216 = vsel %vm1142, %v1214, %v1215
        %v1217 = vrot.slane %v1215, 4
        %v1218 = vrot.slane %v284, 5
        %v1219 = vsel %vm1142, %v1217, %v1218
        %v1220 = vrot.slane %v1103, 5
        %v1221 = vrot.slane %v1220, 4
        %v1222 = vrot.slane %v264, 5
        %v1223 = vsel %vm1142, %v1221, %v1222
        %v1224 = vrot.slane %v1222, 4
        %v1225 = vrot.slane %v285, 5
        %v1226 = vsel %vm1142, %v1224, %v1225
        %v1227 = vrot.slane %v1104, 5
        %v1228 = vrot.slane %v1227, 4
        %v1229 = vrot.slane %v266, 5
        %v1230 = vsel %vm1142, %v1228, %v1229
        %v1231 = vrot.slane %v1229, 4
        %v1232 = vrot.slane %v286, 5
        %v1233 = vsel %vm1142, %v1231, %v1232
        %v1234 = vrot.slane %v1105, 5
        %v1235 = vrot.slane %v1234, 4
        %v1236 = vrot.slane %v268, 5
        %v1237 = vsel %vm1142, %v1235, %v1236
        %v1238 = vrot.slane %v1236, 4
        %v1239 = vrot.slane %v287, 5
        %v1240 = vsel %vm1142, %v1238, %v1239
        %v1241 = vrot.slane %v1106, 5
        %v1242 = vrot.slane %v1241, 4
        %v1243 = vrot.slane %v270, 5
        %v1244 = vsel %vm1142, %v1242, %v1243
        %v1245 = vrot.slane %v1243, 4
        %v1246 = vrot.slane %v288, 5
        %v1247 = vsel %vm1142, %v1245, %v1246
        %v1248 = vrot.slane %v1107, 5
        %v1249 = vrot.slane %v1248, 4
        %v1250 = vrot.slane %v272, 5
        %v1251 = vsel %vm1142, %v1249, %v1250
        %v1252 = vrot.slane %v1250, 4
        %v1253 = vrot.slane %v289, 5
        %v1254 = vsel %vm1142, %v1252, %v1253
        %v1255 = vld [vmem:[%s1 + $0x4] sm:$0x3]
        %v1256 = vunpack.c.l.b16 %v1146
        %v1257 = vunpack.c.l.b16 %v1149
        %v1258 = vunpack.c.l.b16 %v1153
        %v1259 = vunpack.c.l.b16 %v1156
        %v1260 = vunpack.c.l.b16 %v1160
        %v1261 = vunpack.c.l.b16 %v1163
        %v1262 = vunpack.c.l.b16 %v1167
        %v1263 = vunpack.c.l.b16 %v1170
        %v1264 = vunpack.c.l.b16 %v1174
        %v1265 = vunpack.c.l.b16 %v1177
        %v1266 = vunpack.c.l.b16 %v1181
        %v1267 = vunpack.c.l.b16 %v1184
        %v1268 = vunpack.c.l.b16 %v1188
        %v1269 = vunpack.c.l.b16 %v1191
        %v1270 = vunpack.c.l.b16 %v1195
        %v1271 = vunpack.c.l.b16 %v1198
        %v1272 = vunpack.c.l.b16 %v1202
        %v1273 = vunpack.c.l.b16 %v1205
        %v1274 = vunpack.c.l.b16 %v1209
        %v1275 = vunpack.c.l.b16 %v1212
        %v1276 = vunpack.c.l.b16 %v1216
        %v1277 = vunpack.c.l.b16 %v1219
        %v1278 = vunpack.c.l.b16 %v1223
        %v1279 = vunpack.c.l.b16 %v1226
        %v1280 = vunpack.c.l.b16 %v1230
        %v1281 = vunpack.c.l.b16 %v1233
        %v1282 = vunpack.c.l.b16 %v1237
        %v1283 = vunpack.c.l.b16 %v1240
        %v1284 = vunpack.c.l.b16 %v1244
        %v1285 = vunpack.c.l.b16 %v1247
        %v1286 = vunpack.c.l.b16 %v1251
        %v1287 = vunpack.c.l.b16 %v1254
        %v1288 = vpack.c.b16 %v1257, %v1256
        %v1289 = vpack.c.b16 %v1259, %v1258
        %v1290 = vpack.c.b16 %v1261, %v1260
        %v1291 = vpack.c.b16 %v1263, %v1262
        %v1292 = vpack.c.b16 %v1265, %v1264
        %v1293 = vpack.c.b16 %v1267, %v1266
        %v1294 = vpack.c.b16 %v1269, %v1268
        %v1295 = vpack.c.b16 %v1271, %v1270
        %v1296 = vpack.c.b16 %v1273, %v1272
        %v1297 = vpack.c.b16 %v1275, %v1274
        %v1298 = vpack.c.b16 %v1277, %v1276
        %v1299 = vpack.c.b16 %v1279, %v1278
        %v1300 = vpack.c.b16 %v1281, %v1280
        %v1301 = vpack.c.b16 %v1283, %v1282
        %v1302 = vpack.c.b16 %v1285, %v1284
        %v1303 = vpack.c.b16 %v1287, %v1286
        %v1305 = vsel %vm730, %v1288, 0
        %v1308 = vsel %vm730, %v1289, 0
        %v1311 = vsel %vm730, %v1290, 0
        %v1314 = vsel %vm730, %v1291, 0
        %v1317 = vsel %vm730, %v1292, 0
        %v1320 = vsel %vm730, %v1293, 0
        %v1323 = vsel %vm730, %v1294, 0
        %v1326 = vsel %vm730, %v1295, 0
        %v1329 = vsel %vm730, %v1296, 0
        %v1332 = vsel %vm730, %v1297, 0
        %v1335 = vsel %vm730, %v1298, 0
        %v1338 = vsel %vm730, %v1299, 0
        %v1341 = vsel %vm730, %v1300, 0
        %v1344 = vsel %vm730, %v1301, 0
        %v1347 = vsel %vm730, %v1302, 0
        %v1350 = vsel %vm730, %v1303, 0
        %v1353 = vsel %vm779, %v1255, 0
        %1355 = vmatpush.bf16.msra.mxu0 0
        %1356 = vmatpush.bf16.msra.mxu0 0
        %1357 = vmatpush.bf16.msra.mxu0 0
        %1358 = vmatpush.bf16.msra.mxu0 0
        %1359 = vmatpush.bf16.msra.mxu0 0
        %1360 = vmatpush.bf16.msra.mxu0 0
        %1361 = vmatpush.bf16.msra.mxu0 0
        %1362 = vmatpush.bf16.msra.mxu0 %v1353
        %1363 = vmatmul.bf16.gmra.mxu0 %v1305
        %v1364 = vpop.f32.mrf.mxu0
        %v1365 = vadd.f32 0.0, %v1364
        %v1366 = vpop.f32.mrf.mxu0
        %v1367 = vadd.f32 0.0, %v1366
        %1368 = vmatmul.bf16.gmra.mxu0 %v1308
        %v1369 = vpop.f32.mrf.mxu0
        %v1370 = vadd.f32 0.0, %v1369
        %v1371 = vpop.f32.mrf.mxu0
        %v1372 = vadd.f32 0.0, %v1371
        %1373 = vmatmul.bf16.gmra.mxu0 %v1311
        %v1374 = vpop.f32.mrf.mxu0
        %v1375 = vadd.f32 0.0, %v1374
        %v1376 = vpop.f32.mrf.mxu0
        %v1377 = vadd.f32 0.0, %v1376
        %1378 = vmatmul.bf16.gmra.mxu0 %v1314
        %v1379 = vpop.f32.mrf.mxu0
        %v1380 = vadd.f32 0.0, %v1379
        %v1381 = vpop.f32.mrf.mxu0
        %v1382 = vadd.f32 0.0, %v1381
        %1383 = vmatmul.bf16.gmra.mxu0 %v1317
        %v1384 = vpop.f32.mrf.mxu0
        %v1385 = vadd.f32 0.0, %v1384
        %v1386 = vpop.f32.mrf.mxu0
        %v1387 = vadd.f32 0.0, %v1386
        %1388 = vmatmul.bf16.gmra.mxu0 %v1320
        %v1389 = vpop.f32.mrf.mxu0
        %v1390 = vadd.f32 0.0, %v1389
        %v1391 = vpop.f32.mrf.mxu0
        %v1392 = vadd.f32 0.0, %v1391
        %1393 = vmatmul.bf16.gmra.mxu0 %v1323
        %v1394 = vpop.f32.mrf.mxu0
        %v1395 = vadd.f32 0.0, %v1394
        %v1396 = vpop.f32.mrf.mxu0
        %v1397 = vadd.f32 0.0, %v1396
        %1398 = vmatmul.bf16.gmra.mxu0 %v1326
        %v1399 = vpop.f32.mrf.mxu0
        %v1400 = vadd.f32 0.0, %v1399
        %v1401 = vpop.f32.mrf.mxu0
        %v1402 = vadd.f32 0.0, %v1401
        %1403 = vmatmul.bf16.gmra.mxu0 %v1329
        %v1404 = vpop.f32.mrf.mxu0
        %v1405 = vadd.f32 0.0, %v1404
        %v1406 = vpop.f32.mrf.mxu0
        %v1407 = vadd.f32 0.0, %v1406
        %1408 = vmatmul.bf16.gmra.mxu0 %v1332
        %v1409 = vpop.f32.mrf.mxu0
        %v1410 = vadd.f32 0.0, %v1409
        %v1411 = vpop.f32.mrf.mxu0
        %v1412 = vadd.f32 0.0, %v1411
        %1413 = vmatmul.bf16.gmra.mxu0 %v1335
        %v1414 = vpop.f32.mrf.mxu0
        %v1415 = vadd.f32 0.0, %v1414
        %v1416 = vpop.f32.mrf.mxu0
        %v1417 = vadd.f32 0.0, %v1416
        %1418 = vmatmul.bf16.gmra.mxu0 %v1338
        %v1419 = vpop.f32.mrf.mxu0
        %v1420 = vadd.f32 0.0, %v1419
        %v1421 = vpop.f32.mrf.mxu0
        %v1422 = vadd.f32 0.0, %v1421
        %1423 = vmatmul.bf16.gmra.mxu0 %v1341
        %v1424 = vpop.f32.mrf.mxu0
        %v1425 = vadd.f32 0.0, %v1424
        %v1426 = vpop.f32.mrf.mxu0
        %v1427 = vadd.f32 0.0, %v1426
        %1428 = vmatmul.bf16.gmra.mxu0 %v1344
        %v1429 = vpop.f32.mrf.mxu0
        %v1430 = vadd.f32 0.0, %v1429
        %v1431 = vpop.f32.mrf.mxu0
        %v1432 = vadd.f32 0.0, %v1431
        %1433 = vmatmul.bf16.gmra.mxu0 %v1347
        %v1434 = vpop.f32.mrf.mxu0
        %v1435 = vadd.f32 0.0, %v1434
        %v1436 = vpop.f32.mrf.mxu0
        %v1437 = vadd.f32 0.0, %v1436
        %1438 = vmatmul.bf16.gmra.mxu0 %v1350
        %v1439 = vpop.f32.mrf.mxu0
        %v1440 = vadd.f32 0.0, %v1439
        %v1441 = vpop.f32.mrf.mxu0
        %v1442 = vadd.f32 0.0, %v1441
        %1443 = vdwg.mxu0
        %v1444 = vadd.f32 %v1013, %v1365
        %v1445 = vadd.f32 %v1015, %v1367
        %v1446 = vadd.f32 %v1018, %v1370
        %v1447 = vadd.f32 %v1020, %v1372
        %v1448 = vadd.f32 %v1023, %v1375
        %v1449 = vadd.f32 %v1025, %v1377
        %v1450 = vadd.f32 %v1028, %v1380
        %v1451 = vadd.f32 %v1030, %v1382
        %v1452 = vadd.f32 %v1033, %v1385
        %v1453 = vadd.f32 %v1035, %v1387
        %v1454 = vadd.f32 %v1038, %v1390
        %v1455 = vadd.f32 %v1040, %v1392
        %v1456 = vadd.f32 %v1043, %v1395
        %v1457 = vadd.f32 %v1045, %v1397
        %v1458 = vadd.f32 %v1048, %v1400
        %v1459 = vadd.f32 %v1050, %v1402
        %v1460 = vadd.f32 %v1053, %v1405
        %v1461 = vadd.f32 %v1055, %v1407
        %v1462 = vadd.f32 %v1058, %v1410
        %v1463 = vadd.f32 %v1060, %v1412
        %v1464 = vadd.f32 %v1063, %v1415
        %v1465 = vadd.f32 %v1065, %v1417
        %v1466 = vadd.f32 %v1068, %v1420
        %v1467 = vadd.f32 %v1070, %v1422
        %v1468 = vadd.f32 %v1073, %v1425
        %v1469 = vadd.f32 %v1075, %v1427
        %v1470 = vadd.f32 %v1078, %v1430
        %v1471 = vadd.f32 %v1080, %v1432
        %v1472 = vadd.f32 %v1083, %v1435
        %v1473 = vadd.f32 %v1085, %v1437
        %v1474 = vadd.f32 %v1088, %v1440
        %v1475 = vadd.f32 %v1090, %v1442
        %s1476 = scalar_lea.vmem %s235, 12
        %v1477 = vld [vmem:[%s1476] sm:$0xf]
        %v1478 = vld [vmem:[%s1476 + $0x4] sm:$0xf]
        %v1479 = vld [vmem:[%s1476 + $0xc] sm:$0xf]
        %v1480 = vld [vmem:[%s1476 + $0x10] sm:$0xf]
        %v1481 = vld [vmem:[%s1476 + $0x18] sm:$0xf]
        %v1482 = vld [vmem:[%s1476 + $0x1c] sm:$0xf]
        %v1483 = vld [vmem:[%s1476 + $0x24] sm:$0xf]
        %v1484 = vld [vmem:[%s1476 + $0x28] sm:$0xf]
        %v1485 = vld [vmem:[%s1476 + $0x30] sm:$0xf]
        %v1486 = vld [vmem:[%s1476 + $0x34] sm:$0xf]
        %v1487 = vld [vmem:[%s1476 + $0x3c] sm:$0xf]
        %v1488 = vld [vmem:[%s1476 + $0x40] sm:$0xf]
        %v1489 = vld [vmem:[%s1476 + $0x48] sm:$0xf]
        %v1490 = vld [vmem:[%s1476 + $0x4c] sm:$0xf]
        %v1491 = vld [vmem:[%s1476 + $0x54] sm:$0xf]
        %v1492 = vld [vmem:[%s1476 + $0x58] sm:$0xf]
        %v1493 = vld [vmem:[%s1476 + $0x60] sm:$0xf]
        %v1494 = vld [vmem:[%s1476 + $0x64] sm:$0xf]
        %v1495 = vld [vmem:[%s1476 + $0x6c] sm:$0xf]
        %v1496 = vld [vmem:[%s1476 + $0x70] sm:$0xf]
        %v1497 = vld [vmem:[%s1476 + $0x78] sm:$0xf]
        %v1498 = vld [vmem:[%s1476 + $0x7c] sm:$0xf]
        %v1499 = vld [vmem:[%s1476 + $0x84] sm:$0xf]
        %v1500 = vld [vmem:[%s1476 + $0x88] sm:$0xf]
        %v1501 = vld [vmem:[%s1476 + $0x90] sm:$0xf]
        %v1502 = vld [vmem:[%s1476 + $0x94] sm:$0xf]
        %v1503 = vld [vmem:[%s1476 + $0x9c] sm:$0xf]
        %v1504 = vld [vmem:[%s1476 + $0xa0] sm:$0xf]
        %v1505 = vld [vmem:[%s1476 + $0xa8] sm:$0xf]
        %v1506 = vld [vmem:[%s1476 + $0xac] sm:$0xf]
        %v1507 = vld [vmem:[%s1476 + $0xb4] sm:$0xf]
        %v1508 = vld [vmem:[%s1476 + $0xb8] sm:$0xf]
        %v1509 = vld [vmem:[%s1 + $0x4] sm:$0xc]
        %v1542 = vunpack.c.l.b16 %v1477
        %v1543 = vunpack.c.l.b16 %v1478
        %v1544 = vunpack.c.l.b16 %v1479
        %v1545 = vunpack.c.l.b16 %v1480
        %v1546 = vunpack.c.l.b16 %v1481
        %v1547 = vunpack.c.l.b16 %v1482
        %v1548 = vunpack.c.l.b16 %v1483
        %v1549 = vunpack.c.l.b16 %v1484
        %v1550 = vunpack.c.l.b16 %v1485
        %v1551 = vunpack.c.l.b16 %v1486
        %v1552 = vunpack.c.l.b16 %v1487
        %v1553 = vunpack.c.l.b16 %v1488
        %v1554 = vunpack.c.l.b16 %v1489
        %v1555 = vunpack.c.l.b16 %v1490
        %v1556 = vunpack.c.l.b16 %v1491
        %v1557 = vunpack.c.l.b16 %v1492
        %v1558 = vunpack.c.l.b16 %v1493
        %v1559 = vunpack.c.l.b16 %v1494
        %v1560 = vunpack.c.l.b16 %v1495
        %v1561 = vunpack.c.l.b16 %v1496
        %v1562 = vunpack.c.l.b16 %v1497
        %v1563 = vunpack.c.l.b16 %v1498
        %v1564 = vunpack.c.l.b16 %v1499
        %v1565 = vunpack.c.l.b16 %v1500
        %v1566 = vunpack.c.l.b16 %v1501
        %v1567 = vunpack.c.l.b16 %v1502
        %v1568 = vunpack.c.l.b16 %v1503
        %v1569 = vunpack.c.l.b16 %v1504
        %v1570 = vunpack.c.l.b16 %v1505
        %v1571 = vunpack.c.l.b16 %v1506
        %v1572 = vunpack.c.l.b16 %v1507
        %v1573 = vunpack.c.l.b16 %v1508
        %v1574 = vpack.c.b16 %v1543, %v1542
        %v1575 = vpack.c.b16 %v1545, %v1544
        %v1576 = vpack.c.b16 %v1547, %v1546
        %v1577 = vpack.c.b16 %v1549, %v1548
        %v1578 = vpack.c.b16 %v1551, %v1550
        %v1579 = vpack.c.b16 %v1553, %v1552
        %v1580 = vpack.c.b16 %v1555, %v1554
        %v1581 = vpack.c.b16 %v1557, %v1556
        %v1582 = vpack.c.b16 %v1559, %v1558
        %v1583 = vpack.c.b16 %v1561, %v1560
        %v1584 = vpack.c.b16 %v1563, %v1562
        %v1585 = vpack.c.b16 %v1565, %v1564
        %v1586 = vpack.c.b16 %v1567, %v1566
        %v1587 = vpack.c.b16 %v1569, %v1568
        %v1588 = vpack.c.b16 %v1571, %v1570
        %v1589 = vpack.c.b16 %v1573, %v1572
        %v1591 = vunpack.c.l.b16 %v1509
        %v1592 = vpack.c.b16 %v1591, %v1591
        %v1593 = vrot.slane %v1592, 2
        %v1595 = vsel %vm730, %v1574, 0
        %v1598 = vsel %vm730, %v1575, 0
        %v1601 = vsel %vm730, %v1576, 0
        %v1604 = vsel %vm730, %v1577, 0
        %v1607 = vsel %vm730, %v1578, 0
        %v1610 = vsel %vm730, %v1579, 0
        %v1613 = vsel %vm730, %v1580, 0
        %v1616 = vsel %vm730, %v1581, 0
        %v1619 = vsel %vm730, %v1582, 0
        %v1622 = vsel %vm730, %v1583, 0
        %v1625 = vsel %vm730, %v1584, 0
        %v1628 = vsel %vm730, %v1585, 0
        %v1631 = vsel %vm730, %v1586, 0
        %v1634 = vsel %vm730, %v1587, 0
        %v1637 = vsel %vm730, %v1588, 0
        %v1640 = vsel %vm730, %v1589, 0
        %v1643 = vsel %vm779, %v1593, 0
        %1645 = vmatpush.bf16.msra.mxu0 0
        %1646 = vmatpush.bf16.msra.mxu0 0
        %1647 = vmatpush.bf16.msra.mxu0 0
        %1648 = vmatpush.bf16.msra.mxu0 0
        %1649 = vmatpush.bf16.msra.mxu0 0
        %1650 = vmatpush.bf16.msra.mxu0 0
        %1651 = vmatpush.bf16.msra.mxu0 0
        %1652 = vmatpush.bf16.msra.mxu0 %v1643
        %1653 = vmatmul.bf16.gmra.mxu0 %v1595
        %v1654 = vpop.f32.mrf.mxu0
        %v1655 = vadd.f32 0.0, %v1654
        %v1656 = vpop.f32.mrf.mxu0
        %v1657 = vadd.f32 0.0, %v1656
        %1658 = vmatmul.bf16.gmra.mxu0 %v1598
        %v1659 = vpop.f32.mrf.mxu0
        %v1660 = vadd.f32 0.0, %v1659
        %v1661 = vpop.f32.mrf.mxu0
        %v1662 = vadd.f32 0.0, %v1661
        %1663 = vmatmul.bf16.gmra.mxu0 %v1601
        %v1664 = vpop.f32.mrf.mxu0
        %v1665 = vadd.f32 0.0, %v1664
        %v1666 = vpop.f32.mrf.mxu0
        %v1667 = vadd.f32 0.0, %v1666
        %1668 = vmatmul.bf16.gmra.mxu0 %v1604
        %v1669 = vpop.f32.mrf.mxu0
        %v1670 = vadd.f32 0.0, %v1669
        %v1671 = vpop.f32.mrf.mxu0
        %v1672 = vadd.f32 0.0, %v1671
        %1673 = vmatmul.bf16.gmra.mxu0 %v1607
        %v1674 = vpop.f32.mrf.mxu0
        %v1675 = vadd.f32 0.0, %v1674
        %v1676 = vpop.f32.mrf.mxu0
        %v1677 = vadd.f32 0.0, %v1676
        %1678 = vmatmul.bf16.gmra.mxu0 %v1610
        %v1679 = vpop.f32.mrf.mxu0
        %v1680 = vadd.f32 0.0, %v1679
        %v1681 = vpop.f32.mrf.mxu0
        %v1682 = vadd.f32 0.0, %v1681
        %1683 = vmatmul.bf16.gmra.mxu0 %v1613
        %v1684 = vpop.f32.mrf.mxu0
        %v1685 = vadd.f32 0.0, %v1684
        %v1686 = vpop.f32.mrf.mxu0
        %v1687 = vadd.f32 0.0, %v1686
        %1688 = vmatmul.bf16.gmra.mxu0 %v1616
        %v1689 = vpop.f32.mrf.mxu0
        %v1690 = vadd.f32 0.0, %v1689
        %v1691 = vpop.f32.mrf.mxu0
        %v1692 = vadd.f32 0.0, %v1691
        %1693 = vmatmul.bf16.gmra.mxu0 %v1619
        %v1694 = vpop.f32.mrf.mxu0
        %v1695 = vadd.f32 0.0, %v1694
        %v1696 = vpop.f32.mrf.mxu0
        %v1697 = vadd.f32 0.0, %v1696
        %1698 = vmatmul.bf16.gmra.mxu0 %v1622
        %v1699 = vpop.f32.mrf.mxu0
        %v1700 = vadd.f32 0.0, %v1699
        %v1701 = vpop.f32.mrf.mxu0
        %v1702 = vadd.f32 0.0, %v1701
        %1703 = vmatmul.bf16.gmra.mxu0 %v1625
        %v1704 = vpop.f32.mrf.mxu0
        %v1705 = vadd.f32 0.0, %v1704
        %v1706 = vpop.f32.mrf.mxu0
        %v1707 = vadd.f32 0.0, %v1706
        %1708 = vmatmul.bf16.gmra.mxu0 %v1628
        %v1709 = vpop.f32.mrf.mxu0
        %v1710 = vadd.f32 0.0, %v1709
        %v1711 = vpop.f32.mrf.mxu0
        %v1712 = vadd.f32 0.0, %v1711
        %1713 = vmatmul.bf16.gmra.mxu0 %v1631
        %v1714 = vpop.f32.mrf.mxu0
        %v1715 = vadd.f32 0.0, %v1714
        %v1716 = vpop.f32.mrf.mxu0
        %v1717 = vadd.f32 0.0, %v1716
        %1718 = vmatmul.bf16.gmra.mxu0 %v1634
        %v1719 = vpop.f32.mrf.mxu0
        %v1720 = vadd.f32 0.0, %v1719
        %v1721 = vpop.f32.mrf.mxu0
        %v1722 = vadd.f32 0.0, %v1721
        %1723 = vmatmul.bf16.gmra.mxu0 %v1637
        %v1724 = vpop.f32.mrf.mxu0
        %v1725 = vadd.f32 0.0, %v1724
        %v1726 = vpop.f32.mrf.mxu0
        %v1727 = vadd.f32 0.0, %v1726
        %1728 = vmatmul.bf16.gmra.mxu0 %v1640
        %v1729 = vpop.f32.mrf.mxu0
        %v1730 = vadd.f32 0.0, %v1729
        %v1731 = vpop.f32.mrf.mxu0
        %v1732 = vadd.f32 0.0, %v1731
        %1733 = vdwg.mxu0
        %v1734 = vadd.f32 %v1444, %v1655
        %v1735 = vadd.f32 %v1445, %v1657
        %v1736 = vadd.f32 %v1446, %v1660
        %v1737 = vadd.f32 %v1447, %v1662
        %v1738 = vadd.f32 %v1448, %v1665
        %v1739 = vadd.f32 %v1449, %v1667
        %v1740 = vadd.f32 %v1450, %v1670
        %v1741 = vadd.f32 %v1451, %v1672
        %v1742 = vadd.f32 %v1452, %v1675
        %v1743 = vadd.f32 %v1453, %v1677
        %v1744 = vadd.f32 %v1454, %v1680
        %v1745 = vadd.f32 %v1455, %v1682
        %v1746 = vadd.f32 %v1456, %v1685
        %v1747 = vadd.f32 %v1457, %v1687
        %v1748 = vadd.f32 %v1458, %v1690
        %v1749 = vadd.f32 %v1459, %v1692
        %v1750 = vadd.f32 %v1460, %v1695
        %v1751 = vadd.f32 %v1461, %v1697
        %v1752 = vadd.f32 %v1462, %v1700
        %v1753 = vadd.f32 %v1463, %v1702
        %v1754 = vadd.f32 %v1464, %v1705
        %v1755 = vadd.f32 %v1465, %v1707
        %v1756 = vadd.f32 %v1466, %v1710
        %v1757 = vadd.f32 %v1467, %v1712
        %v1758 = vadd.f32 %v1468, %v1715
        %v1759 = vadd.f32 %v1469, %v1717
        %v1760 = vadd.f32 %v1470, %v1720
        %v1761 = vadd.f32 %v1471, %v1722
        %v1762 = vadd.f32 %v1472, %v1725
        %v1763 = vadd.f32 %v1473, %v1727
        %v1764 = vadd.f32 %v1474, %v1730
        %v1765 = vadd.f32 %v1475, %v1732
        %v1766 = vld [vmem:[%s1476] sm:$0xf]
        %v1767 = vld [vmem:[%s1476 + $0x4] sm:$0xf]
        %v1768 = vld [vmem:[%s1476 + $0x8] sm:$0x1]
        %v1769 = vld [vmem:[%s1476 + $0xc] sm:$0xf]
        %v1770 = vld [vmem:[%s1476 + $0x10] sm:$0xf]
        %v1771 = vld [vmem:[%s1476 + $0x14] sm:$0x1]
        %v1772 = vld [vmem:[%s1476 + $0x18] sm:$0xf]
        %v1773 = vld [vmem:[%s1476 + $0x1c] sm:$0xf]
        %v1774 = vld [vmem:[%s1476 + $0x20] sm:$0x1]
        %v1775 = vld [vmem:[%s1476 + $0x24] sm:$0xf]
        %v1776 = vld [vmem:[%s1476 + $0x28] sm:$0xf]
        %v1777 = vld [vmem:[%s1476 + $0x2c] sm:$0x1]
        %v1778 = vld [vmem:[%s1476 + $0x30] sm:$0xf]
        %v1779 = vld [vmem:[%s1476 + $0x34] sm:$0xf]
        %v1780 = vld [vmem:[%s1476 + $0x38] sm:$0x1]
        %v1781 = vld [vmem:[%s1476 + $0x3c] sm:$0xf]
        %v1782 = vld [vmem:[%s1476 + $0x40] sm:$0xf]
        %v1783 = vld [vmem:[%s1476 + $0x44] sm:$0x1]
        %v1784 = vld [vmem:[%s1476 + $0x48] sm:$0xf]
        %v1785 = vld [vmem:[%s1476 + $0x4c] sm:$0xf]
        %v1786 = vld [vmem:[%s1476 + $0x50] sm:$0x1]
        %v1787 = vld [vmem:[%s1476 + $0x54] sm:$0xf]
        %v1788 = vld [vmem:[%s1476 + $0x58] sm:$0xf]
        %v1789 = vld [vmem:[%s1476 + $0x5c] sm:$0x1]
        %v1790 = vld [vmem:[%s1476 + $0x60] sm:$0xf]
        %v1791 = vld [vmem:[%s1476 + $0x64] sm:$0xf]
        %v1792 = vld [vmem:[%s1476 + $0x68] sm:$0x1]
        %v1793 = vld [vmem:[%s1476 + $0x6c] sm:$0xf]
        %v1794 = vld [vmem:[%s1476 + $0x70] sm:$0xf]
        %v1795 = vld [vmem:[%s1476 + $0x74] sm:$0x1]
        %v1796 = vld [vmem:[%s1476 + $0x78] sm:$0xf]
        %v1797 = vld [vmem:[%s1476 + $0x7c] sm:$0xf]
        %v1798 = vld [vmem:[%s1476 + $0x80] sm:$0x1]
        %v1799 = vld [vmem:[%s1476 + $0x84] sm:$0xf]
        %v1800 = vld [vmem:[%s1476 + $0x88] sm:$0xf]
        %v1801 = vld [vmem:[%s1476 + $0x8c] sm:$0x1]
        %v1802 = vld [vmem:[%s1476 + $0x90] sm:$0xf]
        %v1803 = vld [vmem:[%s1476 + $0x94] sm:$0xf]
        %v1804 = vld [vmem:[%s1476 + $0x98] sm:$0x1]
        %v1805 = vld [vmem:[%s1476 + $0x9c] sm:$0xf]
        %v1806 = vld [vmem:[%s1476 + $0xa0] sm:$0xf]
        %v1807 = vld [vmem:[%s1476 + $0xa4] sm:$0x1]
        %v1808 = vld [vmem:[%s1476 + $0xa8] sm:$0xf]
        %v1809 = vld [vmem:[%s1476 + $0xac] sm:$0xf]
        %v1810 = vld [vmem:[%s1476 + $0xb0] sm:$0x1]
        %v1811 = vld [vmem:[%s1476 + $0xb4] sm:$0xf]
        %v1812 = vld [vmem:[%s1476 + $0xb8] sm:$0xf]
        %v1813 = vld [vmem:[%s1476 + $0xbc] sm:$0x1]
        %v1815 = vshrl.u32 %v1766, 16
        %v1817 = vrot.slane %v1815, 4
        %v1818 = vshll.u32 %v1766, 16
        %v1820 = vrot.slane %v1818, 5
        %v1821 = vor.u32 %v1817, %v1820
        %v1822 = vrot.slane %v1821, 4
        %v1824 = vshll.u32 %v1767, 16
        %v1826 = vrot.slane %v1824, 5
        %v1827 = vsel %vm292, %v1822, %v1826
        %v1828 = vshrl.u32 %v1767, 16
        %v1830 = vrot.slane %v1828, 4
        %v1831 = vor.u32 %v1830, %v1826
        %v1832 = vrot.slane %v1831, 4
        %v1834 = vshll.u32 %v1768, 16
        %v1836 = vrot.slane %v1834, 5
        %v1837 = vsel %vm292, %v1832, %v1836
        %v1839 = vshrl.u32 %v1769, 16
        %v1841 = vrot.slane %v1839, 4
        %v1842 = vshll.u32 %v1769, 16
        %v1844 = vrot.slane %v1842, 5
        %v1845 = vor.u32 %v1841, %v1844
        %v1846 = vrot.slane %v1845, 4
        %v1848 = vshll.u32 %v1770, 16
        %v1850 = vrot.slane %v1848, 5
        %v1851 = vsel %vm292, %v1846, %v1850
        %v1852 = vshrl.u32 %v1770, 16
        %v1854 = vrot.slane %v1852, 4
        %v1855 = vor.u32 %v1854, %v1850
        %v1856 = vrot.slane %v1855, 4
        %v1858 = vshll.u32 %v1771, 16
        %v1860 = vrot.slane %v1858, 5
        %v1861 = vsel %vm292, %v1856, %v1860
        %v1863 = vshrl.u32 %v1772, 16
        %v1865 = vrot.slane %v1863, 4
        %v1866 = vshll.u32 %v1772, 16
        %v1868 = vrot.slane %v1866, 5
        %v1869 = vor.u32 %v1865, %v1868
        %v1870 = vrot.slane %v1869, 4
        %v1872 = vshll.u32 %v1773, 16
        %v1874 = vrot.slane %v1872, 5
        %v1875 = vsel %vm292, %v1870, %v1874
        %v1876 = vshrl.u32 %v1773, 16
        %v1878 = vrot.slane %v1876, 4
        %v1879 = vor.u32 %v1878, %v1874
        %v1880 = vrot.slane %v1879, 4
        %v1882 = vshll.u32 %v1774, 16
        %v1884 = vrot.slane %v1882, 5
        %v1885 = vsel %vm292, %v1880, %v1884
        %v1887 = vshrl.u32 %v1775, 16
        %v1889 = vrot.slane %v1887, 4
        %v1890 = vshll.u32 %v1775, 16
        %v1892 = vrot.slane %v1890, 5
        %v1893 = vor.u32 %v1889, %v1892
        %v1894 = vrot.slane %v1893, 4
        %v1896 = vshll.u32 %v1776, 16
        %v1898 = vrot.slane %v1896, 5
        %v1899 = vsel %vm292, %v1894, %v1898
        %v1900 = vshrl.u32 %v1776, 16
        %v1902 = vrot.slane %v1900, 4
        %v1903 = vor.u32 %v1902, %v1898
        %v1904 = vrot.slane %v1903, 4
        %v1906 = vshll.u32 %v1777, 16
        %v1908 = vrot.slane %v1906, 5
        %v1909 = vsel %vm292, %v1904, %v1908
        %v1911 = vshrl.u32 %v1778, 16
        %v1913 = vrot.slane %v1911, 4
        %v1914 = vshll.u32 %v1778, 16
        %v1916 = vrot.slane %v1914, 5
        %v1917 = vor.u32 %v1913, %v1916
        %v1918 = vrot.slane %v1917, 4
        %v1920 = vshll.u32 %v1779, 16
        %v1922 = vrot.slane %v1920, 5
        %v1923 = vsel %vm292, %v1918, %v1922
        %v1924 = vshrl.u32 %v1779, 16
        %v1926 = vrot.slane %v1924, 4
        %v1927 = vor.u32 %v1926, %v1922
        %v1928 = vrot.slane %v1927, 4
        %v1930 = vshll.u32 %v1780, 16
        %v1932 = vrot.slane %v1930, 5
        %v1933 = vsel %vm292, %v1928, %v1932
        %v1935 = vshrl.u32 %v1781, 16
        %v1937 = vrot.slane %v1935, 4
        %v1938 = vshll.u32 %v1781, 16
        %v1940 = vrot.slane %v1938, 5
        %v1941 = vor.u32 %v1937, %v1940
        %v1942 = vrot.slane %v1941, 4
        %v1944 = vshll.u32 %v1782, 16
        %v1946 = vrot.slane %v1944, 5
        %v1947 = vsel %vm292, %v1942, %v1946
        %v1948 = vshrl.u32 %v1782, 16
        %v1950 = vrot.slane %v1948, 4
        %v1951 = vor.u32 %v1950, %v1946
        %v1952 = vrot.slane %v1951, 4
        %v1954 = vshll.u32 %v1783, 16
        %v1956 = vrot.slane %v1954, 5
        %v1957 = vsel %vm292, %v1952, %v1956
        %v1959 = vshrl.u32 %v1784, 16
        %v1961 = vrot.slane %v1959, 4
        %v1962 = vshll.u32 %v1784, 16
        %v1964 = vrot.slane %v1962, 5
        %v1965 = vor.u32 %v1961, %v1964
        %v1966 = vrot.slane %v1965, 4
        %v1968 = vshll.u32 %v1785, 16
        %v1970 = vrot.slane %v1968, 5
        %v1971 = vsel %vm292, %v1966, %v1970
        %v1972 = vshrl.u32 %v1785, 16
        %v1974 = vrot.slane %v1972, 4
        %v1975 = vor.u32 %v1974, %v1970
        %v1976 = vrot.slane %v1975, 4
        %v1978 = vshll.u32 %v1786, 16
        %v1980 = vrot.slane %v1978, 5
        %v1981 = vsel %vm292, %v1976, %v1980
        %v1983 = vshrl.u32 %v1787, 16
        %v1985 = vrot.slane %v1983, 4
        %v1986 = vshll.u32 %v1787, 16
        %v1988 = vrot.slane %v1986, 5
        %v1989 = vor.u32 %v1985, %v1988
        %v1990 = vrot.slane %v1989, 4
        %v1992 = vshll.u32 %v1788, 16
        %v1994 = vrot.slane %v1992, 5
        %v1995 = vsel %vm292, %v1990, %v1994
        %v1996 = vshrl.u32 %v1788, 16
        %v1998 = vrot.slane %v1996, 4
        %v1999 = vor.u32 %v1998, %v1994
        %v2000 = vrot.slane %v1999, 4
        %v2002 = vshll.u32 %v1789, 16
        %v2004 = vrot.slane %v2002, 5
        %v2005 = vsel %vm292, %v2000, %v2004
        %v2007 = vshrl.u32 %v1790, 16
        %v2009 = vrot.slane %v2007, 4
        %v2010 = vshll.u32 %v1790, 16
        %v2012 = vrot.slane %v2010, 5
        %v2013 = vor.u32 %v2009, %v2012
        %v2014 = vrot.slane %v2013, 4
        %v2016 = vshll.u32 %v1791, 16
        %v2018 = vrot.slane %v2016, 5
        %v2019 = vsel %vm292, %v2014, %v2018
        %v2020 = vshrl.u32 %v1791, 16
        %v2022 = vrot.slane %v2020, 4
        %v2023 = vor.u32 %v2022, %v2018
        %v2024 = vrot.slane %v2023, 4
        %v2026 = vshll.u32 %v1792, 16
        %v2028 = vrot.slane %v2026, 5
        %v2029 = vsel %vm292, %v2024, %v2028
        %v2031 = vshrl.u32 %v1793, 16
        %v2033 = vrot.slane %v2031, 4
        %v2034 = vshll.u32 %v1793, 16
        %v2036 = vrot.slane %v2034, 5
        %v2037 = vor.u32 %v2033, %v2036
        %v2038 = vrot.slane %v2037, 4
        %v2040 = vshll.u32 %v1794, 16
        %v2042 = vrot.slane %v2040, 5
        %v2043 = vsel %vm292, %v2038, %v2042
        %v2044 = vshrl.u32 %v1794, 16
        %v2046 = vrot.slane %v2044, 4
        %v2047 = vor.u32 %v2046, %v2042
        %v2048 = vrot.slane %v2047, 4
        %v2050 = vshll.u32 %v1795, 16
        %v2052 = vrot.slane %v2050, 5
        %v2053 = vsel %vm292, %v2048, %v2052
        %v2055 = vshrl.u32 %v1796, 16
        %v2057 = vrot.slane %v2055, 4
        %v2058 = vshll.u32 %v1796, 16
        %v2060 = vrot.slane %v2058, 5
        %v2061 = vor.u32 %v2057, %v2060
        %v2062 = vrot.slane %v2061, 4
        %v2064 = vshll.u32 %v1797, 16
        %v2066 = vrot.slane %v2064, 5
        %v2067 = vsel %vm292, %v2062, %v2066
        %v2068 = vshrl.u32 %v1797, 16
        %v2070 = vrot.slane %v2068, 4
        %v2071 = vor.u32 %v2070, %v2066
        %v2072 = vrot.slane %v2071, 4
        %v2074 = vshll.u32 %v1798, 16
        %v2076 = vrot.slane %v2074, 5
        %v2077 = vsel %vm292, %v2072, %v2076
        %v2079 = vshrl.u32 %v1799, 16
        %v2081 = vrot.slane %v2079, 4
        %v2082 = vshll.u32 %v1799, 16
        %v2084 = vrot.slane %v2082, 5
        %v2085 = vor.u32 %v2081, %v2084
        %v2086 = vrot.slane %v2085, 4
        %v2088 = vshll.u32 %v1800, 16
        %v2090 = vrot.slane %v2088, 5
        %v2091 = vsel %vm292, %v2086, %v2090
        %v2092 = vshrl.u32 %v1800, 16
        %v2094 = vrot.slane %v2092, 4
        %v2095 = vor.u32 %v2094, %v2090
        %v2096 = vrot.slane %v2095, 4
        %v2098 = vshll.u32 %v1801, 16
        %v2100 = vrot.slane %v2098, 5
        %v2101 = vsel %vm292, %v2096, %v2100
        %v2103 = vshrl.u32 %v1802, 16
        %v2105 = vrot.slane %v2103, 4
        %v2106 = vshll.u32 %v1802, 16
        %v2108 = vrot.slane %v2106, 5
        %v2109 = vor.u32 %v2105, %v2108
        %v2110 = vrot.slane %v2109, 4
        %v2112 = vshll.u32 %v1803, 16
        %v2114 = vrot.slane %v2112, 5
        %v2115 = vsel %vm292, %v2110, %v2114
        %v2116 = vshrl.u32 %v1803, 16
        %v2118 = vrot.slane %v2116, 4
        %v2119 = vor.u32 %v2118, %v2114
        %v2120 = vrot.slane %v2119, 4
        %v2122 = vshll.u32 %v1804, 16
        %v2124 = vrot.slane %v2122, 5
        %v2125 = vsel %vm292, %v2120, %v2124
        %v2127 = vshrl.u32 %v1805, 16
        %v2129 = vrot.slane %v2127, 4
        %v2130 = vshll.u32 %v1805, 16
        %v2132 = vrot.slane %v2130, 5
        %v2133 = vor.u32 %v2129, %v2132
        %v2134 = vrot.slane %v2133, 4
        %v2136 = vshll.u32 %v1806, 16
        %v2138 = vrot.slane %v2136, 5
        %v2139 = vsel %vm292, %v2134, %v2138
        %v2140 = vshrl.u32 %v1806, 16
        %v2142 = vrot.slane %v2140, 4
        %v2143 = vor.u32 %v2142, %v2138
        %v2144 = vrot.slane %v2143, 4
        %v2146 = vshll.u32 %v1807, 16
        %v2148 = vrot.slane %v2146, 5
        %v2149 = vsel %vm292, %v2144, %v2148
        %v2151 = vshrl.u32 %v1808, 16
        %v2153 = vrot.slane %v2151, 4
        %v2154 = vshll.u32 %v1808, 16
        %v2156 = vrot.slane %v2154, 5
        %v2157 = vor.u32 %v2153, %v2156
        %v2158 = vrot.slane %v2157, 4
        %v2160 = vshll.u32 %v1809, 16
        %v2162 = vrot.slane %v2160, 5
        %v2163 = vsel %vm292, %v2158, %v2162
        %v2164 = vshrl.u32 %v1809, 16
        %v2166 = vrot.slane %v2164, 4
        %v2167 = vor.u32 %v2166, %v2162
        %v2168 = vrot.slane %v2167, 4
        %v2170 = vshll.u32 %v1810, 16
        %v2172 = vrot.slane %v2170, 5
        %v2173 = vsel %vm292, %v2168, %v2172
        %v2175 = vshrl.u32 %v1811, 16
        %v2177 = vrot.slane %v2175, 4
        %v2178 = vshll.u32 %v1811, 16
        %v2180 = vrot.slane %v2178, 5
        %v2181 = vor.u32 %v2177, %v2180
        %v2182 = vrot.slane %v2181, 4
        %v2184 = vshll.u32 %v1812, 16
        %v2186 = vrot.slane %v2184, 5
        %v2187 = vsel %vm292, %v2182, %v2186
        %v2188 = vshrl.u32 %v1812, 16
        %v2190 = vrot.slane %v2188, 4
        %v2191 = vor.u32 %v2190, %v2186
        %v2192 = vrot.slane %v2191, 4
        %v2194 = vshll.u32 %v1813, 16
        %v2196 = vrot.slane %v2194, 5
        %v2197 = vsel %vm292, %v2192, %v2196
        %v2198 = vld [vmem:[%s1 + $0x8] sm:$0x3]
        %v2199 = vunpack.c.l.b16 %v1827
        %v2200 = vunpack.c.l.b16 %v1837
        %v2201 = vunpack.c.l.b16 %v1851
        %v2202 = vunpack.c.l.b16 %v1861
        %v2203 = vunpack.c.l.b16 %v1875
        %v2204 = vunpack.c.l.b16 %v1885
        %v2205 = vunpack.c.l.b16 %v1899
        %v2206 = vunpack.c.l.b16 %v1909
        %v2207 = vunpack.c.l.b16 %v1923
        %v2208 = vunpack.c.l.b16 %v1933
        %v2209 = vunpack.c.l.b16 %v1947
        %v2210 = vunpack.c.l.b16 %v1957
        %v2211 = vunpack.c.l.b16 %v1971
        %v2212 = vunpack.c.l.b16 %v1981
        %v2213 = vunpack.c.l.b16 %v1995
        %v2214 = vunpack.c.l.b16 %v2005
        %v2215 = vunpack.c.l.b16 %v2019
        %v2216 = vunpack.c.l.b16 %v2029
        %v2217 = vunpack.c.l.b16 %v2043
        %v2218 = vunpack.c.l.b16 %v2053
        %v2219 = vunpack.c.l.b16 %v2067
        %v2220 = vunpack.c.l.b16 %v2077
        %v2221 = vunpack.c.l.b16 %v2091
        %v2222 = vunpack.c.l.b16 %v2101
        %v2223 = vunpack.c.l.b16 %v2115
        %v2224 = vunpack.c.l.b16 %v2125
        %v2225 = vunpack.c.l.b16 %v2139
        %v2226 = vunpack.c.l.b16 %v2149
        %v2227 = vunpack.c.l.b16 %v2163
        %v2228 = vunpack.c.l.b16 %v2173
        %v2229 = vunpack.c.l.b16 %v2187
        %v2230 = vunpack.c.l.b16 %v2197
        %v2231 = vpack.c.b16 %v2200, %v2199
        %v2232 = vpack.c.b16 %v2202, %v2201
        %v2233 = vpack.c.b16 %v2204, %v2203
        %v2234 = vpack.c.b16 %v2206, %v2205
        %v2235 = vpack.c.b16 %v2208, %v2207
        %v2236 = vpack.c.b16 %v2210, %v2209
        %v2237 = vpack.c.b16 %v2212, %v2211
        %v2238 = vpack.c.b16 %v2214, %v2213
        %v2239 = vpack.c.b16 %v2216, %v2215
        %v2240 = vpack.c.b16 %v2218, %v2217
        %v2241 = vpack.c.b16 %v2220, %v2219
        %v2242 = vpack.c.b16 %v2222, %v2221
        %v2243 = vpack.c.b16 %v2224, %v2223
        %v2244 = vpack.c.b16 %v2226, %v2225
        %v2245 = vpack.c.b16 %v2228, %v2227
        %v2246 = vpack.c.b16 %v2230, %v2229
        %v2248 = vsel %vm730, %v2231, 0
        %v2251 = vsel %vm730, %v2232, 0
        %v2254 = vsel %vm730, %v2233, 0
        %v2257 = vsel %vm730, %v2234, 0
        %v2260 = vsel %vm730, %v2235, 0
        %v2263 = vsel %vm730, %v2236, 0
        %v2266 = vsel %vm730, %v2237, 0
        %v2269 = vsel %vm730, %v2238, 0
        %v2272 = vsel %vm730, %v2239, 0
        %v2275 = vsel %vm730, %v2240, 0
        %v2278 = vsel %vm730, %v2241, 0
        %v2281 = vsel %vm730, %v2242, 0
        %v2284 = vsel %vm730, %v2243, 0
        %v2287 = vsel %vm730, %v2244, 0
        %v2290 = vsel %vm730, %v2245, 0
        %v2293 = vsel %vm730, %v2246, 0
        %v2296 = vsel %vm779, %v2198, 0
        %2298 = vmatpush.bf16.msra.mxu0 0
        %2299 = vmatpush.bf16.msra.mxu0 0
        %2300 = vmatpush.bf16.msra.mxu0 0
        %2301 = vmatpush.bf16.msra.mxu0 0
        %2302 = vmatpush.bf16.msra.mxu0 0
        %2303 = vmatpush.bf16.msra.mxu0 0
        %2304 = vmatpush.bf16.msra.mxu0 0
        %2305 = vmatpush.bf16.msra.mxu0 %v2296
        %2306 = vmatmul.bf16.gmra.mxu0 %v2248
        %v2307 = vpop.f32.mrf.mxu0
        %v2308 = vadd.f32 0.0, %v2307
        %v2309 = vpop.f32.mrf.mxu0
        %v2310 = vadd.f32 0.0, %v2309
        %2311 = vmatmul.bf16.gmra.mxu0 %v2251
        %v2312 = vpop.f32.mrf.mxu0
        %v2313 = vadd.f32 0.0, %v2312
        %v2314 = vpop.f32.mrf.mxu0
        %v2315 = vadd.f32 0.0, %v2314
        %2316 = vmatmul.bf16.gmra.mxu0 %v2254
        %v2317 = vpop.f32.mrf.mxu0
        %v2318 = vadd.f32 0.0, %v2317
        %v2319 = vpop.f32.mrf.mxu0
        %v2320 = vadd.f32 0.0, %v2319
        %2321 = vmatmul.bf16.gmra.mxu0 %v2257
        %v2322 = vpop.f32.mrf.mxu0
        %v2323 = vadd.f32 0.0, %v2322
        %v2324 = vpop.f32.mrf.mxu0
        %v2325 = vadd.f32 0.0, %v2324
        %2326 = vmatmul.bf16.gmra.mxu0 %v2260
        %v2327 = vpop.f32.mrf.mxu0
        %v2328 = vadd.f32 0.0, %v2327
        %v2329 = vpop.f32.mrf.mxu0
        %v2330 = vadd.f32 0.0, %v2329
        %2331 = vmatmul.bf16.gmra.mxu0 %v2263
        %v2332 = vpop.f32.mrf.mxu0
        %v2333 = vadd.f32 0.0, %v2332
        %v2334 = vpop.f32.mrf.mxu0
        %v2335 = vadd.f32 0.0, %v2334
        %2336 = vmatmul.bf16.gmra.mxu0 %v2266
        %v2337 = vpop.f32.mrf.mxu0
        %v2338 = vadd.f32 0.0, %v2337
        %v2339 = vpop.f32.mrf.mxu0
        %v2340 = vadd.f32 0.0, %v2339
        %2341 = vmatmul.bf16.gmra.mxu0 %v2269
        %v2342 = vpop.f32.mrf.mxu0
        %v2343 = vadd.f32 0.0, %v2342
        %v2344 = vpop.f32.mrf.mxu0
        %v2345 = vadd.f32 0.0, %v2344
        %2346 = vmatmul.bf16.gmra.mxu0 %v2272
        %v2347 = vpop.f32.mrf.mxu0
        %v2348 = vadd.f32 0.0, %v2347
        %v2349 = vpop.f32.mrf.mxu0
        %v2350 = vadd.f32 0.0, %v2349
        %2351 = vmatmul.bf16.gmra.mxu0 %v2275
        %v2352 = vpop.f32.mrf.mxu0
        %v2353 = vadd.f32 0.0, %v2352
        %v2354 = vpop.f32.mrf.mxu0
        %v2355 = vadd.f32 0.0, %v2354
        %2356 = vmatmul.bf16.gmra.mxu0 %v2278
        %v2357 = vpop.f32.mrf.mxu0
        %v2358 = vadd.f32 0.0, %v2357
        %v2359 = vpop.f32.mrf.mxu0
        %v2360 = vadd.f32 0.0, %v2359
        %2361 = vmatmul.bf16.gmra.mxu0 %v2281
        %v2362 = vpop.f32.mrf.mxu0
        %v2363 = vadd.f32 0.0, %v2362
        %v2364 = vpop.f32.mrf.mxu0
        %v2365 = vadd.f32 0.0, %v2364
        %2366 = vmatmul.bf16.gmra.mxu0 %v2284
        %v2367 = vpop.f32.mrf.mxu0
        %v2368 = vadd.f32 0.0, %v2367
        %v2369 = vpop.f32.mrf.mxu0
        %v2370 = vadd.f32 0.0, %v2369
        %2371 = vmatmul.bf16.gmra.mxu0 %v2287
        %v2372 = vpop.f32.mrf.mxu0
        %v2373 = vadd.f32 0.0, %v2372
        %v2374 = vpop.f32.mrf.mxu0
        %v2375 = vadd.f32 0.0, %v2374
        %2376 = vmatmul.bf16.gmra.mxu0 %v2290
        %v2377 = vpop.f32.mrf.mxu0
        %v2378 = vadd.f32 0.0, %v2377
        %v2379 = vpop.f32.mrf.mxu0
        %v2380 = vadd.f32 0.0, %v2379
        %2381 = vmatmul.bf16.gmra.mxu0 %v2293
        %v2382 = vpop.f32.mrf.mxu0
        %v2383 = vadd.f32 0.0, %v2382
        %v2384 = vpop.f32.mrf.mxu0
        %v2385 = vadd.f32 0.0, %v2384
        %2386 = vdwg.mxu0
        %v2387 = vadd.f32 %v1734, %v2308
        %v2388 = vadd.f32 %v1735, %v2310
        %v2389 = vadd.f32 %v1736, %v2313
        %v2390 = vadd.f32 %v1737, %v2315
        %v2391 = vadd.f32 %v1738, %v2318
        %v2392 = vadd.f32 %v1739, %v2320
        %v2393 = vadd.f32 %v1740, %v2323
        %v2394 = vadd.f32 %v1741, %v2325
        %v2395 = vadd.f32 %v1742, %v2328
        %v2396 = vadd.f32 %v1743, %v2330
        %v2397 = vadd.f32 %v1744, %v2333
        %v2398 = vadd.f32 %v1745, %v2335
        %v2399 = vadd.f32 %v1746, %v2338
        %v2400 = vadd.f32 %v1747, %v2340
        %v2401 = vadd.f32 %v1748, %v2343
        %v2402 = vadd.f32 %v1749, %v2345
        %v2403 = vadd.f32 %v1750, %v2348
        %v2404 = vadd.f32 %v1751, %v2350
        %v2405 = vadd.f32 %v1752, %v2353
        %v2406 = vadd.f32 %v1753, %v2355
        %v2407 = vadd.f32 %v1754, %v2358
        %v2408 = vadd.f32 %v1755, %v2360
        %v2409 = vadd.f32 %v1756, %v2363
        %v2410 = vadd.f32 %v1757, %v2365
        %v2411 = vadd.f32 %v1758, %v2368
        %v2412 = vadd.f32 %v1759, %v2370
        %v2413 = vadd.f32 %v1760, %v2373
        %v2414 = vadd.f32 %v1761, %v2375
        %v2415 = vadd.f32 %v1762, %v2378
        %v2416 = vadd.f32 %v1763, %v2380
        %v2417 = vadd.f32 %v1764, %v2383
        %v2418 = vadd.f32 %v1765, %v2385
        %v2419 = vld [vmem:[%s1476] sm:$0xe]
        %v2420 = vld [vmem:[%s1476 + $0xc] sm:$0xe]
        %v2421 = vld [vmem:[%s1476 + $0x18] sm:$0xe]
        %v2422 = vld [vmem:[%s1476 + $0x24] sm:$0xe]
        %v2423 = vld [vmem:[%s1476 + $0x30] sm:$0xe]
        %v2424 = vld [vmem:[%s1476 + $0x3c] sm:$0xe]
        %v2425 = vld [vmem:[%s1476 + $0x48] sm:$0xe]
        %v2426 = vld [vmem:[%s1476 + $0x54] sm:$0xe]
        %v2427 = vld [vmem:[%s1476 + $0x60] sm:$0xe]
        %v2428 = vld [vmem:[%s1476 + $0x6c] sm:$0xe]
        %v2429 = vld [vmem:[%s1476 + $0x78] sm:$0xe]
        %v2430 = vld [vmem:[%s1476 + $0x84] sm:$0xe]
        %v2431 = vld [vmem:[%s1476 + $0x90] sm:$0xe]
        %v2432 = vld [vmem:[%s1476 + $0x9c] sm:$0xe]
        %v2433 = vld [vmem:[%s1476 + $0xa8] sm:$0xe]
        %v2434 = vld [vmem:[%s1476 + $0xb4] sm:$0xe]
        %v2483 = vrot.slane %v2419, 5
        %v2484 = vrot.slane %v2483, 4
        %v2485 = vrot.slane %v1767, 5
        %v2486 = vsel %vm1142, %v2484, %v2485
        %v2487 = vrot.slane %v2485, 4
        %v2488 = vrot.slane %v1768, 5
        %v2489 = vsel %vm1142, %v2487, %v2488
        %v2490 = vrot.slane %v2420, 5
        %v2491 = vrot.slane %v2490, 4
        %v2492 = vrot.slane %v1770, 5
        %v2493 = vsel %vm1142, %v2491, %v2492
        %v2494 = vrot.slane %v2492, 4
        %v2495 = vrot.slane %v1771, 5
        %v2496 = vsel %vm1142, %v2494, %v2495
        %v2497 = vrot.slane %v2421, 5
        %v2498 = vrot.slane %v2497, 4
        %v2499 = vrot.slane %v1773, 5
        %v2500 = vsel %vm1142, %v2498, %v2499
        %v2501 = vrot.slane %v2499, 4
        %v2502 = vrot.slane %v1774, 5
        %v2503 = vsel %vm1142, %v2501, %v2502
        %v2504 = vrot.slane %v2422, 5
        %v2505 = vrot.slane %v2504, 4
        %v2506 = vrot.slane %v1776, 5
        %v2507 = vsel %vm1142, %v2505, %v2506
        %v2508 = vrot.slane %v2506, 4
        %v2509 = vrot.slane %v1777, 5
        %v2510 = vsel %vm1142, %v2508, %v2509
        %v2511 = vrot.slane %v2423, 5
        %v2512 = vrot.slane %v2511, 4
        %v2513 = vrot.slane %v1779, 5
        %v2514 = vsel %vm1142, %v2512, %v2513
        %v2515 = vrot.slane %v2513, 4
        %v2516 = vrot.slane %v1780, 5
        %v2517 = vsel %vm1142, %v2515, %v2516
        %v2518 = vrot.slane %v2424, 5
        %v2519 = vrot.slane %v2518, 4
        %v2520 = vrot.slane %v1782, 5
        %v2521 = vsel %vm1142, %v2519, %v2520
        %v2522 = vrot.slane %v2520, 4
        %v2523 = vrot.slane %v1783, 5
        %v2524 = vsel %vm1142, %v2522, %v2523
        %v2525 = vrot.slane %v2425, 5
        %v2526 = vrot.slane %v2525, 4
        %v2527 = vrot.slane %v1785, 5
        %v2528 = vsel %vm1142, %v2526, %v2527
        %v2529 = vrot.slane %v2527, 4
        %v2530 = vrot.slane %v1786, 5
        %v2531 = vsel %vm1142, %v2529, %v2530
        %v2532 = vrot.slane %v2426, 5
        %v2533 = vrot.slane %v2532, 4
        %v2534 = vrot.slane %v1788, 5
        %v2535 = vsel %vm1142, %v2533, %v2534
        %v2536 = vrot.slane %v2534, 4
        %v2537 = vrot.slane %v1789, 5
        %v2538 = vsel %vm1142, %v2536, %v2537
        %v2539 = vrot.slane %v2427, 5
        %v2540 = vrot.slane %v2539, 4
        %v2541 = vrot.slane %v1791, 5
        %v2542 = vsel %vm1142, %v2540, %v2541
        %v2543 = vrot.slane %v2541, 4
        %v2544 = vrot.slane %v1792, 5
        %v2545 = vsel %vm1142, %v2543, %v2544
        %v2546 = vrot.slane %v2428, 5
        %v2547 = vrot.slane %v2546, 4
        %v2548 = vrot.slane %v1794, 5
        %v2549 = vsel %vm1142, %v2547, %v2548
        %v2550 = vrot.slane %v2548, 4
        %v2551 = vrot.slane %v1795, 5
        %v2552 = vsel %vm1142, %v2550, %v2551
        %v2553 = vrot.slane %v2429, 5
        %v2554 = vrot.slane %v2553, 4
        %v2555 = vrot.slane %v1797, 5
        %v2556 = vsel %vm1142, %v2554, %v2555
        %v2557 = vrot.slane %v2555, 4
        %v2558 = vrot.slane %v1798, 5
        %v2559 = vsel %vm1142, %v2557, %v2558
        %v2560 = vrot.slane %v2430, 5
        %v2561 = vrot.slane %v2560, 4
        %v2562 = vrot.slane %v1800, 5
        %v2563 = vsel %vm1142, %v2561, %v2562
        %v2564 = vrot.slane %v2562, 4
        %v2565 = vrot.slane %v1801, 5
        %v2566 = vsel %vm1142, %v2564, %v2565
        %v2567 = vrot.slane %v2431, 5
        %v2568 = vrot.slane %v2567, 4
        %v2569 = vrot.slane %v1803, 5
        %v2570 = vsel %vm1142, %v2568, %v2569
        %v2571 = vrot.slane %v2569, 4
        %v2572 = vrot.slane %v1804, 5
        %v2573 = vsel %vm1142, %v2571, %v2572
        %v2574 = vrot.slane %v2432, 5
        %v2575 = vrot.slane %v2574, 4
        %v2576 = vrot.slane %v1806, 5
        %v2577 = vsel %vm1142, %v2575, %v2576
        %v2578 = vrot.slane %v2576, 4
        %v2579 = vrot.slane %v1807, 5
        %v2580 = vsel %vm1142, %v2578, %v2579
        %v2581 = vrot.slane %v2433, 5
        %v2582 = vrot.slane %v2581, 4
        %v2583 = vrot.slane %v1809, 5
        %v2584 = vsel %vm1142, %v2582, %v2583
        %v2585 = vrot.slane %v2583, 4
        %v2586 = vrot.slane %v1810, 5
        %v2587 = vsel %vm1142, %v2585, %v2586
        %v2588 = vrot.slane %v2434, 5
        %v2589 = vrot.slane %v2588, 4
        %v2590 = vrot.slane %v1812, 5
        %v2591 = vsel %vm1142, %v2589, %v2590
        %v2592 = vrot.slane %v2590, 4
        %v2593 = vrot.slane %v1813, 5
        %v2594 = vsel %vm1142, %v2592, %v2593
        %v2595 = vld [vmem:[%s1 + $0x8] sm:$0xc]
        %v2596 = vunpack.c.l.b16 %v2486
        %v2597 = vunpack.c.l.b16 %v2489
        %v2598 = vunpack.c.l.b16 %v2493
        %v2599 = vunpack.c.l.b16 %v2496
        %v2600 = vunpack.c.l.b16 %v2500
        %v2601 = vunpack.c.l.b16 %v2503
        %v2602 = vunpack.c.l.b16 %v2507
        %v2603 = vunpack.c.l.b16 %v2510
        %v2604 = vunpack.c.l.b16 %v2514
        %v2605 = vunpack.c.l.b16 %v2517
        %v2606 = vunpack.c.l.b16 %v2521
        %v2607 = vunpack.c.l.b16 %v2524
        %v2608 = vunpack.c.l.b16 %v2528
        %v2609 = vunpack.c.l.b16 %v2531
        %v2610 = vunpack.c.l.b16 %v2535
        %v2611 = vunpack.c.l.b16 %v2538
        %v2612 = vunpack.c.l.b16 %v2542
        %v2613 = vunpack.c.l.b16 %v2545
        %v2614 = vunpack.c.l.b16 %v2549
        %v2615 = vunpack.c.l.b16 %v2552
        %v2616 = vunpack.c.l.b16 %v2556
        %v2617 = vunpack.c.l.b16 %v2559
        %v2618 = vunpack.c.l.b16 %v2563
        %v2619 = vunpack.c.l.b16 %v2566
        %v2620 = vunpack.c.l.b16 %v2570
        %v2621 = vunpack.c.l.b16 %v2573
        %v2622 = vunpack.c.l.b16 %v2577
        %v2623 = vunpack.c.l.b16 %v2580
        %v2624 = vunpack.c.l.b16 %v2584
        %v2625 = vunpack.c.l.b16 %v2587
        %v2626 = vunpack.c.l.b16 %v2591
        %v2627 = vunpack.c.l.b16 %v2594
        %v2628 = vpack.c.b16 %v2597, %v2596
        %v2629 = vpack.c.b16 %v2599, %v2598
        %v2630 = vpack.c.b16 %v2601, %v2600
        %v2631 = vpack.c.b16 %v2603, %v2602
        %v2632 = vpack.c.b16 %v2605, %v2604
        %v2633 = vpack.c.b16 %v2607, %v2606
        %v2634 = vpack.c.b16 %v2609, %v2608
        %v2635 = vpack.c.b16 %v2611, %v2610
        %v2636 = vpack.c.b16 %v2613, %v2612
        %v2637 = vpack.c.b16 %v2615, %v2614
        %v2638 = vpack.c.b16 %v2617, %v2616
        %v2639 = vpack.c.b16 %v2619, %v2618
        %v2640 = vpack.c.b16 %v2621, %v2620
        %v2641 = vpack.c.b16 %v2623, %v2622
        %v2642 = vpack.c.b16 %v2625, %v2624
        %v2643 = vpack.c.b16 %v2627, %v2626
        %v2645 = vunpack.c.l.b16 %v2595
        %v2646 = vpack.c.b16 %v2645, %v2645
        %v2647 = vrot.slane %v2646, 2
        %v2649 = vsel %vm730, %v2628, 0
        %v2652 = vsel %vm730, %v2629, 0
        %v2655 = vsel %vm730, %v2630, 0
        %v2658 = vsel %vm730, %v2631, 0
        %v2661 = vsel %vm730, %v2632, 0
        %v2664 = vsel %vm730, %v2633, 0
        %v2667 = vsel %vm730, %v2634, 0
        %v2670 = vsel %vm730, %v2635, 0
        %v2673 = vsel %vm730, %v2636, 0
        %v2676 = vsel %vm730, %v2637, 0
        %v2679 = vsel %vm730, %v2638, 0
        %v2682 = vsel %vm730, %v2639, 0
        %v2685 = vsel %vm730, %v2640, 0
        %v2688 = vsel %vm730, %v2641, 0
        %v2691 = vsel %vm730, %v2642, 0
        %v2694 = vsel %vm730, %v2643, 0
        %v2697 = vsel %vm779, %v2647, 0
        %2699 = vmatpush.bf16.msra.mxu0 0
        %2700 = vmatpush.bf16.msra.mxu0 0
        %2701 = vmatpush.bf16.msra.mxu0 0
        %2702 = vmatpush.bf16.msra.mxu0 0
        %2703 = vmatpush.bf16.msra.mxu0 0
        %2704 = vmatpush.bf16.msra.mxu0 0
        %2705 = vmatpush.bf16.msra.mxu0 0
        %2706 = vmatpush.bf16.msra.mxu0 %v2697
        %2707 = vmatmul.bf16.gmra.mxu0 %v2649
        %v2708 = vpop.f32.mrf.mxu0
        %v2709 = vadd.f32 0.0, %v2708
        %v2710 = vpop.f32.mrf.mxu0
        %v2711 = vadd.f32 0.0, %v2710
        %2712 = vmatmul.bf16.gmra.mxu0 %v2652
        %v2713 = vpop.f32.mrf.mxu0
        %v2714 = vadd.f32 0.0, %v2713
        %v2715 = vpop.f32.mrf.mxu0
        %v2716 = vadd.f32 0.0, %v2715
        %2717 = vmatmul.bf16.gmra.mxu0 %v2655
        %v2718 = vpop.f32.mrf.mxu0
        %v2719 = vadd.f32 0.0, %v2718
        %v2720 = vpop.f32.mrf.mxu0
        %v2721 = vadd.f32 0.0, %v2720
        %2722 = vmatmul.bf16.gmra.mxu0 %v2658
        %v2723 = vpop.f32.mrf.mxu0
        %v2724 = vadd.f32 0.0, %v2723
        %v2725 = vpop.f32.mrf.mxu0
        %v2726 = vadd.f32 0.0, %v2725
        %2727 = vmatmul.bf16.gmra.mxu0 %v2661
        %v2728 = vpop.f32.mrf.mxu0
        %v2729 = vadd.f32 0.0, %v2728
        %v2730 = vpop.f32.mrf.mxu0
        %v2731 = vadd.f32 0.0, %v2730
        %2732 = vmatmul.bf16.gmra.mxu0 %v2664
        %v2733 = vpop.f32.mrf.mxu0
        %v2734 = vadd.f32 0.0, %v2733
        %v2735 = vpop.f32.mrf.mxu0
        %v2736 = vadd.f32 0.0, %v2735
        %2737 = vmatmul.bf16.gmra.mxu0 %v2667
        %v2738 = vpop.f32.mrf.mxu0
        %v2739 = vadd.f32 0.0, %v2738
        %v2740 = vpop.f32.mrf.mxu0
        %v2741 = vadd.f32 0.0, %v2740
        %2742 = vmatmul.bf16.gmra.mxu0 %v2670
        %v2743 = vpop.f32.mrf.mxu0
        %v2744 = vadd.f32 0.0, %v2743
        %v2745 = vpop.f32.mrf.mxu0
        %v2746 = vadd.f32 0.0, %v2745
        %2747 = vmatmul.bf16.gmra.mxu0 %v2673
        %v2748 = vpop.f32.mrf.mxu0
        %v2749 = vadd.f32 0.0, %v2748
        %v2750 = vpop.f32.mrf.mxu0
        %v2751 = vadd.f32 0.0, %v2750
        %2752 = vmatmul.bf16.gmra.mxu0 %v2676
        %v2753 = vpop.f32.mrf.mxu0
        %v2754 = vadd.f32 0.0, %v2753
        %v2755 = vpop.f32.mrf.mxu0
        %v2756 = vadd.f32 0.0, %v2755
        %2757 = vmatmul.bf16.gmra.mxu0 %v2679
        %v2758 = vpop.f32.mrf.mxu0
        %v2759 = vadd.f32 0.0, %v2758
        %v2760 = vpop.f32.mrf.mxu0
        %v2761 = vadd.f32 0.0, %v2760
        %2762 = vmatmul.bf16.gmra.mxu0 %v2682
        %v2763 = vpop.f32.mrf.mxu0
        %v2764 = vadd.f32 0.0, %v2763
        %v2765 = vpop.f32.mrf.mxu0
        %v2766 = vadd.f32 0.0, %v2765
        %2767 = vmatmul.bf16.gmra.mxu0 %v2685
        %v2768 = vpop.f32.mrf.mxu0
        %v2769 = vadd.f32 0.0, %v2768
        %v2770 = vpop.f32.mrf.mxu0
        %v2771 = vadd.f32 0.0, %v2770
        %2772 = vmatmul.bf16.gmra.mxu0 %v2688
        %v2773 = vpop.f32.mrf.mxu0
        %v2774 = vadd.f32 0.0, %v2773
        %v2775 = vpop.f32.mrf.mxu0
        %v2776 = vadd.f32 0.0, %v2775
        %2777 = vmatmul.bf16.gmra.mxu0 %v2691
        %v2778 = vpop.f32.mrf.mxu0
        %v2779 = vadd.f32 0.0, %v2778
        %v2780 = vpop.f32.mrf.mxu0
        %v2781 = vadd.f32 0.0, %v2780
        %2782 = vmatmul.bf16.gmra.mxu0 %v2694
        %v2783 = vpop.f32.mrf.mxu0
        %v2784 = vadd.f32 0.0, %v2783
        %v2785 = vpop.f32.mrf.mxu0
        %v2786 = vadd.f32 0.0, %v2785
        %2787 = vdwg.mxu0
        %v2788 = vadd.f32 %v2387, %v2709
        %v2789 = vadd.f32 %v2388, %v2711
        %v2790 = vadd.f32 %v2389, %v2714
        %v2791 = vadd.f32 %v2390, %v2716
        %v2792 = vadd.f32 %v2391, %v2719
        %v2793 = vadd.f32 %v2392, %v2721
        %v2794 = vadd.f32 %v2393, %v2724
        %v2795 = vadd.f32 %v2394, %v2726
        %v2796 = vadd.f32 %v2395, %v2729
        %v2797 = vadd.f32 %v2396, %v2731
        %v2798 = vadd.f32 %v2397, %v2734
        %v2799 = vadd.f32 %v2398, %v2736
        %v2800 = vadd.f32 %v2399, %v2739
        %v2801 = vadd.f32 %v2400, %v2741
        %v2802 = vadd.f32 %v2401, %v2744
        %v2803 = vadd.f32 %v2402, %v2746
        %v2804 = vadd.f32 %v2403, %v2749
        %v2805 = vadd.f32 %v2404, %v2751
        %v2806 = vadd.f32 %v2405, %v2754
        %v2807 = vadd.f32 %v2406, %v2756
        %v2808 = vadd.f32 %v2407, %v2759
        %v2809 = vadd.f32 %v2408, %v2761
        %v2810 = vadd.f32 %v2409, %v2764
        %v2811 = vadd.f32 %v2410, %v2766
        %v2812 = vadd.f32 %v2411, %v2769
        %v2813 = vadd.f32 %v2412, %v2771
        %v2814 = vadd.f32 %v2413, %v2774
        %v2815 = vadd.f32 %v2414, %v2776
        %v2816 = vadd.f32 %v2415, %v2779
        %v2817 = vadd.f32 %v2416, %v2781
        %v2818 = vadd.f32 %v2417, %v2784
        %v2819 = vadd.f32 %v2418, %v2786
        %s2820 = scalar_lea.vmem %s235, 24
        %v2821 = vld [vmem:[%s2820] sm:$0xf]
        %v2822 = vld [vmem:[%s2820 + $0x4] sm:$0xf]
        %v2823 = vld [vmem:[%s2820 + $0xc] sm:$0xf]
        %v2824 = vld [vmem:[%s2820 + $0x10] sm:$0xf]
        %v2825 = vld [vmem:[%s2820 + $0x18] sm:$0xf]
        %v2826 = vld [vmem:[%s2820 + $0x1c] sm:$0xf]
        %v2827 = vld [vmem:[%s2820 + $0x24] sm:$0xf]
        %v2828 = vld [vmem:[%s2820 + $0x28] sm:$0xf]
        %v2829 = vld [vmem:[%s2820 + $0x30] sm:$0xf]
        %v2830 = vld [vmem:[%s2820 + $0x34] sm:$0xf]
        %v2831 = vld [vmem:[%s2820 + $0x3c] sm:$0xf]
        %v2832 = vld [vmem:[%s2820 + $0x40] sm:$0xf]
        %v2833 = vld [vmem:[%s2820 + $0x48] sm:$0xf]
        %v2834 = vld [vmem:[%s2820 + $0x4c] sm:$0xf]
        %v2835 = vld [vmem:[%s2820 + $0x54] sm:$0xf]
        %v2836 = vld [vmem:[%s2820 + $0x58] sm:$0xf]
        %v2837 = vld [vmem:[%s2820 + $0x60] sm:$0xf]
        %v2838 = vld [vmem:[%s2820 + $0x64] sm:$0xf]
        %v2839 = vld [vmem:[%s2820 + $0x6c] sm:$0xf]
        %v2840 = vld [vmem:[%s2820 + $0x70] sm:$0xf]
        %v2841 = vld [vmem:[%s2820 + $0x78] sm:$0xf]
        %v2842 = vld [vmem:[%s2820 + $0x7c] sm:$0xf]
        %v2843 = vld [vmem:[%s2820 + $0x84] sm:$0xf]
        %v2844 = vld [vmem:[%s2820 + $0x88] sm:$0xf]
        %v2845 = vld [vmem:[%s2820 + $0x90] sm:$0xf]
        %v2846 = vld [vmem:[%s2820 + $0x94] sm:$0xf]
        %v2847 = vld [vmem:[%s2820 + $0x9c] sm:$0xf]
        %v2848 = vld [vmem:[%s2820 + $0xa0] sm:$0xf]
        %v2849 = vld [vmem:[%s2820 + $0xa8] sm:$0xf]
        %v2850 = vld [vmem:[%s2820 + $0xac] sm:$0xf]
        %v2851 = vld [vmem:[%s2820 + $0xb4] sm:$0xf]
        %v2852 = vld [vmem:[%s2820 + $0xb8] sm:$0xf]
        %v2853 = vld [vmem:[%s1 + $0xc] sm:$0x3]
        %v2886 = vunpack.c.l.b16 %v2821
        %v2887 = vunpack.c.l.b16 %v2822
        %v2888 = vunpack.c.l.b16 %v2823
        %v2889 = vunpack.c.l.b16 %v2824
        %v2890 = vunpack.c.l.b16 %v2825
        %v2891 = vunpack.c.l.b16 %v2826
        %v2892 = vunpack.c.l.b16 %v2827
        %v2893 = vunpack.c.l.b16 %v2828
        %v2894 = vunpack.c.l.b16 %v2829
        %v2895 = vunpack.c.l.b16 %v2830
        %v2896 = vunpack.c.l.b16 %v2831
        %v2897 = vunpack.c.l.b16 %v2832
        %v2898 = vunpack.c.l.b16 %v2833
        %v2899 = vunpack.c.l.b16 %v2834
        %v2900 = vunpack.c.l.b16 %v2835
        %v2901 = vunpack.c.l.b16 %v2836
        %v2902 = vunpack.c.l.b16 %v2837
        %v2903 = vunpack.c.l.b16 %v2838
        %v2904 = vunpack.c.l.b16 %v2839
        %v2905 = vunpack.c.l.b16 %v2840
        %v2906 = vunpack.c.l.b16 %v2841
        %v2907 = vunpack.c.l.b16 %v2842
        %v2908 = vunpack.c.l.b16 %v2843
        %v2909 = vunpack.c.l.b16 %v2844
        %v2910 = vunpack.c.l.b16 %v2845
        %v2911 = vunpack.c.l.b16 %v2846
        %v2912 = vunpack.c.l.b16 %v2847
        %v2913 = vunpack.c.l.b16 %v2848
        %v2914 = vunpack.c.l.b16 %v2849
        %v2915 = vunpack.c.l.b16 %v2850
        %v2916 = vunpack.c.l.b16 %v2851
        %v2917 = vunpack.c.l.b16 %v2852
        %v2918 = vpack.c.b16 %v2887, %v2886
        %v2919 = vpack.c.b16 %v2889, %v2888
        %v2920 = vpack.c.b16 %v2891, %v2890
        %v2921 = vpack.c.b16 %v2893, %v2892
        %v2922 = vpack.c.b16 %v2895, %v2894
        %v2923 = vpack.c.b16 %v2897, %v2896
        %v2924 = vpack.c.b16 %v2899, %v2898
        %v2925 = vpack.c.b16 %v2901, %v2900
        %v2926 = vpack.c.b16 %v2903, %v2902
        %v2927 = vpack.c.b16 %v2905, %v2904
        %v2928 = vpack.c.b16 %v2907, %v2906
        %v2929 = vpack.c.b16 %v2909, %v2908
        %v2930 = vpack.c.b16 %v2911, %v2910
        %v2931 = vpack.c.b16 %v2913, %v2912
        %v2932 = vpack.c.b16 %v2915, %v2914
        %v2933 = vpack.c.b16 %v2917, %v2916
        %v2935 = vsel %vm730, %v2918, 0
        %v2938 = vsel %vm730, %v2919, 0
        %v2941 = vsel %vm730, %v2920, 0
        %v2944 = vsel %vm730, %v2921, 0
        %v2947 = vsel %vm730, %v2922, 0
        %v2950 = vsel %vm730, %v2923, 0
        %v2953 = vsel %vm730, %v2924, 0
        %v2956 = vsel %vm730, %v2925, 0
        %v2959 = vsel %vm730, %v2926, 0
        %v2962 = vsel %vm730, %v2927, 0
        %v2965 = vsel %vm730, %v2928, 0
        %v2968 = vsel %vm730, %v2929, 0
        %v2971 = vsel %vm730, %v2930, 0
        %v2974 = vsel %vm730, %v2931, 0
        %v2977 = vsel %vm730, %v2932, 0
        %v2980 = vsel %vm730, %v2933, 0
        %v2983 = vsel %vm779, %v2853, 0
        %2985 = vmatpush.bf16.msra.mxu0 0
        %2986 = vmatpush.bf16.msra.mxu0 0
        %2987 = vmatpush.bf16.msra.mxu0 0
        %2988 = vmatpush.bf16.msra.mxu0 0
        %2989 = vmatpush.bf16.msra.mxu0 0
        %2990 = vmatpush.bf16.msra.mxu0 0
        %2991 = vmatpush.bf16.msra.mxu0 0
        %2992 = vmatpush.bf16.msra.mxu0 %v2983
        %2993 = vmatmul.bf16.gmra.mxu0 %v2935
        %v2994 = vpop.f32.mrf.mxu0
        %v2995 = vadd.f32 0.0, %v2994
        %v2996 = vpop.f32.mrf.mxu0
        %v2997 = vadd.f32 0.0, %v2996
        %2998 = vmatmul.bf16.gmra.mxu0 %v2938
        %v2999 = vpop.f32.mrf.mxu0
        %v3000 = vadd.f32 0.0, %v2999
        %v3001 = vpop.f32.mrf.mxu0
        %v3002 = vadd.f32 0.0, %v3001
        %3003 = vmatmul.bf16.gmra.mxu0 %v2941
        %v3004 = vpop.f32.mrf.mxu0
        %v3005 = vadd.f32 0.0, %v3004
        %v3006 = vpop.f32.mrf.mxu0
        %v3007 = vadd.f32 0.0, %v3006
        %3008 = vmatmul.bf16.gmra.mxu0 %v2944
        %v3009 = vpop.f32.mrf.mxu0
        %v3010 = vadd.f32 0.0, %v3009
        %v3011 = vpop.f32.mrf.mxu0
        %v3012 = vadd.f32 0.0, %v3011
        %3013 = vmatmul.bf16.gmra.mxu0 %v2947
        %v3014 = vpop.f32.mrf.mxu0
        %v3015 = vadd.f32 0.0, %v3014
        %v3016 = vpop.f32.mrf.mxu0
        %v3017 = vadd.f32 0.0, %v3016
        %3018 = vmatmul.bf16.gmra.mxu0 %v2950
        %v3019 = vpop.f32.mrf.mxu0
        %v3020 = vadd.f32 0.0, %v3019
        %v3021 = vpop.f32.mrf.mxu0
        %v3022 = vadd.f32 0.0, %v3021
        %3023 = vmatmul.bf16.gmra.mxu0 %v2953
        %v3024 = vpop.f32.mrf.mxu0
        %v3025 = vadd.f32 0.0, %v3024
        %v3026 = vpop.f32.mrf.mxu0
        %v3027 = vadd.f32 0.0, %v3026
        %3028 = vmatmul.bf16.gmra.mxu0 %v2956
        %v3029 = vpop.f32.mrf.mxu0
        %v3030 = vadd.f32 0.0, %v3029
        %v3031 = vpop.f32.mrf.mxu0
        %v3032 = vadd.f32 0.0, %v3031
        %3033 = vmatmul.bf16.gmra.mxu0 %v2959
        %v3034 = vpop.f32.mrf.mxu0
        %v3035 = vadd.f32 0.0, %v3034
        %v3036 = vpop.f32.mrf.mxu0
        %v3037 = vadd.f32 0.0, %v3036
        %3038 = vmatmul.bf16.gmra.mxu0 %v2962
        %v3039 = vpop.f32.mrf.mxu0
        %v3040 = vadd.f32 0.0, %v3039
        %v3041 = vpop.f32.mrf.mxu0
        %v3042 = vadd.f32 0.0, %v3041
        %3043 = vmatmul.bf16.gmra.mxu0 %v2965
        %v3044 = vpop.f32.mrf.mxu0
        %v3045 = vadd.f32 0.0, %v3044
        %v3046 = vpop.f32.mrf.mxu0
        %v3047 = vadd.f32 0.0, %v3046
        %3048 = vmatmul.bf16.gmra.mxu0 %v2968
        %v3049 = vpop.f32.mrf.mxu0
        %v3050 = vadd.f32 0.0, %v3049
        %v3051 = vpop.f32.mrf.mxu0
        %v3052 = vadd.f32 0.0, %v3051
        %3053 = vmatmul.bf16.gmra.mxu0 %v2971
        %v3054 = vpop.f32.mrf.mxu0
        %v3055 = vadd.f32 0.0, %v3054
        %v3056 = vpop.f32.mrf.mxu0
        %v3057 = vadd.f32 0.0, %v3056
        %3058 = vmatmul.bf16.gmra.mxu0 %v2974
        %v3059 = vpop.f32.mrf.mxu0
        %v3060 = vadd.f32 0.0, %v3059
        %v3061 = vpop.f32.mrf.mxu0
        %v3062 = vadd.f32 0.0, %v3061
        %3063 = vmatmul.bf16.gmra.mxu0 %v2977
        %v3064 = vpop.f32.mrf.mxu0
        %v3065 = vadd.f32 0.0, %v3064
        %v3066 = vpop.f32.mrf.mxu0
        %v3067 = vadd.f32 0.0, %v3066
        %3068 = vmatmul.bf16.gmra.mxu0 %v2980
        %v3069 = vpop.f32.mrf.mxu0
        %v3070 = vadd.f32 0.0, %v3069
        %v3071 = vpop.f32.mrf.mxu0
        %v3072 = vadd.f32 0.0, %v3071
        %3073 = vdwg.mxu0
        %v3074 = vadd.f32 %v2788, %v2995
        %v3075 = vadd.f32 %v2789, %v2997
        %v3076 = vadd.f32 %v2790, %v3000
        %v3077 = vadd.f32 %v2791, %v3002
        %v3078 = vadd.f32 %v2792, %v3005
        %v3079 = vadd.f32 %v2793, %v3007
        %v3080 = vadd.f32 %v2794, %v3010
        %v3081 = vadd.f32 %v2795, %v3012
        %v3082 = vadd.f32 %v2796, %v3015
        %v3083 = vadd.f32 %v2797, %v3017
        %v3084 = vadd.f32 %v2798, %v3020
        %v3085 = vadd.f32 %v2799, %v3022
        %v3086 = vadd.f32 %v2800, %v3025
        %v3087 = vadd.f32 %v2801, %v3027
        %v3088 = vadd.f32 %v2802, %v3030
        %v3089 = vadd.f32 %v2803, %v3032
        %v3090 = vadd.f32 %v2804, %v3035
        %v3091 = vadd.f32 %v2805, %v3037
        %v3092 = vadd.f32 %v2806, %v3040
        %v3093 = vadd.f32 %v2807, %v3042
        %v3094 = vadd.f32 %v2808, %v3045
        %v3095 = vadd.f32 %v2809, %v3047
        %v3096 = vadd.f32 %v2810, %v3050
        %v3097 = vadd.f32 %v2811, %v3052
        %v3098 = vadd.f32 %v2812, %v3055
        %v3099 = vadd.f32 %v2813, %v3057
        %v3100 = vadd.f32 %v2814, %v3060
        %v3101 = vadd.f32 %v2815, %v3062
        %v3102 = vadd.f32 %v2816, %v3065
        %v3103 = vadd.f32 %v2817, %v3067
        %v3104 = vadd.f32 %v2818, %v3070
        %v3105 = vadd.f32 %v2819, %v3072
        %v3106 = vld [vmem:[%s2820] sm:$0xf]
        %v3107 = vld [vmem:[%s2820 + $0x4] sm:$0xf]
        %v3108 = vld [vmem:[%s2820 + $0x8] sm:$0x1]
        %v3109 = vld [vmem:[%s2820 + $0xc] sm:$0xf]
        %v3110 = vld [vmem:[%s2820 + $0x10] sm:$0xf]
        %v3111 = vld [vmem:[%s2820 + $0x14] sm:$0x1]
        %v3112 = vld [vmem:[%s2820 + $0x18] sm:$0xf]
        %v3113 = vld [vmem:[%s2820 + $0x1c] sm:$0xf]
        %v3114 = vld [vmem:[%s2820 + $0x20] sm:$0x1]
        %v3115 = vld [vmem:[%s2820 + $0x24] sm:$0xf]
        %v3116 = vld [vmem:[%s2820 + $0x28] sm:$0xf]
        %v3117 = vld [vmem:[%s2820 + $0x2c] sm:$0x1]
        %v3118 = vld [vmem:[%s2820 + $0x30] sm:$0xf]
        %v3119 = vld [vmem:[%s2820 + $0x34] sm:$0xf]
        %v3120 = vld [vmem:[%s2820 + $0x38] sm:$0x1]
        %v3121 = vld [vmem:[%s2820 + $0x3c] sm:$0xf]
        %v3122 = vld [vmem:[%s2820 + $0x40] sm:$0xf]
        %v3123 = vld [vmem:[%s2820 + $0x44] sm:$0x1]
        %v3124 = vld [vmem:[%s2820 + $0x48] sm:$0xf]
        %v3125 = vld [vmem:[%s2820 + $0x4c] sm:$0xf]
        %v3126 = vld [vmem:[%s2820 + $0x50] sm:$0x1]
        %v3127 = vld [vmem:[%s2820 + $0x54] sm:$0xf]
        %v3128 = vld [vmem:[%s2820 + $0x58] sm:$0xf]
        %v3129 = vld [vmem:[%s2820 + $0x5c] sm:$0x1]
        %v3130 = vld [vmem:[%s2820 + $0x60] sm:$0xf]
        %v3131 = vld [vmem:[%s2820 + $0x64] sm:$0xf]
        %v3132 = vld [vmem:[%s2820 + $0x68] sm:$0x1]
        %v3133 = vld [vmem:[%s2820 + $0x6c] sm:$0xf]
        %v3134 = vld [vmem:[%s2820 + $0x70] sm:$0xf]
        %v3135 = vld [vmem:[%s2820 + $0x74] sm:$0x1]
        %v3136 = vld [vmem:[%s2820 + $0x78] sm:$0xf]
        %v3137 = vld [vmem:[%s2820 + $0x7c] sm:$0xf]
        %v3138 = vld [vmem:[%s2820 + $0x80] sm:$0x1]
        %v3139 = vld [vmem:[%s2820 + $0x84] sm:$0xf]
        %v3140 = vld [vmem:[%s2820 + $0x88] sm:$0xf]
        %v3141 = vld [vmem:[%s2820 + $0x8c] sm:$0x1]
        %v3142 = vld [vmem:[%s2820 + $0x90] sm:$0xf]
        %v3143 = vld [vmem:[%s2820 + $0x94] sm:$0xf]
        %v3144 = vld [vmem:[%s2820 + $0x98] sm:$0x1]
        %v3145 = vld [vmem:[%s2820 + $0x9c] sm:$0xf]
        %v3146 = vld [vmem:[%s2820 + $0xa0] sm:$0xf]
        %v3147 = vld [vmem:[%s2820 + $0xa4] sm:$0x1]
        %v3148 = vld [vmem:[%s2820 + $0xa8] sm:$0xf]
        %v3149 = vld [vmem:[%s2820 + $0xac] sm:$0xf]
        %v3150 = vld [vmem:[%s2820 + $0xb0] sm:$0x1]
        %v3151 = vld [vmem:[%s2820 + $0xb4] sm:$0xf]
        %v3152 = vld [vmem:[%s2820 + $0xb8] sm:$0xf]
        %v3153 = vld [vmem:[%s2820 + $0xbc] sm:$0x1]
        %v3155 = vshrl.u32 %v3106, 16
        %v3157 = vrot.slane %v3155, 4
        %v3158 = vshll.u32 %v3106, 16
        %v3160 = vrot.slane %v3158, 5
        %v3161 = vor.u32 %v3157, %v3160
        %v3162 = vrot.slane %v3161, 4
        %v3164 = vshll.u32 %v3107, 16
        %v3166 = vrot.slane %v3164, 5
        %v3167 = vsel %vm292, %v3162, %v3166
        %v3168 = vshrl.u32 %v3107, 16
        %v3170 = vrot.slane %v3168, 4
        %v3171 = vor.u32 %v3170, %v3166
        %v3172 = vrot.slane %v3171, 4
        %v3174 = vshll.u32 %v3108, 16
        %v3176 = vrot.slane %v3174, 5
        %v3177 = vsel %vm292, %v3172, %v3176
        %v3179 = vshrl.u32 %v3109, 16
        %v3181 = vrot.slane %v3179, 4
        %v3182 = vshll.u32 %v3109, 16
        %v3184 = vrot.slane %v3182, 5
        %v3185 = vor.u32 %v3181, %v3184
        %v3186 = vrot.slane %v3185, 4
        %v3188 = vshll.u32 %v3110, 16
        %v3190 = vrot.slane %v3188, 5
        %v3191 = vsel %vm292, %v3186, %v3190
        %v3192 = vshrl.u32 %v3110, 16
        %v3194 = vrot.slane %v3192, 4
        %v3195 = vor.u32 %v3194, %v3190
        %v3196 = vrot.slane %v3195, 4
        %v3198 = vshll.u32 %v3111, 16
        %v3200 = vrot.slane %v3198, 5
        %v3201 = vsel %vm292, %v3196, %v3200
        %v3203 = vshrl.u32 %v3112, 16
        %v3205 = vrot.slane %v3203, 4
        %v3206 = vshll.u32 %v3112, 16
        %v3208 = vrot.slane %v3206, 5
        %v3209 = vor.u32 %v3205, %v3208
        %v3210 = vrot.slane %v3209, 4
        %v3212 = vshll.u32 %v3113, 16
        %v3214 = vrot.slane %v3212, 5
        %v3215 = vsel %vm292, %v3210, %v3214
        %v3216 = vshrl.u32 %v3113, 16
        %v3218 = vrot.slane %v3216, 4
        %v3219 = vor.u32 %v3218, %v3214
        %v3220 = vrot.slane %v3219, 4
        %v3222 = vshll.u32 %v3114, 16
        %v3224 = vrot.slane %v3222, 5
        %v3225 = vsel %vm292, %v3220, %v3224
        %v3227 = vshrl.u32 %v3115, 16
        %v3229 = vrot.slane %v3227, 4
        %v3230 = vshll.u32 %v3115, 16
        %v3232 = vrot.slane %v3230, 5
        %v3233 = vor.u32 %v3229, %v3232
        %v3234 = vrot.slane %v3233, 4
        %v3236 = vshll.u32 %v3116, 16
        %v3238 = vrot.slane %v3236, 5
        %v3239 = vsel %vm292, %v3234, %v3238
        %v3240 = vshrl.u32 %v3116, 16
        %v3242 = vrot.slane %v3240, 4
        %v3243 = vor.u32 %v3242, %v3238
        %v3244 = vrot.slane %v3243, 4
        %v3246 = vshll.u32 %v3117, 16
        %v3248 = vrot.slane %v3246, 5
        %v3249 = vsel %vm292, %v3244, %v3248
        %v3251 = vshrl.u32 %v3118, 16
        %v3253 = vrot.slane %v3251, 4
        %v3254 = vshll.u32 %v3118, 16
        %v3256 = vrot.slane %v3254, 5
        %v3257 = vor.u32 %v3253, %v3256
        %v3258 = vrot.slane %v3257, 4
        %v3260 = vshll.u32 %v3119, 16
        %v3262 = vrot.slane %v3260, 5
        %v3263 = vsel %vm292, %v3258, %v3262
        %v3264 = vshrl.u32 %v3119, 16
        %v3266 = vrot.slane %v3264, 4
        %v3267 = vor.u32 %v3266, %v3262
        %v3268 = vrot.slane %v3267, 4
        %v3270 = vshll.u32 %v3120, 16
        %v3272 = vrot.slane %v3270, 5
        %v3273 = vsel %vm292, %v3268, %v3272
        %v3275 = vshrl.u32 %v3121, 16
        %v3277 = vrot.slane %v3275, 4
        %v3278 = vshll.u32 %v3121, 16
        %v3280 = vrot.slane %v3278, 5
        %v3281 = vor.u32 %v3277, %v3280
        %v3282 = vrot.slane %v3281, 4
        %v3284 = vshll.u32 %v3122, 16
        %v3286 = vrot.slane %v3284, 5
        %v3287 = vsel %vm292, %v3282, %v3286
        %v3288 = vshrl.u32 %v3122, 16
        %v3290 = vrot.slane %v3288, 4
        %v3291 = vor.u32 %v3290, %v3286
        %v3292 = vrot.slane %v3291, 4
        %v3294 = vshll.u32 %v3123, 16
        %v3296 = vrot.slane %v3294, 5
        %v3297 = vsel %vm292, %v3292, %v3296
        %v3299 = vshrl.u32 %v3124, 16
        %v3301 = vrot.slane %v3299, 4
        %v3302 = vshll.u32 %v3124, 16
        %v3304 = vrot.slane %v3302, 5
        %v3305 = vor.u32 %v3301, %v3304
        %v3306 = vrot.slane %v3305, 4
        %v3308 = vshll.u32 %v3125, 16
        %v3310 = vrot.slane %v3308, 5
        %v3311 = vsel %vm292, %v3306, %v3310
        %v3312 = vshrl.u32 %v3125, 16
        %v3314 = vrot.slane %v3312, 4
        %v3315 = vor.u32 %v3314, %v3310
        %v3316 = vrot.slane %v3315, 4
        %v3318 = vshll.u32 %v3126, 16
        %v3320 = vrot.slane %v3318, 5
        %v3321 = vsel %vm292, %v3316, %v3320
        %v3323 = vshrl.u32 %v3127, 16
        %v3325 = vrot.slane %v3323, 4
        %v3326 = vshll.u32 %v3127, 16
        %v3328 = vrot.slane %v3326, 5
        %v3329 = vor.u32 %v3325, %v3328
        %v3330 = vrot.slane %v3329, 4
        %v3332 = vshll.u32 %v3128, 16
        %v3334 = vrot.slane %v3332, 5
        %v3335 = vsel %vm292, %v3330, %v3334
        %v3336 = vshrl.u32 %v3128, 16
        %v3338 = vrot.slane %v3336, 4
        %v3339 = vor.u32 %v3338, %v3334
        %v3340 = vrot.slane %v3339, 4
        %v3342 = vshll.u32 %v3129, 16
        %v3344 = vrot.slane %v3342, 5
        %v3345 = vsel %vm292, %v3340, %v3344
        %v3347 = vshrl.u32 %v3130, 16
        %v3349 = vrot.slane %v3347, 4
        %v3350 = vshll.u32 %v3130, 16
        %v3352 = vrot.slane %v3350, 5
        %v3353 = vor.u32 %v3349, %v3352
        %v3354 = vrot.slane %v3353, 4
        %v3356 = vshll.u32 %v3131, 16
        %v3358 = vrot.slane %v3356, 5
        %v3359 = vsel %vm292, %v3354, %v3358
        %v3360 = vshrl.u32 %v3131, 16
        %v3362 = vrot.slane %v3360, 4
        %v3363 = vor.u32 %v3362, %v3358
        %v3364 = vrot.slane %v3363, 4
        %v3366 = vshll.u32 %v3132, 16
        %v3368 = vrot.slane %v3366, 5
        %v3369 = vsel %vm292, %v3364, %v3368
        %v3371 = vshrl.u32 %v3133, 16
        %v3373 = vrot.slane %v3371, 4
        %v3374 = vshll.u32 %v3133, 16
        %v3376 = vrot.slane %v3374, 5
        %v3377 = vor.u32 %v3373, %v3376
        %v3378 = vrot.slane %v3377, 4
        %v3380 = vshll.u32 %v3134, 16
        %v3382 = vrot.slane %v3380, 5
        %v3383 = vsel %vm292, %v3378, %v3382
        %v3384 = vshrl.u32 %v3134, 16
        %v3386 = vrot.slane %v3384, 4
        %v3387 = vor.u32 %v3386, %v3382
        %v3388 = vrot.slane %v3387, 4
        %v3390 = vshll.u32 %v3135, 16
        %v3392 = vrot.slane %v3390, 5
        %v3393 = vsel %vm292, %v3388, %v3392
        %v3395 = vshrl.u32 %v3136, 16
        %v3397 = vrot.slane %v3395, 4
        %v3398 = vshll.u32 %v3136, 16
        %v3400 = vrot.slane %v3398, 5
        %v3401 = vor.u32 %v3397, %v3400
        %v3402 = vrot.slane %v3401, 4
        %v3404 = vshll.u32 %v3137, 16
        %v3406 = vrot.slane %v3404, 5
        %v3407 = vsel %vm292, %v3402, %v3406
        %v3408 = vshrl.u32 %v3137, 16
        %v3410 = vrot.slane %v3408, 4
        %v3411 = vor.u32 %v3410, %v3406
        %v3412 = vrot.slane %v3411, 4
        %v3414 = vshll.u32 %v3138, 16
        %v3416 = vrot.slane %v3414, 5
        %v3417 = vsel %vm292, %v3412, %v3416
        %v3419 = vshrl.u32 %v3139, 16
        %v3421 = vrot.slane %v3419, 4
        %v3422 = vshll.u32 %v3139, 16
        %v3424 = vrot.slane %v3422, 5
        %v3425 = vor.u32 %v3421, %v3424
        %v3426 = vrot.slane %v3425, 4
        %v3428 = vshll.u32 %v3140, 16
        %v3430 = vrot.slane %v3428, 5
        %v3431 = vsel %vm292, %v3426, %v3430
        %v3432 = vshrl.u32 %v3140, 16
        %v3434 = vrot.slane %v3432, 4
        %v3435 = vor.u32 %v3434, %v3430
        %v3436 = vrot.slane %v3435, 4
        %v3438 = vshll.u32 %v3141, 16
        %v3440 = vrot.slane %v3438, 5
        %v3441 = vsel %vm292, %v3436, %v3440
        %v3443 = vshrl.u32 %v3142, 16
        %v3445 = vrot.slane %v3443, 4
        %v3446 = vshll.u32 %v3142, 16
        %v3448 = vrot.slane %v3446, 5
        %v3449 = vor.u32 %v3445, %v3448
        %v3450 = vrot.slane %v3449, 4
        %v3452 = vshll.u32 %v3143, 16
        %v3454 = vrot.slane %v3452, 5
        %v3455 = vsel %vm292, %v3450, %v3454
        %v3456 = vshrl.u32 %v3143, 16
        %v3458 = vrot.slane %v3456, 4
        %v3459 = vor.u32 %v3458, %v3454
        %v3460 = vrot.slane %v3459, 4
        %v3462 = vshll.u32 %v3144, 16
        %v3464 = vrot.slane %v3462, 5
        %v3465 = vsel %vm292, %v3460, %v3464
        %v3467 = vshrl.u32 %v3145, 16
        %v3469 = vrot.slane %v3467, 4
        %v3470 = vshll.u32 %v3145, 16
        %v3472 = vrot.slane %v3470, 5
        %v3473 = vor.u32 %v3469, %v3472
        %v3474 = vrot.slane %v3473, 4
        %v3476 = vshll.u32 %v3146, 16
        %v3478 = vrot.slane %v3476, 5
        %v3479 = vsel %vm292, %v3474, %v3478
        %v3480 = vshrl.u32 %v3146, 16
        %v3482 = vrot.slane %v3480, 4
        %v3483 = vor.u32 %v3482, %v3478
        %v3484 = vrot.slane %v3483, 4
        %v3486 = vshll.u32 %v3147, 16
        %v3488 = vrot.slane %v3486, 5
        %v3489 = vsel %vm292, %v3484, %v3488
        %v3491 = vshrl.u32 %v3148, 16
        %v3493 = vrot.slane %v3491, 4
        %v3494 = vshll.u32 %v3148, 16
        %v3496 = vrot.slane %v3494, 5
        %v3497 = vor.u32 %v3493, %v3496
        %v3498 = vrot.slane %v3497, 4
        %v3500 = vshll.u32 %v3149, 16
        %v3502 = vrot.slane %v3500, 5
        %v3503 = vsel %vm292, %v3498, %v3502
        %v3504 = vshrl.u32 %v3149, 16
        %v3506 = vrot.slane %v3504, 4
        %v3507 = vor.u32 %v3506, %v3502
        %v3508 = vrot.slane %v3507, 4
        %v3510 = vshll.u32 %v3150, 16
        %v3512 = vrot.slane %v3510, 5
        %v3513 = vsel %vm292, %v3508, %v3512
        %v3515 = vshrl.u32 %v3151, 16
        %v3517 = vrot.slane %v3515, 4
        %v3518 = vshll.u32 %v3151, 16
        %v3520 = vrot.slane %v3518, 5
        %v3521 = vor.u32 %v3517, %v3520
        %v3522 = vrot.slane %v3521, 4
        %v3524 = vshll.u32 %v3152, 16
        %v3526 = vrot.slane %v3524, 5
        %v3527 = vsel %vm292, %v3522, %v3526
        %v3528 = vshrl.u32 %v3152, 16
        %v3530 = vrot.slane %v3528, 4
        %v3531 = vor.u32 %v3530, %v3526
        %v3532 = vrot.slane %v3531, 4
        %v3534 = vshll.u32 %v3153, 16
        %v3536 = vrot.slane %v3534, 5
        %v3537 = vsel %vm292, %v3532, %v3536
        %v3538 = vld [vmem:[%s1 + $0xc] sm:$0xc]
        %v3539 = vunpack.c.l.b16 %v3167
        %v3540 = vunpack.c.l.b16 %v3177
        %v3541 = vunpack.c.l.b16 %v3191
        %v3542 = vunpack.c.l.b16 %v3201
        %v3543 = vunpack.c.l.b16 %v3215
        %v3544 = vunpack.c.l.b16 %v3225
        %v3545 = vunpack.c.l.b16 %v3239
        %v3546 = vunpack.c.l.b16 %v3249
        %v3547 = vunpack.c.l.b16 %v3263
        %v3548 = vunpack.c.l.b16 %v3273
        %v3549 = vunpack.c.l.b16 %v3287
        %v3550 = vunpack.c.l.b16 %v3297
        %v3551 = vunpack.c.l.b16 %v3311
        %v3552 = vunpack.c.l.b16 %v3321
        %v3553 = vunpack.c.l.b16 %v3335
        %v3554 = vunpack.c.l.b16 %v3345
        %v3555 = vunpack.c.l.b16 %v3359
        %v3556 = vunpack.c.l.b16 %v3369
        %v3557 = vunpack.c.l.b16 %v3383
        %v3558 = vunpack.c.l.b16 %v3393
        %v3559 = vunpack.c.l.b16 %v3407
        %v3560 = vunpack.c.l.b16 %v3417
        %v3561 = vunpack.c.l.b16 %v3431
        %v3562 = vunpack.c.l.b16 %v3441
        %v3563 = vunpack.c.l.b16 %v3455
        %v3564 = vunpack.c.l.b16 %v3465
        %v3565 = vunpack.c.l.b16 %v3479
        %v3566 = vunpack.c.l.b16 %v3489
        %v3567 = vunpack.c.l.b16 %v3503
        %v3568 = vunpack.c.l.b16 %v3513
        %v3569 = vunpack.c.l.b16 %v3527
        %v3570 = vunpack.c.l.b16 %v3537
        %v3571 = vpack.c.b16 %v3540, %v3539
        %v3572 = vpack.c.b16 %v3542, %v3541
        %v3573 = vpack.c.b16 %v3544, %v3543
        %v3574 = vpack.c.b16 %v3546, %v3545
        %v3575 = vpack.c.b16 %v3548, %v3547
        %v3576 = vpack.c.b16 %v3550, %v3549
        %v3577 = vpack.c.b16 %v3552, %v3551
        %v3578 = vpack.c.b16 %v3554, %v3553
        %v3579 = vpack.c.b16 %v3556, %v3555
        %v3580 = vpack.c.b16 %v3558, %v3557
        %v3581 = vpack.c.b16 %v3560, %v3559
        %v3582 = vpack.c.b16 %v3562, %v3561
        %v3583 = vpack.c.b16 %v3564, %v3563
        %v3584 = vpack.c.b16 %v3566, %v3565
        %v3585 = vpack.c.b16 %v3568, %v3567
        %v3586 = vpack.c.b16 %v3570, %v3569
        %v3588 = vunpack.c.l.b16 %v3538
        %v3589 = vpack.c.b16 %v3588, %v3588
        %v3590 = vrot.slane %v3589, 2
        %v3592 = vsel %vm730, %v3571, 0
        %v3595 = vsel %vm730, %v3572, 0
        %v3598 = vsel %vm730, %v3573, 0
        %v3601 = vsel %vm730, %v3574, 0
        %v3604 = vsel %vm730, %v3575, 0
        %v3607 = vsel %vm730, %v3576, 0
        %v3610 = vsel %vm730, %v3577, 0
        %v3613 = vsel %vm730, %v3578, 0
        %v3616 = vsel %vm730, %v3579, 0
        %v3619 = vsel %vm730, %v3580, 0
        %v3622 = vsel %vm730, %v3581, 0
        %v3625 = vsel %vm730, %v3582, 0
        %v3628 = vsel %vm730, %v3583, 0
        %v3631 = vsel %vm730, %v3584, 0
        %v3634 = vsel %vm730, %v3585, 0
        %v3637 = vsel %vm730, %v3586, 0
        %v3640 = vsel %vm779, %v3590, 0
        %3642 = vmatpush.bf16.msra.mxu0 0
        %3643 = vmatpush.bf16.msra.mxu0 0
        %3644 = vmatpush.bf16.msra.mxu0 0
        %3645 = vmatpush.bf16.msra.mxu0 0
        %3646 = vmatpush.bf16.msra.mxu0 0
        %3647 = vmatpush.bf16.msra.mxu0 0
        %3648 = vmatpush.bf16.msra.mxu0 0
        %3649 = vmatpush.bf16.msra.mxu0 %v3640
        %3650 = vmatmul.bf16.gmra.mxu0 %v3592
        %v3651 = vpop.f32.mrf.mxu0
        %v3652 = vadd.f32 0.0, %v3651
        %v3653 = vpop.f32.mrf.mxu0
        %v3654 = vadd.f32 0.0, %v3653
        %3655 = vmatmul.bf16.gmra.mxu0 %v3595
        %v3656 = vpop.f32.mrf.mxu0
        %v3657 = vadd.f32 0.0, %v3656
        %v3658 = vpop.f32.mrf.mxu0
        %v3659 = vadd.f32 0.0, %v3658
        %3660 = vmatmul.bf16.gmra.mxu0 %v3598
        %v3661 = vpop.f32.mrf.mxu0
        %v3662 = vadd.f32 0.0, %v3661
        %v3663 = vpop.f32.mrf.mxu0
        %v3664 = vadd.f32 0.0, %v3663
        %3665 = vmatmul.bf16.gmra.mxu0 %v3601
        %v3666 = vpop.f32.mrf.mxu0
        %v3667 = vadd.f32 0.0, %v3666
        %v3668 = vpop.f32.mrf.mxu0
        %v3669 = vadd.f32 0.0, %v3668
        %3670 = vmatmul.bf16.gmra.mxu0 %v3604
        %v3671 = vpop.f32.mrf.mxu0
        %v3672 = vadd.f32 0.0, %v3671
        %v3673 = vpop.f32.mrf.mxu0
        %v3674 = vadd.f32 0.0, %v3673
        %3675 = vmatmul.bf16.gmra.mxu0 %v3607
        %v3676 = vpop.f32.mrf.mxu0
        %v3677 = vadd.f32 0.0, %v3676
        %v3678 = vpop.f32.mrf.mxu0
        %v3679 = vadd.f32 0.0, %v3678
        %3680 = vmatmul.bf16.gmra.mxu0 %v3610
        %v3681 = vpop.f32.mrf.mxu0
        %v3682 = vadd.f32 0.0, %v3681
        %v3683 = vpop.f32.mrf.mxu0
        %v3684 = vadd.f32 0.0, %v3683
        %3685 = vmatmul.bf16.gmra.mxu0 %v3613
        %v3686 = vpop.f32.mrf.mxu0
        %v3687 = vadd.f32 0.0, %v3686
        %v3688 = vpop.f32.mrf.mxu0
        %v3689 = vadd.f32 0.0, %v3688
        %3690 = vmatmul.bf16.gmra.mxu0 %v3616
        %v3691 = vpop.f32.mrf.mxu0
        %v3692 = vadd.f32 0.0, %v3691
        %v3693 = vpop.f32.mrf.mxu0
        %v3694 = vadd.f32 0.0, %v3693
        %3695 = vmatmul.bf16.gmra.mxu0 %v3619
        %v3696 = vpop.f32.mrf.mxu0
        %v3697 = vadd.f32 0.0, %v3696
        %v3698 = vpop.f32.mrf.mxu0
        %v3699 = vadd.f32 0.0, %v3698
        %3700 = vmatmul.bf16.gmra.mxu0 %v3622
        %v3701 = vpop.f32.mrf.mxu0
        %v3702 = vadd.f32 0.0, %v3701
        %v3703 = vpop.f32.mrf.mxu0
        %v3704 = vadd.f32 0.0, %v3703
        %3705 = vmatmul.bf16.gmra.mxu0 %v3625
        %v3706 = vpop.f32.mrf.mxu0
        %v3707 = vadd.f32 0.0, %v3706
        %v3708 = vpop.f32.mrf.mxu0
        %v3709 = vadd.f32 0.0, %v3708
        %3710 = vmatmul.bf16.gmra.mxu0 %v3628
        %v3711 = vpop.f32.mrf.mxu0
        %v3712 = vadd.f32 0.0, %v3711
        %v3713 = vpop.f32.mrf.mxu0
        %v3714 = vadd.f32 0.0, %v3713
        %3715 = vmatmul.bf16.gmra.mxu0 %v3631
        %v3716 = vpop.f32.mrf.mxu0
        %v3717 = vadd.f32 0.0, %v3716
        %v3718 = vpop.f32.mrf.mxu0
        %v3719 = vadd.f32 0.0, %v3718
        %3720 = vmatmul.bf16.gmra.mxu0 %v3634
        %v3721 = vpop.f32.mrf.mxu0
        %v3722 = vadd.f32 0.0, %v3721
        %v3723 = vpop.f32.mrf.mxu0
        %v3724 = vadd.f32 0.0, %v3723
        %3725 = vmatmul.bf16.gmra.mxu0 %v3637
        %v3726 = vpop.f32.mrf.mxu0
        %v3727 = vadd.f32 0.0, %v3726
        %v3728 = vpop.f32.mrf.mxu0
        %v3729 = vadd.f32 0.0, %v3728
        %3730 = vdwg.mxu0
        %v3731 = vadd.f32 %v3074, %v3652
        %v3732 = vadd.f32 %v3075, %v3654
        %v3733 = vadd.f32 %v3076, %v3657
        %v3734 = vadd.f32 %v3077, %v3659
        %v3735 = vadd.f32 %v3078, %v3662
        %v3736 = vadd.f32 %v3079, %v3664
        %v3737 = vadd.f32 %v3080, %v3667
        %v3738 = vadd.f32 %v3081, %v3669
        %v3739 = vadd.f32 %v3082, %v3672
        %v3740 = vadd.f32 %v3083, %v3674
        %v3741 = vadd.f32 %v3084, %v3677
        %v3742 = vadd.f32 %v3085, %v3679
        %v3743 = vadd.f32 %v3086, %v3682
        %v3744 = vadd.f32 %v3087, %v3684
        %v3745 = vadd.f32 %v3088, %v3687
        %v3746 = vadd.f32 %v3089, %v3689
        %v3747 = vadd.f32 %v3090, %v3692
        %v3748 = vadd.f32 %v3091, %v3694
        %v3749 = vadd.f32 %v3092, %v3697
        %v3750 = vadd.f32 %v3093, %v3699
        %v3751 = vadd.f32 %v3094, %v3702
        %v3752 = vadd.f32 %v3095, %v3704
        %v3753 = vadd.f32 %v3096, %v3707
        %v3754 = vadd.f32 %v3097, %v3709
        %v3755 = vadd.f32 %v3098, %v3712
        %v3756 = vadd.f32 %v3099, %v3714
        %v3757 = vadd.f32 %v3100, %v3717
        %v3758 = vadd.f32 %v3101, %v3719
        %v3759 = vadd.f32 %v3102, %v3722
        %v3760 = vadd.f32 %v3103, %v3724
        %v3761 = vadd.f32 %v3104, %v3727
        %v3762 = vadd.f32 %v3105, %v3729
        %v3763 = vld [vmem:[%s2820] sm:$0xe]
        %v3764 = vld [vmem:[%s2820 + $0xc] sm:$0xe]
        %v3765 = vld [vmem:[%s2820 + $0x18] sm:$0xe]
        %v3766 = vld [vmem:[%s2820 + $0x24] sm:$0xe]
        %v3767 = vld [vmem:[%s2820 + $0x30] sm:$0xe]
        %v3768 = vld [vmem:[%s2820 + $0x3c] sm:$0xe]
        %v3769 = vld [vmem:[%s2820 + $0x48] sm:$0xe]
        %v3770 = vld [vmem:[%s2820 + $0x54] sm:$0xe]
        %v3771 = vld [vmem:[%s2820 + $0x60] sm:$0xe]
        %v3772 = vld [vmem:[%s2820 + $0x6c] sm:$0xe]
        %v3773 = vld [vmem:[%s2820 + $0x78] sm:$0xe]
        %v3774 = vld [vmem:[%s2820 + $0x84] sm:$0xe]
        %v3775 = vld [vmem:[%s2820 + $0x90] sm:$0xe]
        %v3776 = vld [vmem:[%s2820 + $0x9c] sm:$0xe]
        %v3777 = vld [vmem:[%s2820 + $0xa8] sm:$0xe]
        %v3778 = vld [vmem:[%s2820 + $0xb4] sm:$0xe]
        %v3827 = vrot.slane %v3763, 5
        %v3828 = vrot.slane %v3827, 4
        %v3829 = vrot.slane %v3107, 5
        %v3830 = vsel %vm1142, %v3828, %v3829
        %v3831 = vrot.slane %v3829, 4
        %v3832 = vrot.slane %v3108, 5
        %v3833 = vsel %vm1142, %v3831, %v3832
        %v3834 = vrot.slane %v3764, 5
        %v3835 = vrot.slane %v3834, 4
        %v3836 = vrot.slane %v3110, 5
        %v3837 = vsel %vm1142, %v3835, %v3836
        %v3838 = vrot.slane %v3836, 4
        %v3839 = vrot.slane %v3111, 5
        %v3840 = vsel %vm1142, %v3838, %v3839
        %v3841 = vrot.slane %v3765, 5
        %v3842 = vrot.slane %v3841, 4
        %v3843 = vrot.slane %v3113, 5
        %v3844 = vsel %vm1142, %v3842, %v3843
        %v3845 = vrot.slane %v3843, 4
        %v3846 = vrot.slane %v3114, 5
        %v3847 = vsel %vm1142, %v3845, %v3846
        %v3848 = vrot.slane %v3766, 5
        %v3849 = vrot.slane %v3848, 4
        %v3850 = vrot.slane %v3116, 5
        %v3851 = vsel %vm1142, %v3849, %v3850
        %v3852 = vrot.slane %v3850, 4
        %v3853 = vrot.slane %v3117, 5
        %v3854 = vsel %vm1142, %v3852, %v3853
        %v3855 = vrot.slane %v3767, 5
        %v3856 = vrot.slane %v3855, 4
        %v3857 = vrot.slane %v3119, 5
        %v3858 = vsel %vm1142, %v3856, %v3857
        %v3859 = vrot.slane %v3857, 4
        %v3860 = vrot.slane %v3120, 5
        %v3861 = vsel %vm1142, %v3859, %v3860
        %v3862 = vrot.slane %v3768, 5
        %v3863 = vrot.slane %v3862, 4
        %v3864 = vrot.slane %v3122, 5
        %v3865 = vsel %vm1142, %v3863, %v3864
        %v3866 = vrot.slane %v3864, 4
        %v3867 = vrot.slane %v3123, 5
        %v3868 = vsel %vm1142, %v3866, %v3867
        %v3869 = vrot.slane %v3769, 5
        %v3870 = vrot.slane %v3869, 4
        %v3871 = vrot.slane %v3125, 5
        %v3872 = vsel %vm1142, %v3870, %v3871
        %v3873 = vrot.slane %v3871, 4
        %v3874 = vrot.slane %v3126, 5
        %v3875 = vsel %vm1142, %v3873, %v3874
        %v3876 = vrot.slane %v3770, 5
        %v3877 = vrot.slane %v3876, 4
        %v3878 = vrot.slane %v3128, 5
        %v3879 = vsel %vm1142, %v3877, %v3878
        %v3880 = vrot.slane %v3878, 4
        %v3881 = vrot.slane %v3129, 5
        %v3882 = vsel %vm1142, %v3880, %v3881
        %v3883 = vrot.slane %v3771, 5
        %v3884 = vrot.slane %v3883, 4
        %v3885 = vrot.slane %v3131, 5
        %v3886 = vsel %vm1142, %v3884, %v3885
        %v3887 = vrot.slane %v3885, 4
        %v3888 = vrot.slane %v3132, 5
        %v3889 = vsel %vm1142, %v3887, %v3888
        %v3890 = vrot.slane %v3772, 5
        %v3891 = vrot.slane %v3890, 4
        %v3892 = vrot.slane %v3134, 5
        %v3893 = vsel %vm1142, %v3891, %v3892
        %v3894 = vrot.slane %v3892, 4
        %v3895 = vrot.slane %v3135, 5
        %v3896 = vsel %vm1142, %v3894, %v3895
        %v3897 = vrot.slane %v3773, 5
        %v3898 = vrot.slane %v3897, 4
        %v3899 = vrot.slane %v3137, 5
        %v3900 = vsel %vm1142, %v3898, %v3899
        %v3901 = vrot.slane %v3899, 4
        %v3902 = vrot.slane %v3138, 5
        %v3903 = vsel %vm1142, %v3901, %v3902
        %v3904 = vrot.slane %v3774, 5
        %v3905 = vrot.slane %v3904, 4
        %v3906 = vrot.slane %v3140, 5
        %v3907 = vsel %vm1142, %v3905, %v3906
        %v3908 = vrot.slane %v3906, 4
        %v3909 = vrot.slane %v3141, 5
        %v3910 = vsel %vm1142, %v3908, %v3909
        %v3911 = vrot.slane %v3775, 5
        %v3912 = vrot.slane %v3911, 4
        %v3913 = vrot.slane %v3143, 5
        %v3914 = vsel %vm1142, %v3912, %v3913
        %v3915 = vrot.slane %v3913, 4
        %v3916 = vrot.slane %v3144, 5
        %v3917 = vsel %vm1142, %v3915, %v3916
        %v3918 = vrot.slane %v3776, 5
        %v3919 = vrot.slane %v3918, 4
        %v3920 = vrot.slane %v3146, 5
        %v3921 = vsel %vm1142, %v3919, %v3920
        %v3922 = vrot.slane %v3920, 4
        %v3923 = vrot.slane %v3147, 5
        %v3924 = vsel %vm1142, %v3922, %v3923
        %v3925 = vrot.slane %v3777, 5
        %v3926 = vrot.slane %v3925, 4
        %v3927 = vrot.slane %v3149, 5
        %v3928 = vsel %vm1142, %v3926, %v3927
        %v3929 = vrot.slane %v3927, 4
        %v3930 = vrot.slane %v3150, 5
        %v3931 = vsel %vm1142, %v3929, %v3930
        %v3932 = vrot.slane %v3778, 5
        %v3933 = vrot.slane %v3932, 4
        %v3934 = vrot.slane %v3152, 5
        %v3935 = vsel %vm1142, %v3933, %v3934
        %v3936 = vrot.slane %v3934, 4
        %v3937 = vrot.slane %v3153, 5
        %v3938 = vsel %vm1142, %v3936, %v3937
        %v3939 = vld [vmem:[%s1 + $0x10] sm:$0x3]
        %v3940 = vunpack.c.l.b16 %v3830
        %v3941 = vunpack.c.l.b16 %v3833
        %v3942 = vunpack.c.l.b16 %v3837
        %v3943 = vunpack.c.l.b16 %v3840
        %v3944 = vunpack.c.l.b16 %v3844
        %v3945 = vunpack.c.l.b16 %v3847
        %v3946 = vunpack.c.l.b16 %v3851
        %v3947 = vunpack.c.l.b16 %v3854
        %v3948 = vunpack.c.l.b16 %v3858
        %v3949 = vunpack.c.l.b16 %v3861
        %v3950 = vunpack.c.l.b16 %v3865
        %v3951 = vunpack.c.l.b16 %v3868
        %v3952 = vunpack.c.l.b16 %v3872
        %v3953 = vunpack.c.l.b16 %v3875
        %v3954 = vunpack.c.l.b16 %v3879
        %v3955 = vunpack.c.l.b16 %v3882
        %v3956 = vunpack.c.l.b16 %v3886
        %v3957 = vunpack.c.l.b16 %v3889
        %v3958 = vunpack.c.l.b16 %v3893
        %v3959 = vunpack.c.l.b16 %v3896
        %v3960 = vunpack.c.l.b16 %v3900
        %v3961 = vunpack.c.l.b16 %v3903
        %v3962 = vunpack.c.l.b16 %v3907
        %v3963 = vunpack.c.l.b16 %v3910
        %v3964 = vunpack.c.l.b16 %v3914
        %v3965 = vunpack.c.l.b16 %v3917
        %v3966 = vunpack.c.l.b16 %v3921
        %v3967 = vunpack.c.l.b16 %v3924
        %v3968 = vunpack.c.l.b16 %v3928
        %v3969 = vunpack.c.l.b16 %v3931
        %v3970 = vunpack.c.l.b16 %v3935
        %v3971 = vunpack.c.l.b16 %v3938
        %v3972 = vpack.c.b16 %v3941, %v3940
        %v3973 = vpack.c.b16 %v3943, %v3942
        %v3974 = vpack.c.b16 %v3945, %v3944
        %v3975 = vpack.c.b16 %v3947, %v3946
        %v3976 = vpack.c.b16 %v3949, %v3948
        %v3977 = vpack.c.b16 %v3951, %v3950
        %v3978 = vpack.c.b16 %v3953, %v3952
        %v3979 = vpack.c.b16 %v3955, %v3954
        %v3980 = vpack.c.b16 %v3957, %v3956
        %v3981 = vpack.c.b16 %v3959, %v3958
        %v3982 = vpack.c.b16 %v3961, %v3960
        %v3983 = vpack.c.b16 %v3963, %v3962
        %v3984 = vpack.c.b16 %v3965, %v3964
        %v3985 = vpack.c.b16 %v3967, %v3966
        %v3986 = vpack.c.b16 %v3969, %v3968
        %v3987 = vpack.c.b16 %v3971, %v3970
        %v3989 = vsel %vm730, %v3972, 0
        %v3992 = vsel %vm730, %v3973, 0
        %v3995 = vsel %vm730, %v3974, 0
        %v3998 = vsel %vm730, %v3975, 0
        %v4001 = vsel %vm730, %v3976, 0
        %v4004 = vsel %vm730, %v3977, 0
        %v4007 = vsel %vm730, %v3978, 0
        %v4010 = vsel %vm730, %v3979, 0
        %v4013 = vsel %vm730, %v3980, 0
        %v4016 = vsel %vm730, %v3981, 0
        %v4019 = vsel %vm730, %v3982, 0
        %v4022 = vsel %vm730, %v3983, 0
        %v4025 = vsel %vm730, %v3984, 0
        %v4028 = vsel %vm730, %v3985, 0
        %v4031 = vsel %vm730, %v3986, 0
        %v4034 = vsel %vm730, %v3987, 0
        %v4037 = vsel %vm779, %v3939, 0
        %4039 = vmatpush.bf16.msra.mxu0 0
        %4040 = vmatpush.bf16.msra.mxu0 0
        %4041 = vmatpush.bf16.msra.mxu0 0
        %4042 = vmatpush.bf16.msra.mxu0 0
        %4043 = vmatpush.bf16.msra.mxu0 0
        %4044 = vmatpush.bf16.msra.mxu0 0
        %4045 = vmatpush.bf16.msra.mxu0 0
        %4046 = vmatpush.bf16.msra.mxu0 %v4037
        %4047 = vmatmul.bf16.gmra.mxu0 %v3989
        %v4048 = vpop.f32.mrf.mxu0
        %v4049 = vadd.f32 0.0, %v4048
        %v4050 = vpop.f32.mrf.mxu0
        %v4051 = vadd.f32 0.0, %v4050
        %4052 = vmatmul.bf16.gmra.mxu0 %v3992
        %v4053 = vpop.f32.mrf.mxu0
        %v4054 = vadd.f32 0.0, %v4053
        %v4055 = vpop.f32.mrf.mxu0
        %v4056 = vadd.f32 0.0, %v4055
        %4057 = vmatmul.bf16.gmra.mxu0 %v3995
        %v4058 = vpop.f32.mrf.mxu0
        %v4059 = vadd.f32 0.0, %v4058
        %v4060 = vpop.f32.mrf.mxu0
        %v4061 = vadd.f32 0.0, %v4060
        %4062 = vmatmul.bf16.gmra.mxu0 %v3998
        %v4063 = vpop.f32.mrf.mxu0
        %v4064 = vadd.f32 0.0, %v4063
        %v4065 = vpop.f32.mrf.mxu0
        %v4066 = vadd.f32 0.0, %v4065
        %4067 = vmatmul.bf16.gmra.mxu0 %v4001
        %v4068 = vpop.f32.mrf.mxu0
        %v4069 = vadd.f32 0.0, %v4068
        %v4070 = vpop.f32.mrf.mxu0
        %v4071 = vadd.f32 0.0, %v4070
        %4072 = vmatmul.bf16.gmra.mxu0 %v4004
        %v4073 = vpop.f32.mrf.mxu0
        %v4074 = vadd.f32 0.0, %v4073
        %v4075 = vpop.f32.mrf.mxu0
        %v4076 = vadd.f32 0.0, %v4075
        %4077 = vmatmul.bf16.gmra.mxu0 %v4007
        %v4078 = vpop.f32.mrf.mxu0
        %v4079 = vadd.f32 0.0, %v4078
        %v4080 = vpop.f32.mrf.mxu0
        %v4081 = vadd.f32 0.0, %v4080
        %4082 = vmatmul.bf16.gmra.mxu0 %v4010
        %v4083 = vpop.f32.mrf.mxu0
        %v4084 = vadd.f32 0.0, %v4083
        %v4085 = vpop.f32.mrf.mxu0
        %v4086 = vadd.f32 0.0, %v4085
        %4087 = vmatmul.bf16.gmra.mxu0 %v4013
        %v4088 = vpop.f32.mrf.mxu0
        %v4089 = vadd.f32 0.0, %v4088
        %v4090 = vpop.f32.mrf.mxu0
        %v4091 = vadd.f32 0.0, %v4090
        %4092 = vmatmul.bf16.gmra.mxu0 %v4016
        %v4093 = vpop.f32.mrf.mxu0
        %v4094 = vadd.f32 0.0, %v4093
        %v4095 = vpop.f32.mrf.mxu0
        %v4096 = vadd.f32 0.0, %v4095
        %4097 = vmatmul.bf16.gmra.mxu0 %v4019
        %v4098 = vpop.f32.mrf.mxu0
        %v4099 = vadd.f32 0.0, %v4098
        %v4100 = vpop.f32.mrf.mxu0
        %v4101 = vadd.f32 0.0, %v4100
        %4102 = vmatmul.bf16.gmra.mxu0 %v4022
        %v4103 = vpop.f32.mrf.mxu0
        %v4104 = vadd.f32 0.0, %v4103
        %v4105 = vpop.f32.mrf.mxu0
        %v4106 = vadd.f32 0.0, %v4105
        %4107 = vmatmul.bf16.gmra.mxu0 %v4025
        %v4108 = vpop.f32.mrf.mxu0
        %v4109 = vadd.f32 0.0, %v4108
        %v4110 = vpop.f32.mrf.mxu0
        %v4111 = vadd.f32 0.0, %v4110
        %4112 = vmatmul.bf16.gmra.mxu0 %v4028
        %v4113 = vpop.f32.mrf.mxu0
        %v4114 = vadd.f32 0.0, %v4113
        %v4115 = vpop.f32.mrf.mxu0
        %v4116 = vadd.f32 0.0, %v4115
        %4117 = vmatmul.bf16.gmra.mxu0 %v4031
        %v4118 = vpop.f32.mrf.mxu0
        %v4119 = vadd.f32 0.0, %v4118
        %v4120 = vpop.f32.mrf.mxu0
        %v4121 = vadd.f32 0.0, %v4120
        %4122 = vmatmul.bf16.gmra.mxu0 %v4034
        %v4123 = vpop.f32.mrf.mxu0
        %v4124 = vadd.f32 0.0, %v4123
        %v4125 = vpop.f32.mrf.mxu0
        %v4126 = vadd.f32 0.0, %v4125
        %4127 = vdwg.mxu0
        %v4128 = vadd.f32 %v3731, %v4049
        %v4129 = vadd.f32 %v3732, %v4051
        %v4130 = vadd.f32 %v3733, %v4054
        %v4131 = vadd.f32 %v3734, %v4056
        %v4132 = vadd.f32 %v3735, %v4059
        %v4133 = vadd.f32 %v3736, %v4061
        %v4134 = vadd.f32 %v3737, %v4064
        %v4135 = vadd.f32 %v3738, %v4066
        %v4136 = vadd.f32 %v3739, %v4069
        %v4137 = vadd.f32 %v3740, %v4071
        %v4138 = vadd.f32 %v3741, %v4074
        %v4139 = vadd.f32 %v3742, %v4076
        %v4140 = vadd.f32 %v3743, %v4079
        %v4141 = vadd.f32 %v3744, %v4081
        %v4142 = vadd.f32 %v3745, %v4084
        %v4143 = vadd.f32 %v3746, %v4086
        %v4144 = vadd.f32 %v3747, %v4089
        %v4145 = vadd.f32 %v3748, %v4091
        %v4146 = vadd.f32 %v3749, %v4094
        %v4147 = vadd.f32 %v3750, %v4096
        %v4148 = vadd.f32 %v3751, %v4099
        %v4149 = vadd.f32 %v3752, %v4101
        %v4150 = vadd.f32 %v3753, %v4104
        %v4151 = vadd.f32 %v3754, %v4106
        %v4152 = vadd.f32 %v3755, %v4109
        %v4153 = vadd.f32 %v3756, %v4111
        %v4154 = vadd.f32 %v3757, %v4114
        %v4155 = vadd.f32 %v3758, %v4116
        %v4156 = vadd.f32 %v3759, %v4119
        %v4157 = vadd.f32 %v3760, %v4121
        %v4158 = vadd.f32 %v3761, %v4124
        %v4159 = vadd.f32 %v3762, %v4126
        %v4160 = vld [vmem:[%s239] sm:$0xff]
        %v4161 = vld [vmem:[%s3] sm:$0xff]
        %v4162 = vld [vmem:[%s3 + $0x8] sm:$0xff]
        %v4163 = vld [vmem:[%s3 + $0x10] sm:$0xff]
        %v4164 = vld [vmem:[%s3 + $0x18] sm:$0xff]
        %v4165 = vld [vmem:[%s3 + $0x20] sm:$0xff]
        %v4166 = vld [vmem:[%s3 + $0x28] sm:$0xff]
        %v4167 = vld [vmem:[%s4] sm:$0xff]
        %4168 = vxpose.xlu0.b32.start [1/16] %v4128, 128
        %4169 = vxpose.xlu0.b32.cont [2/16] %v4129, 128
        %4170 = vxpose.xlu0.b32.cont [3/16] %v4130, 128
        %4171 = vxpose.xlu0.b32.cont [4/16] %v4131, 128
        %4172 = vxpose.xlu0.b32.cont [5/16] %v4132, 128
        %4173 = vxpose.xlu0.b32.cont [6/16] %v4133, 128
        %4174 = vxpose.xlu0.b32.cont [7/16] %v4134, 128
        %4175 = vxpose.xlu0.b32.cont [8/16] %v4135, 128
        %4176 = vxpose.xlu0.b32.cont [9/16] %v4136, 128
        %4177 = vxpose.xlu0.b32.cont [10/16] %v4137, 128
        %4178 = vxpose.xlu0.b32.cont [11/16] %v4138, 128
        %4179 = vxpose.xlu0.b32.cont [12/16] %v4139, 128
        %4180 = vxpose.xlu0.b32.cont [13/16] %v4140, 128
        %4181 = vxpose.xlu0.b32.cont [14/16] %v4141, 128
        %4182 = vxpose.xlu0.b32.cont [15/16] %v4142, 128
        %4183 = vxpose.xlu0.b32.end [16/16] %v4143, 128
        %v4184 = vpop.trf.xlu0
        %v4185 = vpop.trf.xlu0
        %v4186 = vpop.trf.xlu0
        %v4187 = vpop.trf.xlu0
        %v4188 = vpop.trf.xlu0
        %v4189 = vpop.trf.xlu0
        %v4190 = vpop.trf.xlu0
        %v4191 = vpop.trf.xlu0
        %v4192 = vpop.trf.xlu0
        %v4193 = vpop.trf.xlu0
        %v4194 = vpop.trf.xlu0
        %v4195 = vpop.trf.xlu0
        %v4196 = vpop.trf.xlu0
        %v4197 = vpop.trf.xlu0
        %v4198 = vpop.trf.xlu0
        %v4199 = vpop.trf.xlu0
        %4200 = vxpose.xlu0.b32.start [1/16] %v4144, 128
        %4201 = vxpose.xlu0.b32.cont [2/16] %v4145, 128
        %4202 = vxpose.xlu0.b32.cont [3/16] %v4146, 128
        %4203 = vxpose.xlu0.b32.cont [4/16] %v4147, 128
        %4204 = vxpose.xlu0.b32.cont [5/16] %v4148, 128
        %4205 = vxpose.xlu0.b32.cont [6/16] %v4149, 128
        %4206 = vxpose.xlu0.b32.cont [7/16] %v4150, 128
        %4207 = vxpose.xlu0.b32.cont [8/16] %v4151, 128
        %4208 = vxpose.xlu0.b32.cont [9/16] %v4152, 128
        %4209 = vxpose.xlu0.b32.cont [10/16] %v4153, 128
        %4210 = vxpose.xlu0.b32.cont [11/16] %v4154, 128
        %4211 = vxpose.xlu0.b32.cont [12/16] %v4155, 128
        %4212 = vxpose.xlu0.b32.cont [13/16] %v4156, 128
        %4213 = vxpose.xlu0.b32.cont [14/16] %v4157, 128
        %4214 = vxpose.xlu0.b32.cont [15/16] %v4158, 128
        %4215 = vxpose.xlu0.b32.end [16/16] %v4159, 128
        %v4216 = vpop.trf.xlu0
        %v4217 = vpop.trf.xlu0
        %v4218 = vpop.trf.xlu0
        %v4219 = vpop.trf.xlu0
        %v4220 = vpop.trf.xlu0
        %v4221 = vpop.trf.xlu0
        %v4222 = vpop.trf.xlu0
        %v4223 = vpop.trf.xlu0
        %v4224 = vpop.trf.xlu0
        %v4225 = vpop.trf.xlu0
        %v4226 = vpop.trf.xlu0
        %v4227 = vpop.trf.xlu0
        %v4228 = vpop.trf.xlu0
        %v4229 = vpop.trf.xlu0
        %v4230 = vpop.trf.xlu0
        %v4231 = vpop.trf.xlu0
        %4233 = vset.pattern.permute.xlu0 0
        %4234 = vperm.xlu0 %4233, %v4167
        %v4235 = vpop.permute.xlu0 %4234
        %v4237 = vadd.f32 %v4184, %v4235
        %v4238 = vadd.f32 %v4216, %v4235
        %4240 = vset.pattern.permute.xlu0 0
        %4241 = vperm.xlu0 %4240, %v4160
        %v4242 = vpop.permute.xlu0 %4241
        %v4244 = vmul.f32 %v4242, %v4161
        %v4245 = vmul.f32 %v4242, %v4162
        %v4246 = vadd.f32 %v4237, %v4244
        %v4247 = vadd.f32 %v4238, %v4245
        %4248 = vset.pattern.permute.xlu0 1
        %4249 = vperm.xlu0 %4248, %v4160
        %v4250 = vpop.permute.xlu0 %4249
        %v4252 = vmul.f32 %v4250, %v4163
        %v4253 = vmul.f32 %v4250, %v4164
        %v4254 = vadd.f32 %v4246, %v4252
        %v4255 = vadd.f32 %v4247, %v4253
        %4256 = vset.pattern.permute.xlu0 2
        %4257 = vperm.xlu0 %4256, %v4160
        %v4258 = vpop.permute.xlu0 %4257
        %v4260 = vmul.f32 %v4258, %v4165
        %v4261 = vmul.f32 %v4258, %v4166
        %v4262 = vadd.f32 %v4254, %v4260
        %v4263 = vadd.f32 %v4255, %v4261
        %4264 = vst [vmem:[%s230] sm:$0xff] %v4262
        %4265 = vst [vmem:[%s230 + $0x8] sm:$0xff] %v4263
        %s4266 = sand.u32 %s142, 1
        %s4267 = scalar_lea.sflag [#allocation3], %s4266
        %s4268 = sand.u32 %s142, 1
        %s4269 = smul.addr %s4268, 16
        %s4270 = scalar_lea.vmem [#allocation2], %s4269
        // Predicated region
        $region41: #{tpu_custom_call.1} parent=39 // pred_check
          %p4271 = pneg %p152
        $region42: #{tpu_custom_call.1} parent=39 // pred_check_branch
          %4273 = sbr.rel (%p4271) target = $region44
        $region43: #{tpu_custom_call.1} parent=39 // pred_region
          %4275 = vsyncadd %s4267, 0
          %s4276 = smul.addr %s19, 2
          %s4277 = smul.addr %s4276, 8
          %s4278 = scalar_lea.hbm %s5, %s4277
          %s4280 = sshll.u32 %s4270, 4
          %s4281 = int_to_ptr.vmem [resolvable:$true] %s4280
          %s4282 = sshll.u32 %s4278, 4
          %s4283 = int_to_ptr.hbm [resolvable:$true] %s4282
          %4285 = dma.vmem_to_hbm [thread:$0]  %s4281, 256, %s4283, %s4267
        $region44: #{tpu_custom_call.1} parent=39 // pred_fallthru
          _
      $region40: #{tpu_custom_call.1} parent=5 // pred_fallthru
        _
      %p4286 = scmp.le.s32.totalorder 2, %s14
      // Predicated region
      $region45: #{tpu_custom_call.1} parent=5 // pred_check
        %p4287 = pneg %p4286
      $region46: #{tpu_custom_call.1} parent=5 // pred_check_branch
        %4289 = sbr.rel (%p4287) target = $region48
      $region47: #{tpu_custom_call.1} parent=5 // pred_region
        %s4290 = ssub.s32 %s14, 2
        // Predicated region
        $region49: #{tpu_custom_call.1} parent=47 // pred_check
          %p4291 = pneg %p158
        $region50: #{tpu_custom_call.1} parent=47 // pred_check_branch
          %4293 = sbr.rel (%p4291) target = $region52
        $region51: #{tpu_custom_call.1} parent=47 // pred_region
          %s4294 = sand.u32 %s143, 1
          %s4295 = scalar_lea.sflag [#allocation3], %s4294
          %s4296 = sand.u32 %s143, 1
          %s4297 = smul.addr %s4296, 16
          %s4298 = scalar_lea.vmem [#allocation2], %s4297
          %4300 = dma.done %s4295, 256
        $region52: #{tpu_custom_call.1} parent=47 // pred_fallthru
          _
      $region48: #{tpu_custom_call.1} parent=5 // pred_fallthru
        _
    $region6: #{tpu_custom_call.1} parent=1 // loop_footer
      %s18 = sadd.s32 1, %s14
    $region7: #{tpu_custom_call.1} parent=1 // loop_footer_branch
      %13 = sbr.rel target = $region3
    $region8: #{tpu_custom_call.1} parent=1 // loop_exit
      _
    %4301 = vsyncpa [#allocation3], 1
    %s4302 = scalar_lea.sflag [#allocation3], 1
    %4303 = vsyncpa %s4302, 1

</llo_original>
